<compile_context>
chip_gen: v6e
topology: v6e:2x2x1
jax: 0.10.0
libtpu: 0.0.40
codegen_flags: <defaults>
</compile_context>

<pallas_src>
import functools

import jax
import jax.numpy as jnp
from jax.experimental import pallas as pl
from jax.experimental.pallas import tpu as pltpu

NUM_LAYERS = 2
LANE = 128
SUBLANE = 8
_HIGH = jax.lax.Precision.HIGHEST  # reference only


def _round_up(x, m):
    return (x + m - 1) // m * m


# ----------------------------------------------------------------------------
# Kernel
# ----------------------------------------------------------------------------
def _lstm_kernel(TT, H_pad,
                 x_ref, lens_ref, h0_ref, c0_ref,
                 wih0_ref, whh0_ref, wih1_ref, whh1_ref, b0_ref, b1_ref,
                 out_ref, hn_ref, cn_ref,
                 h_scr, c_scr, xproj_scr):
    blk = pl.program_id(0)
    nblk = pl.num_programs(0)
    B_pad = lens_ref.shape[0]

    @pl.when(blk == 0)
    def _init():
        h_scr[...] = h0_ref[...]
        c_scr[...] = c0_ref[...]

    # ---- Layer-0 input projection for the whole TT block: one wide GEMM ----
    # (TT*B_pad, E_pad) @ (E_pad, 4*H_pad); bias folded in once; this is the
    # MXU-efficient (M = TT*B_pad) half of layer 0, off the serial chain.
    xproj_scr[...] = (
        jnp.dot(x_ref[0], wih0_ref[...], preferred_element_type=jnp.float32)
        + b0_ref[...])

    # Hoisted per-grid-step constants.
    lens_val = lens_ref[...]                                    # (B_pad, 1) i32
    bias1 = jnp.broadcast_to(b1_ref[...], (B_pad, 4 * H_pad))   # one bcast/blk
    t0 = blk * TT

    # Carry h/c state in registers across the unrolled TT steps.
    h0_st = h_scr[0]
    c0_st = c_scr[0]
    h1_st = h_scr[1]
    c1_st = c_scr[1]

    def _gates(g):
        # Lane-aligned gate slices (gate order i, f, g, o).
        i_g = jax.nn.sigmoid(g[:, 0 * H_pad:1 * H_pad])
        f_g = jax.nn.sigmoid(g[:, 1 * H_pad:2 * H_pad])
        g_g = jnp.tanh(g[:, 2 * H_pad:3 * H_pad])
        o_g = jax.nn.sigmoid(g[:, 3 * H_pad:4 * H_pad])
        return i_g, f_g, g_g, o_g

    for tt in range(TT):                                 # unrolled inner steps
        # packed-sequence validity mask; single broadcast reused 5x this step.
        valid = jnp.broadcast_to(lens_val > (t0 + tt), (B_pad, H_pad))

        # ---- layer 0: recurrent half only (x half precomputed above) ----
        g0 = (xproj_scr[tt * B_pad:(tt + 1) * B_pad, :]
              + jnp.dot(h0_st.astype(jnp.bfloat16), whh0_ref[...],
                        preferred_element_type=jnp.float32))
        i_g, f_g, g_g, o_g = _gates(g0)
        c0_new = f_g * c0_st + i_g * g_g
        h0_new = o_g * jnp.tanh(c0_new)
        c0_st = jnp.where(valid, c0_new, c0_st)          # freeze past seq end
        h0_st = jnp.where(valid, h0_new, h0_st)

        # ---- layer 1: two dots, no cat-scratch round trip ----
        g1 = (jnp.dot(h0_new.astype(jnp.bfloat16), wih1_ref[...],
                      preferred_element_type=jnp.float32)
              + jnp.dot(h1_st.astype(jnp.bfloat16), whh1_ref[...],
                        preferred_element_type=jnp.float32)
              + bias1)
        i_g, f_g, g_g, o_g = _gates(g1)
        c1_new = f_g * c1_st + i_g * g_g
        h1_new = o_g * jnp.tanh(c1_new)
        c1_st = jnp.where(valid, c1_new, c1_st)
        h1_st = jnp.where(valid, h1_new, h1_st)

        # pad_packed_sequence: zero outputs past each length; bf16 lane-dense.
        out_ref[tt] = jnp.where(valid, h1_new, 0.0).astype(out_ref.dtype)

    # Write carried state back to scratch once per grid step.
    h_scr[0] = h0_st
    c_scr[0] = c0_st
    h_scr[1] = h1_st
    c_scr[1] = c1_st

    @pl.when(blk == nblk - 1)
    def _final():
        hn_ref[...] = h_scr[...].astype(hn_ref.dtype)
        cn_ref[...] = c_scr[...].astype(cn_ref.dtype)


# ----------------------------------------------------------------------------
# Wrapper helpers
# ----------------------------------------------------------------------------
def _pad_weight(w_t, in_dim, in_pad, H, H_pad):
    """(in_dim, 4H) f32 -> (in_pad, 4*H_pad) bf16, each gate lane-aligned."""
    out = jnp.zeros((in_pad, 4 * H_pad), jnp.float32)
    for g in range(4):
        out = out.at[0:in_dim, g * H_pad:g * H_pad + H].set(
            w_t[:, g * H:(g + 1) * H])
    return out.astype(jnp.bfloat16)


def _pad_bias(b, H, H_pad):
    """(1, 4H) f32 -> (1, 4*H_pad) f32, gate-aligned, padded lanes zero."""
    out = jnp.zeros((1, 4 * H_pad), jnp.float32)
    for g in range(4):
        out = out.at[:, g * H_pad:g * H_pad + H].set(b[:, g * H:(g + 1) * H])
    return out


def lstm_pallas(emb_tbe, lens_b, h0, c0, lstm_params, *, tt_block=16):
    T, B, E = emb_tbe.shape
    L, _, H = h0.shape
    assert L == NUM_LAYERS

    B_pad = _round_up(B, SUBLANE)
    E_pad = _round_up(E, LANE)
    H_pad = _round_up(H, LANE)
    TT = int(tt_block)
    T_pad = _round_up(T, TT)
    nblk = T_pad // TT

    # Pad / cast inputs for lane-aligned kernel layout.
    x_pad = jnp.zeros((T_pad, B_pad, E_pad), jnp.bfloat16)
    x_pad = x_pad.at[:T, :B, :E].set(emb_tbe.astype(jnp.bfloat16))
    # Row-major view (nblk, TT*B_pad, E_pad): kernel gets a wide-M GEMM operand
    # with no in-kernel reshape.
    x_blk = x_pad.reshape(nblk, TT * B_pad, E_pad)

    lens_pad = jnp.zeros((B_pad, 1), jnp.int32).at[:B, 0].set(
        lens_b.astype(jnp.int32))
    h0_pad = jnp.zeros((L, B_pad, H_pad), jnp.float32).at[:, :B, :H].set(h0)
    c0_pad = jnp.zeros((L, B_pad, H_pad), jnp.float32).at[:, :B, :H].set(c0)

    (wih0, whh0, b0), (wih1, whh1, b1) = lstm_params
    wih0_p = _pad_weight(wih0, E, E_pad, H, H_pad)   # (E_pad, 4*H_pad) bf16
    whh0_p = _pad_weight(whh0, H, H_pad, H, H_pad)   # (H_pad, 4*H_pad) bf16
    wih1_p = _pad_weight(wih1, H, H_pad, H, H_pad)
    whh1_p = _pad_weight(whh1, H, H_pad, H, H_pad)
    b0_p = _pad_bias(b0, H, H_pad)                   # folded into x-projection
    b1_p = _pad_bias(b1, H, H_pad)

    # --- VMEM footprint (no blanket 2x factor; scratch counted once) ---------
    bfb, f4 = 2, 4
    stream = 2 * (TT * B_pad * E_pad * bfb) + 2 * (TT * B_pad * H_pad * bfb)
    consts = 2 * (B_pad * f4
                  + 2 * L * B_pad * H_pad * f4
                  + (E_pad + 3 * H_pad) * 4 * H_pad * bfb
                  + 2 * 4 * H_pad * f4)
    state_out = 2 * (2 * L * B_pad * H_pad * f4)
    scratch = 2 * L * B_pad * H_pad * f4 + TT * B_pad * 4 * H_pad * f4
    footprint = stream + consts + state_out + scratch
    try:
        vmem_cap = int(pltpu.get_tpu_info().vmem_capacity_bytes)
    except Exception:
        vmem_cap = 64 * 1024 * 1024          # conservative: v7x physical VMEM
    vmem_limit = int(min(int(0.85 * vmem_cap),
                         max(32 * 1024 * 1024,
                             footprint * 3 // 2 + (4 << 20))))

    kernel = functools.partial(_lstm_kernel, TT, H_pad)

    grid_spec = pltpu.PrefetchScalarGridSpec(
        num_scalar_prefetch=0,
        grid=(nblk,),
        in_specs=[
            pl.BlockSpec((1, TT * B_pad, E_pad), lambda i: (i, 0, 0)),  # x blk
            pl.BlockSpec((B_pad, 1), lambda i: (0, 0)),                 # lens
            pl.BlockSpec((L, B_pad, H_pad), lambda i: (0, 0, 0)),       # h0
            pl.BlockSpec((L, B_pad, H_pad), lambda i: (0, 0, 0)),       # c0
            pl.BlockSpec((E_pad, 4 * H_pad), lambda i: (0, 0)),         # Wih L0
            pl.BlockSpec((H_pad, 4 * H_pad), lambda i: (0, 0)),         # Whh L0
            pl.BlockSpec((H_pad, 4 * H_pad), lambda i: (0, 0)),         # Wih L1
            pl.BlockSpec((H_pad, 4 * H_pad), lambda i: (0, 0)),         # Whh L1
            pl.BlockSpec((1, 4 * H_pad), lambda i: (0, 0)),             # b L0
            pl.BlockSpec((1, 4 * H_pad), lambda i: (0, 0)),             # b L1
        ],
        out_specs=[
            pl.BlockSpec((TT, B_pad, H_pad), lambda i: (i, 0, 0)),      # out
            pl.BlockSpec((L, B_pad, H_pad), lambda i: (0, 0, 0)),       # h_n
            pl.BlockSpec((L, B_pad, H_pad), lambda i: (0, 0, 0)),       # c_n
        ],
        scratch_shapes=[
            pltpu.VMEM((L, B_pad, H_pad), jnp.float32),                 # h state
            pltpu.VMEM((L, B_pad, H_pad), jnp.float32),                 # c state
            pltpu.VMEM((TT * B_pad, 4 * H_pad), jnp.float32),           # x proj
        ],
    )

    out_pad, hn_pad, cn_pad = pl.pallas_call(
        kernel,
        grid_spec=grid_spec,
        out_shape=(
            jax.ShapeDtypeStruct((T_pad, B_pad, H_pad), jnp.bfloat16),
            jax.ShapeDtypeStruct((L, B_pad, H_pad), jnp.float32),
            jax.ShapeDtypeStruct((L, B_pad, H_pad), jnp.float32),
        ),
        compiler_params=pltpu.CompilerParams(
            dimension_semantics=("arbitrary",),
            vmem_limit_bytes=vmem_limit,
        ),
    )(x_blk, lens_pad, h0_pad, c0_pad,
      wih0_p, whh0_p, wih1_p, whh1_p, b0_p, b1_p)

    out = out_pad[:T, :B, :H].astype(jnp.float32)
    hn = hn_pad[:, :B, :H]
    cn = cn_pad[:, :B, :H]
    return out, hn, cn


def encoder_forward(x, hidden, x_lens, embed_weights, lstm_params,
                    max_sentence_length, *, tt_block=16):
    """Mirrors Encoder.forward(x, hidden, x_lens, train=True)."""
    B, T, _ = x.shape
    # nn.Embedding lookup + .view(B, T, E)  (glue, plain JAX gather)
    emb = jnp.take(embed_weights, x[..., 0].astype(jnp.int32), axis=0)  # (B,T,E)
    emb_tbe = jnp.transpose(emb, (1, 0, 2)).astype(jnp.float32)          # (T,B,E)
    h0, c0 = hidden
    lens = jnp.asarray(x_lens, jnp.int32)
    out_tbh, hn, cn = lstm_pallas(emb_tbe, lens, h0, c0, lstm_params,
                                  tt_block=tt_block)
    out = jnp.transpose(out_tbh, (1, 0, 2))                              # (B,T,H)
    total = max_sentence_length - 1
    out = jnp.pad(out, ((0, 0), (0, total - T), (0, 0)))                 # pad_packed
    return out, (hn, cn)


# ----------------------------------------------------------------------------
# Pure-JAX reference (mirrors the kernel's bf16 MXU operand rounding so the
# comparison isolates structural correctness: padding, masking, gate order).
# ----------------------------------------------------------------------------
def reference_encoder(x, hidden, x_lens, embed_weights, lstm_params,
                      max_sentence_length):
    B, T, _ = x.shape
    emb = jnp.take(embed_weights, x[..., 0].astype(jnp.int32), axis=0)
    emb = emb.astype(jnp.bfloat16).astype(jnp.float32)
    h, c = hidden
    L, _, H = h.shape
    lens = jnp.asarray(x_lens, jnp.int32)
    outs = []
    for t in range(T):
        valid = (lens > t)[:, None]
        layer_in = emb[:, t, :]
        hs, cs = [], []
        top = None
        for l in range(L):
            w_ih, w_hh, b = lstm_params[l]
            w_ih = w_ih.astype(jnp.bfloat16).astype(jnp.float32)
            w_hh = w_hh.astype(jnp.bfloat16).astype(jnp.float32)
            h_in = h[l].astype(jnp.bfloat16).astype(jnp.float32)
            gates = (jnp.dot(layer_in, w_ih, precision=_HIGH)
                     + jnp.dot(h_in, w_hh, precision=_HIGH) + b)
            i_g = jax.nn.sigmoid(gates[:, :H])
            f_g = jax.nn.sigmoid(gates[:, H:2 * H])
            g_g = jnp.tanh(gates[:, 2 * H:3 * H])
            o_g = jax.nn.sigmoid(gates[:, 3 * H:])
            c_n = f_g * c[l] + i_g * g_g
            h_n = o_g * jnp.tanh(c_n)
            cs.append(jnp.where(valid, c_n, c[l]))
            hs.append(jnp.where(valid, h_n, h[l]))
            layer_in = h_n.astype(jnp.bfloat16).astype(jnp.float32)
            top = h_n
        h = jnp.stack(hs)
        c = jnp.stack(cs)
        outs.append(jnp.where(valid, top, 0.0))
    out = jnp.stack(outs, axis=1)
    total = max_sentence_length - 1
    out = jnp.pad(out, ((0, 0), (0, total - T), (0, 0)))
    return out, (h, c)


if __name__ == "__main__":
    vocab, E, H, L = 50, 16, 32, NUM_LAYERS
    B, T = 4, 8
    max_sentence_length = 10  # total_length = 9 (> T, exercises zero padding)

    key = jax.random.PRNGKey(0)
    k_emb, k_x, *k_w = jax.random.split(key, 2 + 4 * L)

    embed_weights = jax.random.normal(k_emb, (vocab, E), dtype=jnp.float32)
    x = jax.random.randint(k_x, (B, T, 1), 0, vocab)           # token ids (B,T,1)
    x_lens = jnp.array([8, 6, 5, 3], dtype=jnp.int32)          # sorted descending

    bound = 1.0 / (H ** 0.5)                                   # PyTorch LSTM init
    lstm_params = []
    for l in range(L):
        in_size = E if l == 0 else H
        kw1, kw2, kb1, kb2 = k_w[4 * l:4 * l + 4]
        w_ih = jax.random.uniform(kw1, (4 * H, in_size), jnp.float32, -bound, bound)
        w_hh = jax.random.uniform(kw2, (4 * H, H), jnp.float32, -bound, bound)
        b_ih = jax.random.uniform(kb1, (4 * H,), jnp.float32, -bound, bound)
        b_hh = jax.random.uniform(kb2, (4 * H,), jnp.float32, -bound, bound)
        # store transposed (in, 4H) / (H, 4H) and fused bias (1, 4H)
        lstm_params.append((w_ih.T, w_hh.T, (b_ih + b_hh)[None, :]))
    lstm_params = tuple(lstm_params)

    # Encoder.init_hidden
    h0 = jnp.zeros((L, B, H), jnp.float32)
    c0 = jnp.zeros((L, B, H), jnp.float32)

    # tt_block=4 -> 2 grid steps: exercises state carry across grid iterations.
    out, (hn, cn) = encoder_forward(x, (h0, c0), x_lens, embed_weights,
                                    lstm_params, max_sentence_length,
                                    tt_block=4)
    out, hn, cn = jax.block_until_ready((out, hn, cn))

    ref_out, (ref_hn, ref_cn) = reference_encoder(x, (h0, c0), x_lens,
                                                  embed_weights, lstm_params,
                                                  max_sentence_length)
    assert out.shape == (B, max_sentence_length - 1, H)
    assert hn.shape == (L, B, H) and cn.shape == (L, B, H)
    # bf16 MXU operands + bf16 output store -> relaxed tolerance vs. the
    # (bf16-mirrored) reference.
    assert float(jnp.max(jnp.abs(out - ref_out))) < 2e-2
    assert float(jnp.max(jnp.abs(hn - ref_hn))) < 2e-2
    assert float(jnp.max(jnp.abs(cn - ref_cn))) < 2e-2

    print("KERNEL_OK")
</pallas_src>

<mosaic_0001>
module attributes {stable_mosaic.version = 11 : i64} {
  func.func @_lstm_kernel(%arg0: i32, %arg1: memref<1x32x128xbf16, #tpu.memory_space<vmem>>, %arg2: memref<8x1xi32, #tpu.memory_space<vmem>>, %arg3: memref<2x8x128xf32, #tpu.memory_space<vmem>>, %arg4: memref<2x8x128xf32, #tpu.memory_space<vmem>>, %arg5: memref<128x512xbf16, #tpu.memory_space<vmem>>, %arg6: memref<128x512xbf16, #tpu.memory_space<vmem>>, %arg7: memref<128x512xbf16, #tpu.memory_space<vmem>>, %arg8: memref<128x512xbf16, #tpu.memory_space<vmem>>, %arg9: memref<1x512xf32, #tpu.memory_space<vmem>>, %arg10: memref<1x512xf32, #tpu.memory_space<vmem>>, %arg11: memref<4x8x128xbf16, #tpu.memory_space<vmem>>, %arg12: memref<2x8x128xf32, #tpu.memory_space<vmem>>, %arg13: memref<2x8x128xf32, #tpu.memory_space<vmem>>, %arg14: memref<2x8x128xf32, #tpu.memory_space<vmem>>, %arg15: memref<2x8x128xf32, #tpu.memory_space<vmem>>, %arg16: memref<32x512xf32, #tpu.memory_space<vmem>>) attributes {dimension_semantics = [#tpu.dimension_semantics<arbitrary>], iteration_bounds = array<i64: 2>, scalar_prefetch = 0 : i64, scratch_operands = 3 : i64, tpu.core_type = #tpu.core_type<tc>, window_params = [{transform_indices = @transform_0, window_bounds = array<i64: 1, 32, 128>}, {pipeline_mode = #tpu.pipeline_mode<synchronous>, transform_indices = @transform_1, window_bounds = array<i64: 8, 1>}, {pipeline_mode = #tpu.pipeline_mode<synchronous>, transform_indices = @transform_2, window_bounds = array<i64: 2, 8, 128>}, {pipeline_mode = #tpu.pipeline_mode<synchronous>, transform_indices = @transform_3, window_bounds = array<i64: 2, 8, 128>}, {pipeline_mode = #tpu.pipeline_mode<synchronous>, transform_indices = @transform_4, window_bounds = array<i64: 128, 512>}, {pipeline_mode = #tpu.pipeline_mode<synchronous>, transform_indices = @transform_5, window_bounds = array<i64: 128, 512>}, {pipeline_mode = #tpu.pipeline_mode<synchronous>, transform_indices = @transform_6, window_bounds = array<i64: 128, 512>}, {pipeline_mode = #tpu.pipeline_mode<synchronous>, transform_indices = @transform_7, window_bounds = array<i64: 128, 512>}, {pipeline_mode = #tpu.pipeline_mode<synchronous>, transform_indices = @transform_8, window_bounds = array<i64: 1, 512>}, {pipeline_mode = #tpu.pipeline_mode<synchronous>, transform_indices = @transform_9, window_bounds = array<i64: 1, 512>}, {transform_indices = @transform_10, window_bounds = array<i64: 4, 8, 128>}, {pipeline_mode = #tpu.pipeline_mode<synchronous>, transform_indices = @transform_11, window_bounds = array<i64: 2, 8, 128>}, {pipeline_mode = #tpu.pipeline_mode<synchronous>, transform_indices = @transform_12, window_bounds = array<i64: 2, 8, 128>}]} {
    %c0_i32 = arith.constant 0 : i32
    %0 = arith.cmpi eq, %arg0, %c0_i32 : i32
    %1 = arith.extui %0 : i1 to i32
    %c0_i32_0 = arith.constant 0 : i32
    %2 = arith.cmpi ne, %1, %c0_i32_0 : i32
    scf.if %2 {
      %c0_118 = arith.constant 0 : index
      %c0_119 = arith.constant 0 : index
      %c0_120 = arith.constant 0 : index
      %351 = vector.load %arg3[%c0_118, %c0_119, %c0_120] : memref<2x8x128xf32, #tpu.memory_space<vmem>>, vector<2x8x128xf32>
      %c0_121 = arith.constant 0 : index
      %c0_122 = arith.constant 0 : index
      %c0_123 = arith.constant 0 : index
      %352 = vector.load %arg14[%c0_121, %c0_122, %c0_123] : memref<2x8x128xf32, #tpu.memory_space<vmem>>, vector<2x8x128xf32>
      tpu.vector_store %arg14[%c0_121, %c0_122, %c0_123], %351 {strides = array<i32>} : memref<2x8x128xf32, #tpu.memory_space<vmem>>, vector<2x8x128xf32>,
      %c0_124 = arith.constant 0 : index
      %c0_125 = arith.constant 0 : index
      %c0_126 = arith.constant 0 : index
      %353 = vector.load %arg4[%c0_124, %c0_125, %c0_126] : memref<2x8x128xf32, #tpu.memory_space<vmem>>, vector<2x8x128xf32>
      %c0_127 = arith.constant 0 : index
      %c0_128 = arith.constant 0 : index
      %c0_129 = arith.constant 0 : index
      %354 = vector.load %arg15[%c0_127, %c0_128, %c0_129] : memref<2x8x128xf32, #tpu.memory_space<vmem>>, vector<2x8x128xf32>
      tpu.vector_store %arg15[%c0_127, %c0_128, %c0_129], %353 {strides = array<i32>} : memref<2x8x128xf32, #tpu.memory_space<vmem>>, vector<2x8x128xf32>,
    } else {
    }
    %c0 = arith.constant 0 : index
    %c0_1 = arith.constant 0 : index
    %c0_2 = arith.constant 0 : index
    %3 = vector.load %arg1[%c0, %c0_1, %c0_2] : memref<1x32x128xbf16, #tpu.memory_space<vmem>>, vector<1x32x128xbf16>
    %4 = vector.shape_cast %3 : vector<1x32x128xbf16> to vector<32x128xbf16>
    %c0_3 = arith.constant 0 : index
    %c0_4 = arith.constant 0 : index
    %5 = vector.load %arg5[%c0_3, %c0_4] : memref<128x512xbf16, #tpu.memory_space<vmem>>, vector<128x512xbf16>
    %cst = arith.constant dense<0.000000e+00> : vector<32x512xf32>
    %6 = tpu.matmul %4, %5, %cst {dimension_numbers = #tpu.dot_dimension_numbers<[1], [0], [0], [1], [0, 0, 1, 1], [], []>} : vector<32x128xbf16>, vector<128x512xbf16>, vector<32x512xf32> -> vector<32x512xf32>
    %c0_5 = arith.constant 0 : index
    %c0_6 = arith.constant 0 : index
    %7 = vector.load %arg9[%c0_5, %c0_6] : memref<1x512xf32, #tpu.memory_space<vmem>>, vector<1x512xf32>
    %8 = vector.broadcast %7 : vector<1x512xf32> to vector<32x512xf32>
    %9 = arith.addf %6, %8 : vector<32x512xf32>
    %c0_7 = arith.constant 0 : index
    %c0_8 = arith.constant 0 : index
    %10 = vector.load %arg16[%c0_7, %c0_8] : memref<32x512xf32, #tpu.memory_space<vmem>>, vector<32x512xf32>
    tpu.vector_store %arg16[%c0_7, %c0_8], %9 {strides = array<i32>} : memref<32x512xf32, #tpu.memory_space<vmem>>, vector<32x512xf32>,
    %c0_9 = arith.constant 0 : index
    %c0_10 = arith.constant 0 : index
    %11 = vector.load %arg2[%c0_9, %c0_10] : memref<8x1xi32, #tpu.memory_space<vmem>>, vector<8x1xi32>
    %c0_11 = arith.constant 0 : index
    %c0_12 = arith.constant 0 : index
    %12 = vector.load %arg10[%c0_11, %c0_12] : memref<1x512xf32, #tpu.memory_space<vmem>>, vector<1x512xf32>
    %13 = vector.shape_cast %12 : vector<1x512xf32> to vector<1x512xf32>
    %14 = vector.broadcast %13 : vector<1x512xf32> to vector<8x512xf32>
    %c4_i32 = arith.constant 4 : i32
    %15 = arith.muli %arg0, %c4_i32 : i32
    %c0_13 = arith.constant 0 : index
    %c0_14 = arith.constant 0 : index
    %c0_15 = arith.constant 0 : index
    %16 = vector.load %arg14[%c0_13, %c0_14, %c0_15] : memref<2x8x128xf32, #tpu.memory_space<vmem>>, vector<1x8x128xf32>
    %17 = vector.shape_cast %16 : vector<1x8x128xf32> to vector<8x128xf32>
    %c0_16 = arith.constant 0 : index
    %c0_17 = arith.constant 0 : index
    %c0_18 = arith.constant 0 : index
    %18 = vector.load %arg15[%c0_16, %c0_17, %c0_18] : memref<2x8x128xf32, #tpu.memory_space<vmem>>, vector<1x8x128xf32>
    %19 = vector.shape_cast %18 : vector<1x8x128xf32> to vector<8x128xf32>
    %c1 = arith.constant 1 : index
    %c0_19 = arith.constant 0 : index
    %c0_20 = arith.constant 0 : index
    %20 = vector.load %arg14[%c1, %c0_19, %c0_20] : memref<2x8x128xf32, #tpu.memory_space<vmem>>, vector<1x8x128xf32>
    %21 = vector.shape_cast %20 : vector<1x8x128xf32> to vector<8x128xf32>
    %c1_21 = arith.constant 1 : index
    %c0_22 = arith.constant 0 : index
    %c0_23 = arith.constant 0 : index
    %22 = vector.load %arg15[%c1_21, %c0_22, %c0_23] : memref<2x8x128xf32, #tpu.memory_space<vmem>>, vector<1x8x128xf32>
    %23 = vector.shape_cast %22 : vector<1x8x128xf32> to vector<8x128xf32>
    %c0_i32_24 = arith.constant 0 : i32
    %24 = arith.addi %15, %c0_i32_24 : i32
    %25 = vector.broadcast %24 : i32 to vector<8x1xi32>
    %26 = arith.cmpi sgt, %11, %25 : vector<8x1xi32>
    %27 = vector.shape_cast %26 : vector<8x1xi1> to vector<8x1xi1>
    %28 = vector.broadcast %27 : vector<8x1xi1> to vector<8x128xi1>
    %c0_25 = arith.constant 0 : index
    %c0_26 = arith.constant 0 : index
    %29 = vector.load %arg16[%c0_25, %c0_26] : memref<32x512xf32, #tpu.memory_space<vmem>>, vector<8x512xf32>
    %30 = arith.truncf %17 : vector<8x128xf32> to vector<8x128xbf16>
    %c0_27 = arith.constant 0 : index
    %c0_28 = arith.constant 0 : index
    %31 = vector.load %arg6[%c0_27, %c0_28] : memref<128x512xbf16, #tpu.memory_space<vmem>>, vector<128x512xbf16>
    %cst_29 = arith.constant dense<0.000000e+00> : vector<8x512xf32>
    %32 = tpu.matmul %30, %31, %cst_29 {dimension_numbers = #tpu.dot_dimension_numbers<[1], [0], [0], [1], [0, 0, 1, 1], [], []>} : vector<8x128xbf16>, vector<128x512xbf16>, vector<8x512xf32> -> vector<8x512xf32>
    %33 = arith.addf %29, %32 : vector<8x512xf32>
    %34 = vector.extract_strided_slice %33 {offsets = [0, 0], sizes = [8, 128], strides = [1, 1]} : vector<8x512xf32> to vector<8x128xf32>
    %35 = arith.negf %34 : vector<8x128xf32>
    %36 = math.exp %35 : vector<8x128xf32>
    %cst_30 = arith.constant 1.000000e+00 : f32
    %37 = vector.broadcast %cst_30 : f32 to vector<8x128xf32>
    %38 = arith.addf %37, %36 : vector<8x128xf32>
    %39 = arith.divf %37, %38 : vector<8x128xf32>
    %40 = vector.extract_strided_slice %33 {offsets = [0, 128], sizes = [8, 128], strides = [1, 1]} : vector<8x512xf32> to vector<8x128xf32>
    %41 = arith.negf %40 : vector<8x128xf32>
    %42 = math.exp %41 : vector<8x128xf32>
    %cst_31 = arith.constant 1.000000e+00 : f32
    %43 = vector.broadcast %cst_31 : f32 to vector<8x128xf32>
    %44 = arith.addf %43, %42 : vector<8x128xf32>
    %45 = arith.divf %43, %44 : vector<8x128xf32>
    %46 = vector.extract_strided_slice %33 {offsets = [0, 256], sizes = [8, 128], strides = [1, 1]} : vector<8x512xf32> to vector<8x128xf32>
    %47 = math.tanh %46 : vector<8x128xf32>
    %48 = vector.extract_strided_slice %33 {offsets = [0, 384], sizes = [8, 128], strides = [1, 1]} : vector<8x512xf32> to vector<8x128xf32>
    %49 = arith.negf %48 : vector<8x128xf32>
    %50 = math.exp %49 : vector<8x128xf32>
    %cst_32 = arith.constant 1.000000e+00 : f32
    %51 = vector.broadcast %cst_32 : f32 to vector<8x128xf32>
    %52 = arith.addf %51, %50 : vector<8x128xf32>
    %53 = arith.divf %51, %52 : vector<8x128xf32>
    %54 = arith.mulf %45, %19 : vector<8x128xf32>
    %55 = arith.mulf %39, %47 : vector<8x128xf32>
    %56 = arith.addf %54, %55 : vector<8x128xf32>
    %57 = math.tanh %56 : vector<8x128xf32>
    %58 = arith.mulf %53, %57 : vector<8x128xf32>
    %59 = arith.select %28, %56, %19 : vector<8x128xi1>, vector<8x128xf32>
    %60 = arith.select %28, %58, %17 : vector<8x128xi1>, vector<8x128xf32>
    %61 = arith.truncf %58 : vector<8x128xf32> to vector<8x128xbf16>
    %c0_33 = arith.constant 0 : index
    %c0_34 = arith.constant 0 : index
    %62 = vector.load %arg7[%c0_33, %c0_34] : memref<128x512xbf16, #tpu.memory_space<vmem>>, vector<128x512xbf16>
    %cst_35 = arith.constant dense<0.000000e+00> : vector<8x512xf32>
    %63 = tpu.matmul %61, %62, %cst_35 {dimension_numbers = #tpu.dot_dimension_numbers<[1], [0], [0], [1], [0, 0, 1, 1], [], []>} : vector<8x128xbf16>, vector<128x512xbf16>, vector<8x512xf32> -> vector<8x512xf32>
    %64 = arith.truncf %21 : vector<8x128xf32> to vector<8x128xbf16>
    %c0_36 = arith.constant 0 : index
    %c0_37 = arith.constant 0 : index
    %65 = vector.load %arg8[%c0_36, %c0_37] : memref<128x512xbf16, #tpu.memory_space<vmem>>, vector<128x512xbf16>
    %cst_38 = arith.constant dense<0.000000e+00> : vector<8x512xf32>
    %66 = tpu.matmul %64, %65, %cst_38 {dimension_numbers = #tpu.dot_dimension_numbers<[1], [0], [0], [1], [0, 0, 1, 1], [], []>} : vector<8x128xbf16>, vector<128x512xbf16>, vector<8x512xf32> -> vector<8x512xf32>
    %67 = arith.addf %63, %66 : vector<8x512xf32>
    %68 = arith.addf %67, %14 : vector<8x512xf32>
    %69 = vector.extract_strided_slice %68 {offsets = [0, 0], sizes = [8, 128], strides = [1, 1]} : vector<8x512xf32> to vector<8x128xf32>
    %70 = arith.negf %69 : vector<8x128xf32>
    %71 = math.exp %70 : vector<8x128xf32>
    %cst_39 = arith.constant 1.000000e+00 : f32
    %72 = vector.broadcast %cst_39 : f32 to vector<8x128xf32>
    %73 = arith.addf %72, %71 : vector<8x128xf32>
    %74 = arith.divf %72, %73 : vector<8x128xf32>
    %75 = vector.extract_strided_slice %68 {offsets = [0, 128], sizes = [8, 128], strides = [1, 1]} : vector<8x512xf32> to vector<8x128xf32>
    %76 = arith.negf %75 : vector<8x128xf32>
    %77 = math.exp %76 : vector<8x128xf32>
    %cst_40 = arith.constant 1.000000e+00 : f32
    %78 = vector.broadcast %cst_40 : f32 to vector<8x128xf32>
    %79 = arith.addf %78, %77 : vector<8x128xf32>
    %80 = arith.divf %78, %79 : vector<8x128xf32>
    %81 = vector.extract_strided_slice %68 {offsets = [0, 256], sizes = [8, 128], strides = [1, 1]} : vector<8x512xf32> to vector<8x128xf32>
    %82 = math.tanh %81 : vector<8x128xf32>
    %83 = vector.extract_strided_slice %68 {offsets = [0, 384], sizes = [8, 128], strides = [1, 1]} : vector<8x512xf32> to vector<8x128xf32>
    %84 = arith.negf %83 : vector<8x128xf32>
    %85 = math.exp %84 : vector<8x128xf32>
    %cst_41 = arith.constant 1.000000e+00 : f32
    %86 = vector.broadcast %cst_41 : f32 to vector<8x128xf32>
    %87 = arith.addf %86, %85 : vector<8x128xf32>
    %88 = arith.divf %86, %87 : vector<8x128xf32>
    %89 = arith.mulf %80, %23 : vector<8x128xf32>
    %90 = arith.mulf %74, %82 : vector<8x128xf32>
    %91 = arith.addf %89, %90 : vector<8x128xf32>
    %92 = math.tanh %91 : vector<8x128xf32>
    %93 = arith.mulf %88, %92 : vector<8x128xf32>
    %94 = arith.select %28, %91, %23 : vector<8x128xi1>, vector<8x128xf32>
    %95 = arith.select %28, %93, %21 : vector<8x128xi1>, vector<8x128xf32>
    %cst_42 = arith.constant 0.000000e+00 : f32
    %96 = vector.broadcast %cst_42 : f32 to vector<8x128xf32>
    %97 = arith.select %28, %93, %96 : vector<8x128xi1>, vector<8x128xf32>
    %98 = arith.truncf %97 : vector<8x128xf32> to vector<8x128xbf16>
    %c0_43 = arith.constant 0 : index
    %c0_44 = arith.constant 0 : index
    %c0_45 = arith.constant 0 : index
    %99 = vector.load %arg11[%c0_43, %c0_44, %c0_45] : memref<4x8x128xbf16, #tpu.memory_space<vmem>>, vector<1x8x128xbf16>
    %100 = vector.shape_cast %99 : vector<1x8x128xbf16> to vector<8x128xbf16>
    %101 = vector.shape_cast %98 : vector<8x128xbf16> to vector<1x8x128xbf16>
    tpu.vector_store %arg11[%c0_43, %c0_44, %c0_45], %101 {strides = array<i32>} : memref<4x8x128xbf16, #tpu.memory_space<vmem>>, vector<1x8x128xbf16>,
    %c1_i32 = arith.constant 1 : i32
    %102 = arith.addi %15, %c1_i32 : i32
    %103 = vector.broadcast %102 : i32 to vector<8x1xi32>
    %104 = arith.cmpi sgt, %11, %103 : vector<8x1xi32>
    %105 = vector.shape_cast %104 : vector<8x1xi1> to vector<8x1xi1>
    %106 = vector.broadcast %105 : vector<8x1xi1> to vector<8x128xi1>
    %c8 = arith.constant 8 : index
    %c0_46 = arith.constant 0 : index
    %107 = vector.load %arg16[%c8, %c0_46] : memref<32x512xf32, #tpu.memory_space<vmem>>, vector<8x512xf32>
    %108 = arith.truncf %60 : vector<8x128xf32> to vector<8x128xbf16>
    %c0_47 = arith.constant 0 : index
    %c0_48 = arith.constant 0 : index
    %109 = vector.load %arg6[%c0_47, %c0_48] : memref<128x512xbf16, #tpu.memory_space<vmem>>, vector<128x512xbf16>
    %cst_49 = arith.constant dense<0.000000e+00> : vector<8x512xf32>
    %110 = tpu.matmul %108, %109, %cst_49 {dimension_numbers = #tpu.dot_dimension_numbers<[1], [0], [0], [1], [0, 0, 1, 1], [], []>} : vector<8x128xbf16>, vector<128x512xbf16>, vector<8x512xf32> -> vector<8x512xf32>
    %111 = arith.addf %107, %110 : vector<8x512xf32>
    %112 = vector.extract_strided_slice %111 {offsets = [0, 0], sizes = [8, 128], strides = [1, 1]} : vector<8x512xf32> to vector<8x128xf32>
    %113 = arith.negf %112 : vector<8x128xf32>
    %114 = math.exp %113 : vector<8x128xf32>
    %cst_50 = arith.constant 1.000000e+00 : f32
    %115 = vector.broadcast %cst_50 : f32 to vector<8x128xf32>
    %116 = arith.addf %115, %114 : vector<8x128xf32>
    %117 = arith.divf %115, %116 : vector<8x128xf32>
    %118 = vector.extract_strided_slice %111 {offsets = [0, 128], sizes = [8, 128], strides = [1, 1]} : vector<8x512xf32> to vector<8x128xf32>
    %119 = arith.negf %118 : vector<8x128xf32>
    %120 = math.exp %119 : vector<8x128xf32>
    %cst_51 = arith.constant 1.000000e+00 : f32
    %121 = vector.broadcast %cst_51 : f32 to vector<8x128xf32>
    %122 = arith.addf %121, %120 : vector<8x128xf32>
    %123 = arith.divf %121, %122 : vector<8x128xf32>
    %124 = vector.extract_strided_slice %111 {offsets = [0, 256], sizes = [8, 128], strides = [1, 1]} : vector<8x512xf32> to vector<8x128xf32>
    %125 = math.tanh %124 : vector<8x128xf32>
    %126 = vector.extract_strided_slice %111 {offsets = [0, 384], sizes = [8, 128], strides = [1, 1]} : vector<8x512xf32> to vector<8x128xf32>
    %127 = arith.negf %126 : vector<8x128xf32>
    %128 = math.exp %127 : vector<8x128xf32>
    %cst_52 = arith.constant 1.000000e+00 : f32
    %129 = vector.broadcast %cst_52 : f32 to vector<8x128xf32>
    %130 = arith.addf %129, %128 : vector<8x128xf32>
    %131 = arith.divf %129, %130 : vector<8x128xf32>
    %132 = arith.mulf %123, %59 : vector<8x128xf32>
    %133 = arith.mulf %117, %125 : vector<8x128xf32>
    %134 = arith.addf %132, %133 : vector<8x128xf32>
    %135 = math.tanh %134 : vector<8x128xf32>
    %136 = arith.mulf %131, %135 : vector<8x128xf32>
    %137 = arith.select %106, %134, %59 : vector<8x128xi1>, vector<8x128xf32>
    %138 = arith.select %106, %136, %60 : vector<8x128xi1>, vector<8x128xf32>
    %139 = arith.truncf %136 : vector<8x128xf32> to vector<8x128xbf16>
    %c0_53 = arith.constant 0 : index
    %c0_54 = arith.constant 0 : index
    %140 = vector.load %arg7[%c0_53, %c0_54] : memref<128x512xbf16, #tpu.memory_space<vmem>>, vector<128x512xbf16>
    %cst_55 = arith.constant dense<0.000000e+00> : vector<8x512xf32>
    %141 = tpu.matmul %139, %140, %cst_55 {dimension_numbers = #tpu.dot_dimension_numbers<[1], [0], [0], [1], [0, 0, 1, 1], [], []>} : vector<8x128xbf16>, vector<128x512xbf16>, vector<8x512xf32> -> vector<8x512xf32>
    %142 = arith.truncf %95 : vector<8x128xf32> to vector<8x128xbf16>
    %c0_56 = arith.constant 0 : index
    %c0_57 = arith.constant 0 : index
    %143 = vector.load %arg8[%c0_56, %c0_57] : memref<128x512xbf16, #tpu.memory_space<vmem>>, vector<128x512xbf16>
    %cst_58 = arith.constant dense<0.000000e+00> : vector<8x512xf32>
    %144 = tpu.matmul %142, %143, %cst_58 {dimension_numbers = #tpu.dot_dimension_numbers<[1], [0], [0], [1], [0, 0, 1, 1], [], []>} : vector<8x128xbf16>, vector<128x512xbf16>, vector<8x512xf32> -> vector<8x512xf32>
    %145 = arith.addf %141, %144 : vector<8x512xf32>
    %146 = arith.addf %145, %14 : vector<8x512xf32>
    %147 = vector.extract_strided_slice %146 {offsets = [0, 0], sizes = [8, 128], strides = [1, 1]} : vector<8x512xf32> to vector<8x128xf32>
    %148 = arith.negf %147 : vector<8x128xf32>
    %149 = math.exp %148 : vector<8x128xf32>
    %cst_59 = arith.constant 1.000000e+00 : f32
    %150 = vector.broadcast %cst_59 : f32 to vector<8x128xf32>
    %151 = arith.addf %150, %149 : vector<8x128xf32>
    %152 = arith.divf %150, %151 : vector<8x128xf32>
    %153 = vector.extract_strided_slice %146 {offsets = [0, 128], sizes = [8, 128], strides = [1, 1]} : vector<8x512xf32> to vector<8x128xf32>
    %154 = arith.negf %153 : vector<8x128xf32>
    %155 = math.exp %154 : vector<8x128xf32>
    %cst_60 = arith.constant 1.000000e+00 : f32
    %156 = vector.broadcast %cst_60 : f32 to vector<8x128xf32>
    %157 = arith.addf %156, %155 : vector<8x128xf32>
    %158 = arith.divf %156, %157 : vector<8x128xf32>
    %159 = vector.extract_strided_slice %146 {offsets = [0, 256], sizes = [8, 128], strides = [1, 1]} : vector<8x512xf32> to vector<8x128xf32>
    %160 = math.tanh %159 : vector<8x128xf32>
    %161 = vector.extract_strided_slice %146 {offsets = [0, 384], sizes = [8, 128], strides = [1, 1]} : vector<8x512xf32> to vector<8x128xf32>
    %162 = arith.negf %161 : vector<8x128xf32>
    %163 = math.exp %162 : vector<8x128xf32>
    %cst_61 = arith.constant 1.000000e+00 : f32
    %164 = vector.broadcast %cst_61 : f32 to vector<8x128xf32>
    %165 = arith.addf %164, %163 : vector<8x128xf32>
    %166 = arith.divf %164, %165 : vector<8x128xf32>
    %167 = arith.mulf %158, %94 : vector<8x128xf32>
    %168 = arith.mulf %152, %160 : vector<8x128xf32>
    %169 = arith.addf %167, %168 : vector<8x128xf32>
    %170 = math.tanh %169 : vector<8x128xf32>
    %171 = arith.mulf %166, %170 : vector<8x128xf32>
    %172 = arith.select %106, %169, %94 : vector<8x128xi1>, vector<8x128xf32>
    %173 = arith.select %106, %171, %95 : vector<8x128xi1>, vector<8x128xf32>
    %cst_62 = arith.constant 0.000000e+00 : f32
    %174 = vector.broadcast %cst_62 : f32 to vector<8x128xf32>
    %175 = arith.select %106, %171, %174 : vector<8x128xi1>, vector<8x128xf32>
    %176 = arith.truncf %175 : vector<8x128xf32> to vector<8x128xbf16>
    %c1_63 = arith.constant 1 : index
    %c0_64 = arith.constant 0 : index
    %c0_65 = arith.constant 0 : index
    %177 = vector.load %arg11[%c1_63, %c0_64, %c0_65] : memref<4x8x128xbf16, #tpu.memory_space<vmem>>, vector<1x8x128xbf16>
    %178 = vector.shape_cast %177 : vector<1x8x128xbf16> to vector<8x128xbf16>
    %179 = vector.shape_cast %176 : vector<8x128xbf16> to vector<1x8x128xbf16>
    tpu.vector_store %arg11[%c1_63, %c0_64, %c0_65], %179 {strides = array<i32>} : memref<4x8x128xbf16, #tpu.memory_space<vmem>>, vector<1x8x128xbf16>,
    %c2_i32 = arith.constant 2 : i32
    %180 = arith.addi %15, %c2_i32 : i32
    %181 = vector.broadcast %180 : i32 to vector<8x1xi32>
    %182 = arith.cmpi sgt, %11, %181 : vector<8x1xi32>
    %183 = vector.shape_cast %182 : vector<8x1xi1> to vector<8x1xi1>
    %184 = vector.broadcast %183 : vector<8x1xi1> to vector<8x128xi1>
    %c16 = arith.constant 16 : index
    %c0_66 = arith.constant 0 : index
    %185 = vector.load %arg16[%c16, %c0_66] : memref<32x512xf32, #tpu.memory_space<vmem>>, vector<8x512xf32>
    %186 = arith.truncf %138 : vector<8x128xf32> to vector<8x128xbf16>
    %c0_67 = arith.constant 0 : index
    %c0_68 = arith.constant 0 : index
    %187 = vector.load %arg6[%c0_67, %c0_68] : memref<128x512xbf16, #tpu.memory_space<vmem>>, vector<128x512xbf16>
    %cst_69 = arith.constant dense<0.000000e+00> : vector<8x512xf32>
    %188 = tpu.matmul %186, %187, %cst_69 {dimension_numbers = #tpu.dot_dimension_numbers<[1], [0], [0], [1], [0, 0, 1, 1], [], []>} : vector<8x128xbf16>, vector<128x512xbf16>, vector<8x512xf32> -> vector<8x512xf32>
    %189 = arith.addf %185, %188 : vector<8x512xf32>
    %190 = vector.extract_strided_slice %189 {offsets = [0, 0], sizes = [8, 128], strides = [1, 1]} : vector<8x512xf32> to vector<8x128xf32>
    %191 = arith.negf %190 : vector<8x128xf32>
    %192 = math.exp %191 : vector<8x128xf32>
    %cst_70 = arith.constant 1.000000e+00 : f32
    %193 = vector.broadcast %cst_70 : f32 to vector<8x128xf32>
    %194 = arith.addf %193, %192 : vector<8x128xf32>
    %195 = arith.divf %193, %194 : vector<8x128xf32>
    %196 = vector.extract_strided_slice %189 {offsets = [0, 128], sizes = [8, 128], strides = [1, 1]} : vector<8x512xf32> to vector<8x128xf32>
    %197 = arith.negf %196 : vector<8x128xf32>
    %198 = math.exp %197 : vector<8x128xf32>
    %cst_71 = arith.constant 1.000000e+00 : f32
    %199 = vector.broadcast %cst_71 : f32 to vector<8x128xf32>
    %200 = arith.addf %199, %198 : vector<8x128xf32>
    %201 = arith.divf %199, %200 : vector<8x128xf32>
    %202 = vector.extract_strided_slice %189 {offsets = [0, 256], sizes = [8, 128], strides = [1, 1]} : vector<8x512xf32> to vector<8x128xf32>
    %203 = math.tanh %202 : vector<8x128xf32>
    %204 = vector.extract_strided_slice %189 {offsets = [0, 384], sizes = [8, 128], strides = [1, 1]} : vector<8x512xf32> to vector<8x128xf32>
    %205 = arith.negf %204 : vector<8x128xf32>
    %206 = math.exp %205 : vector<8x128xf32>
    %cst_72 = arith.constant 1.000000e+00 : f32
    %207 = vector.broadcast %cst_72 : f32 to vector<8x128xf32>
    %208 = arith.addf %207, %206 : vector<8x128xf32>
    %209 = arith.divf %207, %208 : vector<8x128xf32>
    %210 = arith.mulf %201, %137 : vector<8x128xf32>
    %211 = arith.mulf %195, %203 : vector<8x128xf32>
    %212 = arith.addf %210, %211 : vector<8x128xf32>
    %213 = math.tanh %212 : vector<8x128xf32>
    %214 = arith.mulf %209, %213 : vector<8x128xf32>
    %215 = arith.select %184, %212, %137 : vector<8x128xi1>, vector<8x128xf32>
    %216 = arith.select %184, %214, %138 : vector<8x128xi1>, vector<8x128xf32>
    %217 = arith.truncf %214 : vector<8x128xf32> to vector<8x128xbf16>
    %c0_73 = arith.constant 0 : index
    %c0_74 = arith.constant 0 : index
    %218 = vector.load %arg7[%c0_73, %c0_74] : memref<128x512xbf16, #tpu.memory_space<vmem>>, vector<128x512xbf16>
    %cst_75 = arith.constant dense<0.000000e+00> : vector<8x512xf32>
    %219 = tpu.matmul %217, %218, %cst_75 {dimension_numbers = #tpu.dot_dimension_numbers<[1], [0], [0], [1], [0, 0, 1, 1], [], []>} : vector<8x128xbf16>, vector<128x512xbf16>, vector<8x512xf32> -> vector<8x512xf32>
    %220 = arith.truncf %173 : vector<8x128xf32> to vector<8x128xbf16>
    %c0_76 = arith.constant 0 : index
    %c0_77 = arith.constant 0 : index
    %221 = vector.load %arg8[%c0_76, %c0_77] : memref<128x512xbf16, #tpu.memory_space<vmem>>, vector<128x512xbf16>
    %cst_78 = arith.constant dense<0.000000e+00> : vector<8x512xf32>
    %222 = tpu.matmul %220, %221, %cst_78 {dimension_numbers = #tpu.dot_dimension_numbers<[1], [0], [0], [1], [0, 0, 1, 1], [], []>} : vector<8x128xbf16>, vector<128x512xbf16>, vector<8x512xf32> -> vector<8x512xf32>
    %223 = arith.addf %219, %222 : vector<8x512xf32>
    %224 = arith.addf %223, %14 : vector<8x512xf32>
    %225 = vector.extract_strided_slice %224 {offsets = [0, 0], sizes = [8, 128], strides = [1, 1]} : vector<8x512xf32> to vector<8x128xf32>
    %226 = arith.negf %225 : vector<8x128xf32>
    %227 = math.exp %226 : vector<8x128xf32>
    %cst_79 = arith.constant 1.000000e+00 : f32
    %228 = vector.broadcast %cst_79 : f32 to vector<8x128xf32>
    %229 = arith.addf %228, %227 : vector<8x128xf32>
    %230 = arith.divf %228, %229 : vector<8x128xf32>
    %231 = vector.extract_strided_slice %224 {offsets = [0, 128], sizes = [8, 128], strides = [1, 1]} : vector<8x512xf32> to vector<8x128xf32>
    %232 = arith.negf %231 : vector<8x128xf32>
    %233 = math.exp %232 : vector<8x128xf32>
    %cst_80 = arith.constant 1.000000e+00 : f32
    %234 = vector.broadcast %cst_80 : f32 to vector<8x128xf32>
    %235 = arith.addf %234, %233 : vector<8x128xf32>
    %236 = arith.divf %234, %235 : vector<8x128xf32>
    %237 = vector.extract_strided_slice %224 {offsets = [0, 256], sizes = [8, 128], strides = [1, 1]} : vector<8x512xf32> to vector<8x128xf32>
    %238 = math.tanh %237 : vector<8x128xf32>
    %239 = vector.extract_strided_slice %224 {offsets = [0, 384], sizes = [8, 128], strides = [1, 1]} : vector<8x512xf32> to vector<8x128xf32>
    %240 = arith.negf %239 : vector<8x128xf32>
    %241 = math.exp %240 : vector<8x128xf32>
    %cst_81 = arith.constant 1.000000e+00 : f32
    %242 = vector.broadcast %cst_81 : f32 to vector<8x128xf32>
    %243 = arith.addf %242, %241 : vector<8x128xf32>
    %244 = arith.divf %242, %243 : vector<8x128xf32>
    %245 = arith.mulf %236, %172 : vector<8x128xf32>
    %246 = arith.mulf %230, %238 : vector<8x128xf32>
    %247 = arith.addf %245, %246 : vector<8x128xf32>
    %248 = math.tanh %247 : vector<8x128xf32>
    %249 = arith.mulf %244, %248 : vector<8x128xf32>
    %250 = arith.select %184, %247, %172 : vector<8x128xi1>, vector<8x128xf32>
    %251 = arith.select %184, %249, %173 : vector<8x128xi1>, vector<8x128xf32>
    %cst_82 = arith.constant 0.000000e+00 : f32
    %252 = vector.broadcast %cst_82 : f32 to vector<8x128xf32>
    %253 = arith.select %184, %249, %252 : vector<8x128xi1>, vector<8x128xf32>
    %254 = arith.truncf %253 : vector<8x128xf32> to vector<8x128xbf16>
    %c2 = arith.constant 2 : index
    %c0_83 = arith.constant 0 : index
    %c0_84 = arith.constant 0 : index
    %255 = vector.load %arg11[%c2, %c0_83, %c0_84] : memref<4x8x128xbf16, #tpu.memory_space<vmem>>, vector<1x8x128xbf16>
    %256 = vector.shape_cast %255 : vector<1x8x128xbf16> to vector<8x128xbf16>
    %257 = vector.shape_cast %254 : vector<8x128xbf16> to vector<1x8x128xbf16>
    tpu.vector_store %arg11[%c2, %c0_83, %c0_84], %257 {strides = array<i32>} : memref<4x8x128xbf16, #tpu.memory_space<vmem>>, vector<1x8x128xbf16>,
    %c3_i32 = arith.constant 3 : i32
    %258 = arith.addi %15, %c3_i32 : i32
    %259 = vector.broadcast %258 : i32 to vector<8x1xi32>
    %260 = arith.cmpi sgt, %11, %259 : vector<8x1xi32>
    %261 = vector.shape_cast %260 : vector<8x1xi1> to vector<8x1xi1>
    %262 = vector.broadcast %261 : vector<8x1xi1> to vector<8x128xi1>
    %c24 = arith.constant 24 : index
    %c0_85 = arith.constant 0 : index
    %263 = vector.load %arg16[%c24, %c0_85] : memref<32x512xf32, #tpu.memory_space<vmem>>, vector<8x512xf32>
    %264 = arith.truncf %216 : vector<8x128xf32> to vector<8x128xbf16>
    %c0_86 = arith.constant 0 : index
    %c0_87 = arith.constant 0 : index
    %265 = vector.load %arg6[%c0_86, %c0_87] : memref<128x512xbf16, #tpu.memory_space<vmem>>, vector<128x512xbf16>
    %cst_88 = arith.constant dense<0.000000e+00> : vector<8x512xf32>
    %266 = tpu.matmul %264, %265, %cst_88 {dimension_numbers = #tpu.dot_dimension_numbers<[1], [0], [0], [1], [0, 0, 1, 1], [], []>} : vector<8x128xbf16>, vector<128x512xbf16>, vector<8x512xf32> -> vector<8x512xf32>
    %267 = arith.addf %263, %266 : vector<8x512xf32>
    %268 = vector.extract_strided_slice %267 {offsets = [0, 0], sizes = [8, 128], strides = [1, 1]} : vector<8x512xf32> to vector<8x128xf32>
    %269 = arith.negf %268 : vector<8x128xf32>
    %270 = math.exp %269 : vector<8x128xf32>
    %cst_89 = arith.constant 1.000000e+00 : f32
    %271 = vector.broadcast %cst_89 : f32 to vector<8x128xf32>
    %272 = arith.addf %271, %270 : vector<8x128xf32>
    %273 = arith.divf %271, %272 : vector<8x128xf32>
    %274 = vector.extract_strided_slice %267 {offsets = [0, 128], sizes = [8, 128], strides = [1, 1]} : vector<8x512xf32> to vector<8x128xf32>
    %275 = arith.negf %274 : vector<8x128xf32>
    %276 = math.exp %275 : vector<8x128xf32>
    %cst_90 = arith.constant 1.000000e+00 : f32
    %277 = vector.broadcast %cst_90 : f32 to vector<8x128xf32>
    %278 = arith.addf %277, %276 : vector<8x128xf32>
    %279 = arith.divf %277, %278 : vector<8x128xf32>
    %280 = vector.extract_strided_slice %267 {offsets = [0, 256], sizes = [8, 128], strides = [1, 1]} : vector<8x512xf32> to vector<8x128xf32>
    %281 = math.tanh %280 : vector<8x128xf32>
    %282 = vector.extract_strided_slice %267 {offsets = [0, 384], sizes = [8, 128], strides = [1, 1]} : vector<8x512xf32> to vector<8x128xf32>
    %283 = arith.negf %282 : vector<8x128xf32>
    %284 = math.exp %283 : vector<8x128xf32>
    %cst_91 = arith.constant 1.000000e+00 : f32
    %285 = vector.broadcast %cst_91 : f32 to vector<8x128xf32>
    %286 = arith.addf %285, %284 : vector<8x128xf32>
    %287 = arith.divf %285, %286 : vector<8x128xf32>
    %288 = arith.mulf %279, %215 : vector<8x128xf32>
    %289 = arith.mulf %273, %281 : vector<8x128xf32>
    %290 = arith.addf %288, %289 : vector<8x128xf32>
    %291 = math.tanh %290 : vector<8x128xf32>
    %292 = arith.mulf %287, %291 : vector<8x128xf32>
    %293 = arith.select %262, %290, %215 : vector<8x128xi1>, vector<8x128xf32>
    %294 = arith.select %262, %292, %216 : vector<8x128xi1>, vector<8x128xf32>
    %295 = arith.truncf %292 : vector<8x128xf32> to vector<8x128xbf16>
    %c0_92 = arith.constant 0 : index
    %c0_93 = arith.constant 0 : index
    %296 = vector.load %arg7[%c0_92, %c0_93] : memref<128x512xbf16, #tpu.memory_space<vmem>>, vector<128x512xbf16>
    %cst_94 = arith.constant dense<0.000000e+00> : vector<8x512xf32>
    %297 = tpu.matmul %295, %296, %cst_94 {dimension_numbers = #tpu.dot_dimension_numbers<[1], [0], [0], [1], [0, 0, 1, 1], [], []>} : vector<8x128xbf16>, vector<128x512xbf16>, vector<8x512xf32> -> vector<8x512xf32>
    %298 = arith.truncf %251 : vector<8x128xf32> to vector<8x128xbf16>
    %c0_95 = arith.constant 0 : index
    %c0_96 = arith.constant 0 : index
    %299 = vector.load %arg8[%c0_95, %c0_96] : memref<128x512xbf16, #tpu.memory_space<vmem>>, vector<128x512xbf16>
    %cst_97 = arith.constant dense<0.000000e+00> : vector<8x512xf32>
    %300 = tpu.matmul %298, %299, %cst_97 {dimension_numbers = #tpu.dot_dimension_numbers<[1], [0], [0], [1], [0, 0, 1, 1], [], []>} : vector<8x128xbf16>, vector<128x512xbf16>, vector<8x512xf32> -> vector<8x512xf32>
    %301 = arith.addf %297, %300 : vector<8x512xf32>
    %302 = arith.addf %301, %14 : vector<8x512xf32>
    %303 = vector.extract_strided_slice %302 {offsets = [0, 0], sizes = [8, 128], strides = [1, 1]} : vector<8x512xf32> to vector<8x128xf32>
    %304 = arith.negf %303 : vector<8x128xf32>
    %305 = math.exp %304 : vector<8x128xf32>
    %cst_98 = arith.constant 1.000000e+00 : f32
    %306 = vector.broadcast %cst_98 : f32 to vector<8x128xf32>
    %307 = arith.addf %306, %305 : vector<8x128xf32>
    %308 = arith.divf %306, %307 : vector<8x128xf32>
    %309 = vector.extract_strided_slice %302 {offsets = [0, 128], sizes = [8, 128], strides = [1, 1]} : vector<8x512xf32> to vector<8x128xf32>
    %310 = arith.negf %309 : vector<8x128xf32>
    %311 = math.exp %310 : vector<8x128xf32>
    %cst_99 = arith.constant 1.000000e+00 : f32
    %312 = vector.broadcast %cst_99 : f32 to vector<8x128xf32>
    %313 = arith.addf %312, %311 : vector<8x128xf32>
    %314 = arith.divf %312, %313 : vector<8x128xf32>
    %315 = vector.extract_strided_slice %302 {offsets = [0, 256], sizes = [8, 128], strides = [1, 1]} : vector<8x512xf32> to vector<8x128xf32>
    %316 = math.tanh %315 : vector<8x128xf32>
    %317 = vector.extract_strided_slice %302 {offsets = [0, 384], sizes = [8, 128], strides = [1, 1]} : vector<8x512xf32> to vector<8x128xf32>
    %318 = arith.negf %317 : vector<8x128xf32>
    %319 = math.exp %318 : vector<8x128xf32>
    %cst_100 = arith.constant 1.000000e+00 : f32
    %320 = vector.broadcast %cst_100 : f32 to vector<8x128xf32>
    %321 = arith.addf %320, %319 : vector<8x128xf32>
    %322 = arith.divf %320, %321 : vector<8x128xf32>
    %323 = arith.mulf %314, %250 : vector<8x128xf32>
    %324 = arith.mulf %308, %316 : vector<8x128xf32>
    %325 = arith.addf %323, %324 : vector<8x128xf32>
    %326 = math.tanh %325 : vector<8x128xf32>
    %327 = arith.mulf %322, %326 : vector<8x128xf32>
    %328 = arith.select %262, %325, %250 : vector<8x128xi1>, vector<8x128xf32>
    %329 = arith.select %262, %327, %251 : vector<8x128xi1>, vector<8x128xf32>
    %cst_101 = arith.constant 0.000000e+00 : f32
    %330 = vector.broadcast %cst_101 : f32 to vector<8x128xf32>
    %331 = arith.select %262, %327, %330 : vector<8x128xi1>, vector<8x128xf32>
    %332 = arith.truncf %331 : vector<8x128xf32> to vector<8x128xbf16>
    %c3 = arith.constant 3 : index
    %c0_102 = arith.constant 0 : index
    %c0_103 = arith.constant 0 : index
    %333 = vector.load %arg11[%c3, %c0_102, %c0_103] : memref<4x8x128xbf16, #tpu.memory_space<vmem>>, vector<1x8x128xbf16>
    %334 = vector.shape_cast %333 : vector<1x8x128xbf16> to vector<8x128xbf16>
    %335 = vector.shape_cast %332 : vector<8x128xbf16> to vector<1x8x128xbf16>
    tpu.vector_store %arg11[%c3, %c0_102, %c0_103], %335 {strides = array<i32>} : memref<4x8x128xbf16, #tpu.memory_space<vmem>>, vector<1x8x128xbf16>,
    %c0_104 = arith.constant 0 : index
    %c0_105 = arith.constant 0 : index
    %c0_106 = arith.constant 0 : index
    %336 = vector.load %arg14[%c0_104, %c0_105, %c0_106] : memref<2x8x128xf32, #tpu.memory_space<vmem>>, vector<1x8x128xf32>
    %337 = vector.shape_cast %336 : vector<1x8x128xf32> to vector<8x128xf32>
    %338 = vector.shape_cast %294 : vector<8x128xf32> to vector<1x8x128xf32>
    tpu.vector_store %arg14[%c0_104, %c0_105, %c0_106], %338 {strides = array<i32>} : memref<2x8x128xf32, #tpu.memory_space<vmem>>, vector<1x8x128xf32>,
    %c0_107 = arith.constant 0 : index
    %c0_108 = arith.constant 0 : index
    %c0_109 = arith.constant 0 : index
    %339 = vector.load %arg15[%c0_107, %c0_108, %c0_109] : memref<2x8x128xf32, #tpu.memory_space<vmem>>, vector<1x8x128xf32>
    %340 = vector.shape_cast %339 : vector<1x8x128xf32> to vector<8x128xf32>
    %341 = vector.shape_cast %293 : vector<8x128xf32> to vector<1x8x128xf32>
    tpu.vector_store %arg15[%c0_107, %c0_108, %c0_109], %341 {strides = array<i32>} : memref<2x8x128xf32, #tpu.memory_space<vmem>>, vector<1x8x128xf32>,
    %c1_110 = arith.constant 1 : index
    %c0_111 = arith.constant 0 : index
    %c0_112 = arith.constant 0 : index
    %342 = vector.load %arg14[%c1_110, %c0_111, %c0_112] : memref<2x8x128xf32, #tpu.memory_space<vmem>>, vector<1x8x128xf32>
    %343 = vector.shape_cast %342 : vector<1x8x128xf32> to vector<8x128xf32>
    %344 = vector.shape_cast %329 : vector<8x128xf32> to vector<1x8x128xf32>
    tpu.vector_store %arg14[%c1_110, %c0_111, %c0_112], %344 {strides = array<i32>} : memref<2x8x128xf32, #tpu.memory_space<vmem>>, vector<1x8x128xf32>,
    %c1_113 = arith.constant 1 : index
    %c0_114 = arith.constant 0 : index
    %c0_115 = arith.constant 0 : index
    %345 = vector.load %arg15[%c1_113, %c0_114, %c0_115] : memref<2x8x128xf32, #tpu.memory_space<vmem>>, vector<1x8x128xf32>
    %346 = vector.shape_cast %345 : vector<1x8x128xf32> to vector<8x128xf32>
    %347 = vector.shape_cast %328 : vector<8x128xf32> to vector<1x8x128xf32>
    tpu.vector_store %arg15[%c1_113, %c0_114, %c0_115], %347 {strides = array<i32>} : memref<2x8x128xf32, #tpu.memory_space<vmem>>, vector<1x8x128xf32>,
    %c1_i32_116 = arith.constant 1 : i32
    %348 = arith.cmpi eq, %arg0, %c1_i32_116 : i32
    %349 = arith.extui %348 : i1 to i32
    %c0_i32_117 = arith.constant 0 : i32
    %350 = arith.cmpi ne, %349, %c0_i32_117 : i32
    scf.if %350 {
      %c0_118 = arith.constant 0 : index
      %c0_119 = arith.constant 0 : index
      %c0_120 = arith.constant 0 : index
      %351 = vector.load %arg14[%c0_118, %c0_119, %c0_120] : memref<2x8x128xf32, #tpu.memory_space<vmem>>, vector<2x8x128xf32>
      %c0_121 = arith.constant 0 : index
      %c0_122 = arith.constant 0 : index
      %c0_123 = arith.constant 0 : index
      %352 = vector.load %arg12[%c0_121, %c0_122, %c0_123] : memref<2x8x128xf32, #tpu.memory_space<vmem>>, vector<2x8x128xf32>
      tpu.vector_store %arg12[%c0_121, %c0_122, %c0_123], %351 {strides = array<i32>} : memref<2x8x128xf32, #tpu.memory_space<vmem>>, vector<2x8x128xf32>,
      %c0_124 = arith.constant 0 : index
      %c0_125 = arith.constant 0 : index
      %c0_126 = arith.constant 0 : index
      %353 = vector.load %arg15[%c0_124, %c0_125, %c0_126] : memref<2x8x128xf32, #tpu.memory_space<vmem>>, vector<2x8x128xf32>
      %c0_127 = arith.constant 0 : index
      %c0_128 = arith.constant 0 : index
      %c0_129 = arith.constant 0 : index
      %354 = vector.load %arg13[%c0_127, %c0_128, %c0_129] : memref<2x8x128xf32, #tpu.memory_space<vmem>>, vector<2x8x128xf32>
      tpu.vector_store %arg13[%c0_127, %c0_128, %c0_129], %353 {strides = array<i32>} : memref<2x8x128xf32, #tpu.memory_space<vmem>>, vector<2x8x128xf32>,
    } else {
    }
    return
  }
  func.func @transform_0(%arg0: i32) -> (i32, i32, i32) {
    %c0_i32 = arith.constant 0 : i32
    %c0_i32_0 = arith.constant 0 : i32
    %c0_i32_1 = arith.constant 0 : i32
    return %arg0, %c0_i32, %c0_i32_0 : i32, i32, i32
  }
  func.func @transform_1(%arg0: i32) -> (i32, i32) {
    %c0_i32 = arith.constant 0 : i32
    %c0_i32_0 = arith.constant 0 : i32
    %c0_i32_1 = arith.constant 0 : i32
    return %c0_i32, %c0_i32_0 : i32, i32
  }
  func.func @transform_2(%arg0: i32) -> (i32, i32, i32) {
    %c0_i32 = arith.constant 0 : i32
    %c0_i32_0 = arith.constant 0 : i32
    %c0_i32_1 = arith.constant 0 : i32
    %c0_i32_2 = arith.constant 0 : i32
    return %c0_i32, %c0_i32_0, %c0_i32_1 : i32, i32, i32
  }
  func.func @transform_3(%arg0: i32) -> (i32, i32, i32) {
    %c0_i32 = arith.constant 0 : i32
    %c0_i32_0 = arith.constant 0 : i32
    %c0_i32_1 = arith.constant 0 : i32
    %c0_i32_2 = arith.constant 0 : i32
    return %c0_i32, %c0_i32_0, %c0_i32_1 : i32, i32, i32
  }
  func.func @transform_4(%arg0: i32) -> (i32, i32) {
    %c0_i32 = arith.constant 0 : i32
    %c0_i32_0 = arith.constant 0 : i32
    %c0_i32_1 = arith.constant 0 : i32
    return %c0_i32, %c0_i32_0 : i32, i32
  }
  func.func @transform_5(%arg0: i32) -> (i32, i32) {
    %c0_i32 = arith.constant 0 : i32
    %c0_i32_0 = arith.constant 0 : i32
    %c0_i32_1 = arith.constant 0 : i32
    return %c0_i32, %c0_i32_0 : i32, i32
  }
  func.func @transform_6(%arg0: i32) -> (i32, i32) {
    %c0_i32 = arith.constant 0 : i32
    %c0_i32_0 = arith.constant 0 : i32
    %c0_i32_1 = arith.constant 0 : i32
    return %c0_i32, %c0_i32_0 : i32, i32
  }
  func.func @transform_7(%arg0: i32) -> (i32, i32) {
    %c0_i32 = arith.constant 0 : i32
    %c0_i32_0 = arith.constant 0 : i32
    %c0_i32_1 = arith.constant 0 : i32
    return %c0_i32, %c0_i32_0 : i32, i32
  }
  func.func @transform_8(%arg0: i32) -> (i32, i32) {
    %c0_i32 = arith.constant 0 : i32
    %c0_i32_0 = arith.constant 0 : i32
    %c0_i32_1 = arith.constant 0 : i32
    return %c0_i32, %c0_i32_0 : i32, i32
  }
  func.func @transform_9(%arg0: i32) -> (i32, i32) {
    %c0_i32 = arith.constant 0 : i32
    %c0_i32_0 = arith.constant 0 : i32
    %c0_i32_1 = arith.constant 0 : i32
    return %c0_i32, %c0_i32_0 : i32, i32
  }
  func.func @transform_10(%arg0: i32) -> (i32, i32, i32) {
    %c0_i32 = arith.constant 0 : i32
    %c0_i32_0 = arith.constant 0 : i32
    %c0_i32_1 = arith.constant 0 : i32
    return %arg0, %c0_i32, %c0_i32_0 : i32, i32, i32
  }
  func.func @transform_11(%arg0: i32) -> (i32, i32, i32) {
    %c0_i32 = arith.constant 0 : i32
    %c0_i32_0 = arith.constant 0 : i32
    %c0_i32_1 = arith.constant 0 : i32
    %c0_i32_2 = arith.constant 0 : i32
    return %c0_i32, %c0_i32_0, %c0_i32_1 : i32, i32, i32
  }
  func.func @transform_12(%arg0: i32) -> (i32, i32, i32) {
    %c0_i32 = arith.constant 0 : i32
    %c0_i32_0 = arith.constant 0 : i32
    %c0_i32_1 = arith.constant 0 : i32
    %c0_i32_2 = arith.constant 0 : i32
    return %c0_i32, %c0_i32_0, %c0_i32_1 : i32, i32, i32
  }
}

</mosaic_0001>

<llo_original>
// kernel: tpu_custom_call.1
$region0: #{tpu_custom_call.1}
  #allocation0 [shape = 'u32[]', space=smem, size = 0x4, offset = 0x4, fixed_abs, tag = 'smem constant byte address 0x4 - core index']
  #allocation1 [shape = 'u32[144,128]{1,0:T(1,128)}', space=vmem, size = 0x12000, scoped, tag = 'internal scratch']
  #allocation2 [shape = 'f32[2,8,128]{2,1,0:T(8,128)}', space=vmem, size = 0x2000, scoped, tag = 'scratch operand']
  #allocation3 [shape = 'f32[2,8,128]{2,1,0:T(8,128)}', space=vmem, size = 0x2000, scoped, tag = 'scratch operand']
  #allocation4 [shape = 'f32[32,512]{1,0:T(8,128)}', space=vmem, size = 0x10000, scoped, tag = 'scratch operand']
  %s0 = inlined_call_operand.hbm [shape: bf16[2,32,128], index: 0, kind: input, shape index: {}]
  %s1 = inlined_call_operand.vmem [shape: s32[8,1], index: 1, kind: input, shape index: {}]
  %s2 = inlined_call_operand.hbm [shape: f32[2,8,128], index: 2, kind: input, shape index: {}]
  %s3 = inlined_call_operand.hbm [shape: f32[2,8,128], index: 3, kind: input, shape index: {}]
  %s4 = inlined_call_operand.hbm [shape: bf16[128,512], index: 4, kind: input, shape index: {}]
  %s5 = inlined_call_operand.hbm [shape: bf16[128,512], index: 5, kind: input, shape index: {}]
  %s6 = inlined_call_operand.hbm [shape: bf16[128,512], index: 6, kind: input, shape index: {}]
  %s7 = inlined_call_operand.hbm [shape: bf16[128,512], index: 7, kind: input, shape index: {}]
  %s8 = inlined_call_operand.vmem [shape: f32[1,512], index: 8, kind: input, shape index: {}]
  %s9 = inlined_call_operand.vmem [shape: f32[1,512], index: 9, kind: input, shape index: {}]
  %s10 = inlined_call_operand.hbm [shape: bf16[8,8,128], index: 10, kind: output, shape index: {0}]
  %s11 = inlined_call_operand.hbm [shape: f32[2,8,128], index: 11, kind: output, shape index: {1}]
  %s12 = inlined_call_operand.hbm [shape: f32[2,8,128], index: 12, kind: output, shape index: {2}]
  %13 = xla_tuple %s10, %s11, %s12
  %s14 = sld [smem:[#allocation0]]
  $region125: #{tpu_custom_call.1} parent=0
    _
  %s16 = ssub.s32 1, %s14
  %s17 = scalar_select 0, %s16, %s14
  $region1: #{tpu_custom_call.1} parent=0
    #allocation5 [shape = 'u8[16384]{0}', space=vmem, size = 0x4000, scoped, tag = 'input window, operand 0']
    #allocation6 [shape = 's32[2]{0}', space=sflag, size = 0x8, scoped, tag = 'scoped memory for tpu_custom_call.1']
    #allocation7 [shape = 's32[2]{0}', space=sflag, size = 0x8, scoped, tag = 'scoped memory for tpu_custom_call.1']
    #allocation8 [shape = 'u8[8192]{0}', space=vmem, size = 0x2000, scoped, tag = 'input window, operand 2, single buffered']
    #allocation9 [shape = 's32[1]{0}', space=sflag, size = 0x4, scoped, tag = 'scoped memory for tpu_custom_call.1']
    #allocation10 [shape = 'u8[8192]{0}', space=vmem, size = 0x2000, scoped, tag = 'input window, operand 3, single buffered']
    #allocation11 [shape = 'u8[131072]{0}', space=vmem, size = 0x20000, scoped, tag = 'input window, operand 4, single buffered']
    #allocation12 [shape = 's32[1]{0}', space=sflag, size = 0x4, scoped, tag = 'scoped memory for tpu_custom_call.1']
    #allocation13 [shape = 'u8[131072]{0}', space=vmem, size = 0x20000, scoped, tag = 'input window, operand 5, single buffered']
    #allocation14 [shape = 'u8[131072]{0}', space=vmem, size = 0x20000, scoped, tag = 'input window, operand 6, single buffered']
    #allocation15 [shape = 's32[1]{0}', space=sflag, size = 0x4, scoped, tag = 'scoped memory for tpu_custom_call.1']
    #allocation16 [shape = 'u8[131072]{0}', space=vmem, size = 0x20000, scoped, tag = 'input window, operand 7, single buffered']
    #allocation17 [shape = 'u8[16384]{0}', space=vmem, size = 0x4000, scoped, tag = 'output window, operand 0']
    #allocation18 [shape = 'u8[8192]{0}', space=vmem, size = 0x2000, scoped, tag = 'output window, operand 1, single buffered']
    #allocation19 [shape = 's32[1]{0}', space=sflag, size = 0x4, scoped, tag = 'scoped memory for tpu_custom_call.1']
    #allocation20 [shape = 'u8[8192]{0}', space=vmem, size = 0x2000, scoped, tag = 'output window, operand 2, single buffered']
    %18 = vsyncpa [#allocation6], 0
    %s19 = scalar_lea.sflag [#allocation6], 1
    %20 = vsyncpa %s19, 0
    %21 = vsyncpa [#allocation9], 0
    %22 = vsyncpa [#allocation12], 0
    %23 = vsyncpa [#allocation15], 0
    %24 = vsyncpa [#allocation7], 0
    %s25 = scalar_lea.sflag [#allocation7], 1
    %26 = vsyncpa %s25, 0
    %27 = vsyncpa [#allocation19], 0
    loop: start=0, step=1, limit=4
    $region2: #{tpu_custom_call.1} parent=1 // loop_pre_header
      _
    $region3: #{tpu_custom_call.1} parent=1 // loop_header
      %s29 = sphi 0, %s33
      %p30 = scmp.ge.s32.totalorder %s29, 4
      %s39 = sphi 0, %s41
      %s42 = sphi 0, %s39
      %s43 = sphi 0, %s42
      %s59 = sphi 0, %s43
      %s63 = sphi 0, %s63
      %s65 = sphi 0, %s63
      %s66 = sphi 0, %s65
      %s80 = sphi 0, %s66
      %s84 = sphi 0, %s84
      %s86 = sphi 0, %s84
      %s87 = sphi 0, %s86
      %s101 = sphi 0, %s87
      %s105 = sphi 0, %s105
      %s107 = sphi 0, %s105
      %s108 = sphi 0, %s107
      %s122 = sphi 0, %s108
      %s126 = sphi 0, %s126
      %s128 = sphi 0, %s126
      %s129 = sphi 0, %s128
      %s143 = sphi 0, %s129
      %s147 = sphi 0, %s147
      %s149 = sphi 0, %s147
      %s150 = sphi 0, %s149
      %s164 = sphi 0, %s150
      %s168 = sphi 0, %s168
      %s170 = sphi 0, %s168
      %s171 = sphi 0, %s170
      %s185 = sphi 0, %s171
      %s189 = sphi 0, %s189
      %s191 = sphi 0, %s189
      %s192 = sphi 0, %s191
      %s206 = sphi 0, %s192
      %s210 = sphi 0, %s210
      %s212 = sphi 0, %s210
      %s213 = sphi 0, %s212
      %s227 = sphi 0, %s213
      %s231 = sphi 0, %s231
      %s233 = sphi 0, %s231
      %s234 = sphi 0, %s233
      %s248 = sphi 0, %s234
      %s254 = sphi 0, %s256
      %s257 = sphi 0, %s254
      %s258 = sphi 0, %s257
      %s274 = sphi 0, %s258
      %s278 = sphi 0, %s278
      %s280 = sphi 0, %s278
      %s281 = sphi 0, %s280
      %s295 = sphi 0, %s281
      %s299 = sphi 0, %s299
      %s301 = sphi 0, %s299
      %s302 = sphi 0, %s301
      %s316 = sphi 0, %s302
    $region4: #{tpu_custom_call.1} parent=1 // loop_header_branch
      %32 = sbr.rel (%p30) target = $region8
    $region5: #{tpu_custom_call.1} parent=1 // loop_body
      %s34 = ssub.s32 %s29, 1
      %s35 = ssub.s32 %s29, 2
      %s36 = sadd.s32 %s29, 1
      %s37 = ssub.s32 %s29, %s36
      %p38 = scmp.eq.s32.totalorder %s37, 0
      %s40 = sadd.s32 %s39, 1
      %s41 = scalar_select %p38, %s39, %s40
      %p44 = pneg %p38
      %p45 = scmp.eq.s32.totalorder %s29, 1
      %p46 = por %p44, %p45
      %p47 = scmp.ne.s32.totalorder %s39, %s42
      %p48 = scmp.eq.s32.totalorder %s29, 0
      %p49 = por %p47, %p48
      %p50 = scmp.ne.s32.totalorder %s39, %s42
      %p51 = scmp.eq.s32.totalorder %s34, 1
      %p52 = por %p50, %p51
      %p53 = scmp.ne.s32.totalorder %s42, %s43
      %p54 = scmp.eq.s32.totalorder %s34, 0
      %p55 = por %p53, %p54
      %p56 = scmp.ne.s32.totalorder %s42, %s43
      %p57 = scmp.eq.s32.totalorder %s35, 1
      %p58 = por %p56, %p57
      %p60 = scmp.ne.s32.totalorder %s43, %s59
      %p61 = scmp.eq.s32.totalorder %s35, 0
      %p62 = por %p60, %p61
      %s64 = sadd.s32 %s63, 1
      %p67 = scmp.eq.s32.totalorder %s29, 1
      %p68 = scmp.ne.s32.totalorder %s63, %s65
      %p69 = scmp.eq.s32.totalorder %s29, 0
      %p70 = por %p68, %p69
      %p71 = scmp.ne.s32.totalorder %s63, %s65
      %p72 = scmp.eq.s32.totalorder %s34, 1
      %p73 = por %p71, %p72
      %p74 = scmp.ne.s32.totalorder %s65, %s66
      %p75 = scmp.eq.s32.totalorder %s34, 0
      %p76 = por %p74, %p75
      %p77 = scmp.ne.s32.totalorder %s65, %s66
      %p78 = scmp.eq.s32.totalorder %s35, 1
      %p79 = por %p77, %p78
      %p81 = scmp.ne.s32.totalorder %s66, %s80
      %p82 = scmp.eq.s32.totalorder %s35, 0
      %p83 = por %p81, %p82
      %s85 = sadd.s32 %s84, 1
      %p88 = scmp.eq.s32.totalorder %s29, 1
      %p89 = scmp.ne.s32.totalorder %s84, %s86
      %p90 = scmp.eq.s32.totalorder %s29, 0
      %p91 = por %p89, %p90
      %p92 = scmp.ne.s32.totalorder %s84, %s86
      %p93 = scmp.eq.s32.totalorder %s34, 1
      %p94 = por %p92, %p93
      %p95 = scmp.ne.s32.totalorder %s86, %s87
      %p96 = scmp.eq.s32.totalorder %s34, 0
      %p97 = por %p95, %p96
      %p98 = scmp.ne.s32.totalorder %s86, %s87
      %p99 = scmp.eq.s32.totalorder %s35, 1
      %p100 = por %p98, %p99
      %p102 = scmp.ne.s32.totalorder %s87, %s101
      %p103 = scmp.eq.s32.totalorder %s35, 0
      %p104 = por %p102, %p103
      %s106 = sadd.s32 %s105, 1
      %p109 = scmp.eq.s32.totalorder %s29, 1
      %p110 = scmp.ne.s32.totalorder %s105, %s107
      %p111 = scmp.eq.s32.totalorder %s29, 0
      %p112 = por %p110, %p111
      %p113 = scmp.ne.s32.totalorder %s105, %s107
      %p114 = scmp.eq.s32.totalorder %s34, 1
      %p115 = por %p113, %p114
      %p116 = scmp.ne.s32.totalorder %s107, %s108
      %p117 = scmp.eq.s32.totalorder %s34, 0
      %p118 = por %p116, %p117
      %p119 = scmp.ne.s32.totalorder %s107, %s108
      %p120 = scmp.eq.s32.totalorder %s35, 1
      %p121 = por %p119, %p120
      %p123 = scmp.ne.s32.totalorder %s108, %s122
      %p124 = scmp.eq.s32.totalorder %s35, 0
      %p125 = por %p123, %p124
      %s127 = sadd.s32 %s126, 1
      %p130 = scmp.eq.s32.totalorder %s29, 1
      %p131 = scmp.ne.s32.totalorder %s126, %s128
      %p132 = scmp.eq.s32.totalorder %s29, 0
      %p133 = por %p131, %p132
      %p134 = scmp.ne.s32.totalorder %s126, %s128
      %p135 = scmp.eq.s32.totalorder %s34, 1
      %p136 = por %p134, %p135
      %p137 = scmp.ne.s32.totalorder %s128, %s129
      %p138 = scmp.eq.s32.totalorder %s34, 0
      %p139 = por %p137, %p138
      %p140 = scmp.ne.s32.totalorder %s128, %s129
      %p141 = scmp.eq.s32.totalorder %s35, 1
      %p142 = por %p140, %p141
      %p144 = scmp.ne.s32.totalorder %s129, %s143
      %p145 = scmp.eq.s32.totalorder %s35, 0
      %p146 = por %p144, %p145
      %s148 = sadd.s32 %s147, 1
      %p151 = scmp.eq.s32.totalorder %s29, 1
      %p152 = scmp.ne.s32.totalorder %s147, %s149
      %p153 = scmp.eq.s32.totalorder %s29, 0
      %p154 = por %p152, %p153
      %p155 = scmp.ne.s32.totalorder %s147, %s149
      %p156 = scmp.eq.s32.totalorder %s34, 1
      %p157 = por %p155, %p156
      %p158 = scmp.ne.s32.totalorder %s149, %s150
      %p159 = scmp.eq.s32.totalorder %s34, 0
      %p160 = por %p158, %p159
      %p161 = scmp.ne.s32.totalorder %s149, %s150
      %p162 = scmp.eq.s32.totalorder %s35, 1
      %p163 = por %p161, %p162
      %p165 = scmp.ne.s32.totalorder %s150, %s164
      %p166 = scmp.eq.s32.totalorder %s35, 0
      %p167 = por %p165, %p166
      %s169 = sadd.s32 %s168, 1
      %p172 = scmp.eq.s32.totalorder %s29, 1
      %p173 = scmp.ne.s32.totalorder %s168, %s170
      %p174 = scmp.eq.s32.totalorder %s29, 0
      %p175 = por %p173, %p174
      %p176 = scmp.ne.s32.totalorder %s168, %s170
      %p177 = scmp.eq.s32.totalorder %s34, 1
      %p178 = por %p176, %p177
      %p179 = scmp.ne.s32.totalorder %s170, %s171
      %p180 = scmp.eq.s32.totalorder %s34, 0
      %p181 = por %p179, %p180
      %p182 = scmp.ne.s32.totalorder %s170, %s171
      %p183 = scmp.eq.s32.totalorder %s35, 1
      %p184 = por %p182, %p183
      %p186 = scmp.ne.s32.totalorder %s171, %s185
      %p187 = scmp.eq.s32.totalorder %s35, 0
      %p188 = por %p186, %p187
      %s190 = sadd.s32 %s189, 1
      %p193 = scmp.eq.s32.totalorder %s29, 1
      %p194 = scmp.ne.s32.totalorder %s189, %s191
      %p195 = scmp.eq.s32.totalorder %s29, 0
      %p196 = por %p194, %p195
      %p197 = scmp.ne.s32.totalorder %s189, %s191
      %p198 = scmp.eq.s32.totalorder %s34, 1
      %p199 = por %p197, %p198
      %p200 = scmp.ne.s32.totalorder %s191, %s192
      %p201 = scmp.eq.s32.totalorder %s34, 0
      %p202 = por %p200, %p201
      %p203 = scmp.ne.s32.totalorder %s191, %s192
      %p204 = scmp.eq.s32.totalorder %s35, 1
      %p205 = por %p203, %p204
      %p207 = scmp.ne.s32.totalorder %s192, %s206
      %p208 = scmp.eq.s32.totalorder %s35, 0
      %p209 = por %p207, %p208
      %s211 = sadd.s32 %s210, 1
      %p214 = scmp.eq.s32.totalorder %s29, 1
      %p215 = scmp.ne.s32.totalorder %s210, %s212
      %p216 = scmp.eq.s32.totalorder %s29, 0
      %p217 = por %p215, %p216
      %p218 = scmp.ne.s32.totalorder %s210, %s212
      %p219 = scmp.eq.s32.totalorder %s34, 1
      %p220 = por %p218, %p219
      %p221 = scmp.ne.s32.totalorder %s212, %s213
      %p222 = scmp.eq.s32.totalorder %s34, 0
      %p223 = por %p221, %p222
      %p224 = scmp.ne.s32.totalorder %s212, %s213
      %p225 = scmp.eq.s32.totalorder %s35, 1
      %p226 = por %p224, %p225
      %p228 = scmp.ne.s32.totalorder %s213, %s227
      %p229 = scmp.eq.s32.totalorder %s35, 0
      %p230 = por %p228, %p229
      %s232 = sadd.s32 %s231, 1
      %p235 = scmp.eq.s32.totalorder %s29, 1
      %p236 = scmp.ne.s32.totalorder %s231, %s233
      %p237 = scmp.eq.s32.totalorder %s29, 0
      %p238 = por %p236, %p237
      %p239 = scmp.ne.s32.totalorder %s231, %s233
      %p240 = scmp.eq.s32.totalorder %s34, 1
      %p241 = por %p239, %p240
      %p242 = scmp.ne.s32.totalorder %s233, %s234
      %p243 = scmp.eq.s32.totalorder %s34, 0
      %p244 = por %p242, %p243
      %p245 = scmp.ne.s32.totalorder %s233, %s234
      %p246 = scmp.eq.s32.totalorder %s35, 1
      %p247 = por %p245, %p246
      %p249 = scmp.ne.s32.totalorder %s234, %s248
      %p250 = scmp.eq.s32.totalorder %s35, 0
      %p251 = por %p249, %p250
      %s252 = ssub.s32 %s29, %s36
      %p253 = scmp.eq.s32.totalorder %s252, 0
      %s255 = sadd.s32 %s254, 1
      %s256 = scalar_select %p253, %s254, %s255
      %p259 = pneg %p253
      %p260 = scmp.eq.s32.totalorder %s29, 1
      %p261 = por %p259, %p260
      %p262 = scmp.ne.s32.totalorder %s254, %s257
      %p263 = scmp.eq.s32.totalorder %s29, 0
      %p264 = por %p262, %p263
      %p265 = scmp.ne.s32.totalorder %s254, %s257
      %p266 = scmp.eq.s32.totalorder %s34, 1
      %p267 = por %p265, %p266
      %p268 = scmp.ne.s32.totalorder %s257, %s258
      %p269 = scmp.eq.s32.totalorder %s34, 0
      %p270 = por %p268, %p269
      %p271 = scmp.ne.s32.totalorder %s257, %s258
      %p272 = scmp.eq.s32.totalorder %s35, 1
      %p273 = por %p271, %p272
      %p275 = scmp.ne.s32.totalorder %s258, %s274
      %p276 = scmp.eq.s32.totalorder %s35, 0
      %p277 = por %p275, %p276
      %s279 = sadd.s32 %s278, 1
      %p282 = scmp.eq.s32.totalorder %s29, 1
      %p283 = scmp.ne.s32.totalorder %s278, %s280
      %p284 = scmp.eq.s32.totalorder %s29, 0
      %p285 = por %p283, %p284
      %p286 = scmp.ne.s32.totalorder %s278, %s280
      %p287 = scmp.eq.s32.totalorder %s34, 1
      %p288 = por %p286, %p287
      %p289 = scmp.ne.s32.totalorder %s280, %s281
      %p290 = scmp.eq.s32.totalorder %s34, 0
      %p291 = por %p289, %p290
      %p292 = scmp.ne.s32.totalorder %s280, %s281
      %p293 = scmp.eq.s32.totalorder %s35, 1
      %p294 = por %p292, %p293
      %p296 = scmp.ne.s32.totalorder %s281, %s295
      %p297 = scmp.eq.s32.totalorder %s35, 0
      %p298 = por %p296, %p297
      %s300 = sadd.s32 %s299, 1
      %p303 = scmp.eq.s32.totalorder %s29, 1
      %p304 = scmp.ne.s32.totalorder %s299, %s301
      %p305 = scmp.eq.s32.totalorder %s29, 0
      %p306 = por %p304, %p305
      %p307 = scmp.ne.s32.totalorder %s299, %s301
      %p308 = scmp.eq.s32.totalorder %s34, 1
      %p309 = por %p307, %p308
      %p310 = scmp.ne.s32.totalorder %s301, %s302
      %p311 = scmp.eq.s32.totalorder %s34, 0
      %p312 = por %p310, %p311
      %p313 = scmp.ne.s32.totalorder %s301, %s302
      %p314 = scmp.eq.s32.totalorder %s35, 1
      %p315 = por %p313, %p314
      %p317 = scmp.ne.s32.totalorder %s302, %s316
      %p318 = scmp.eq.s32.totalorder %s35, 0
      %p319 = por %p317, %p318
      %p320 = scmp.le.s32.totalorder 1, %s29
      %p321 = scmp.lt.s32.totalorder %s29, 3
      %p322 = pnand %p320, %p321
      %p323 = pneg %p322
      // Predicated region
      $region9: #{tpu_custom_call.1} parent=5 // pred_check
        _
      $region10: #{tpu_custom_call.1} parent=5 // pred_check_branch
        %325 = sbr.rel (%p322) target = $region12
      $region11: #{tpu_custom_call.1} parent=5 // pred_region
        %s326 = ssub.s32 %s29, 1
        // Predicated region
        $region13: #{tpu_custom_call.1} parent=11 // pred_check
          %p327 = pneg %p76
        $region14: #{tpu_custom_call.1} parent=11 // pred_check_branch
          %329 = sbr.rel (%p327) target = $region16
        $region15: #{tpu_custom_call.1} parent=11 // pred_region
          _
        $region16: #{tpu_custom_call.1} parent=11 // pred_fallthru
          _
        // Predicated region
        $region17: #{tpu_custom_call.1} parent=11 // pred_check
          %p330 = pneg %p97
        $region18: #{tpu_custom_call.1} parent=11 // pred_check_branch
          %332 = sbr.rel (%p330) target = $region20
        $region19: #{tpu_custom_call.1} parent=11 // pred_region
          %s334 = ssub.s32 256, 256
          %335 = vsyncadd [#allocation9], %s334
          %s336 = sshll.u32 [#allocation8], 4
          %s337 = int_to_ptr.vmem [resolvable:$true] %s336
          %342 = dma.hbm_to_vmem [thread:$0]  %s2, 256, %s337, [#allocation9], 128, 128, 8
        $region20: #{tpu_custom_call.1} parent=11 // pred_fallthru
          _
        // Predicated region
        $region21: #{tpu_custom_call.1} parent=11 // pred_check
          %p343 = pneg %p118
        $region22: #{tpu_custom_call.1} parent=11 // pred_check_branch
          %345 = sbr.rel (%p343) target = $region24
        $region23: #{tpu_custom_call.1} parent=11 // pred_region
          %s347 = ssub.s32 256, 256
          %348 = vsyncadd [#allocation9], %s347
          %s349 = sshll.u32 [#allocation10], 4
          %s350 = int_to_ptr.vmem [resolvable:$true] %s349
          %355 = dma.hbm_to_vmem [thread:$0]  %s3, 256, %s350, [#allocation9], 128, 128, 8
        $region24: #{tpu_custom_call.1} parent=11 // pred_fallthru
          _
        // Predicated region
        $region25: #{tpu_custom_call.1} parent=11 // pred_check
          %p356 = pneg %p139
        $region26: #{tpu_custom_call.1} parent=11 // pred_check_branch
          %358 = sbr.rel (%p356) target = $region28
        $region27: #{tpu_custom_call.1} parent=11 // pred_region
          %s360 = ssub.s32 4096, 4096
          %361 = vsyncadd [#allocation12], %s360
          %s362 = sshll.u32 [#allocation11], 4
          %s363 = int_to_ptr.vmem [resolvable:$true] %s362
          %368 = dma.hbm_to_vmem [thread:$0]  %s4, 4096, %s363, [#allocation12], 256, 256, 16
        $region28: #{tpu_custom_call.1} parent=11 // pred_fallthru
          _
        // Predicated region
        $region29: #{tpu_custom_call.1} parent=11 // pred_check
          %p369 = pneg %p160
        $region30: #{tpu_custom_call.1} parent=11 // pred_check_branch
          %371 = sbr.rel (%p369) target = $region32
        $region31: #{tpu_custom_call.1} parent=11 // pred_region
          %s373 = ssub.s32 4096, 4096
          %374 = vsyncadd [#allocation12], %s373
          %s375 = sshll.u32 [#allocation13], 4
          %s376 = int_to_ptr.vmem [resolvable:$true] %s375
          %381 = dma.hbm_to_vmem [thread:$0]  %s5, 4096, %s376, [#allocation12], 256, 256, 16
        $region32: #{tpu_custom_call.1} parent=11 // pred_fallthru
          _
        // Predicated region
        $region33: #{tpu_custom_call.1} parent=11 // pred_check
          %p382 = pneg %p181
        $region34: #{tpu_custom_call.1} parent=11 // pred_check_branch
          %384 = sbr.rel (%p382) target = $region36
        $region35: #{tpu_custom_call.1} parent=11 // pred_region
          %s386 = ssub.s32 4096, 4096
          %387 = vsyncadd [#allocation15], %s386
          %s388 = sshll.u32 [#allocation14], 4
          %s389 = int_to_ptr.vmem [resolvable:$true] %s388
          %394 = dma.hbm_to_vmem [thread:$0]  %s6, 4096, %s389, [#allocation15], 256, 256, 16
        $region36: #{tpu_custom_call.1} parent=11 // pred_fallthru
          _
        // Predicated region
        $region37: #{tpu_custom_call.1} parent=11 // pred_check
          %p395 = pneg %p202
        $region38: #{tpu_custom_call.1} parent=11 // pred_check_branch
          %397 = sbr.rel (%p395) target = $region40
        $region39: #{tpu_custom_call.1} parent=11 // pred_region
          %s399 = ssub.s32 4096, 4096
          %400 = vsyncadd [#allocation15], %s399
          %s401 = sshll.u32 [#allocation16], 4
          %s402 = int_to_ptr.vmem [resolvable:$true] %s401
          %407 = dma.hbm_to_vmem [thread:$0]  %s7, 4096, %s402, [#allocation15], 256, 256, 16
        $region40: #{tpu_custom_call.1} parent=11 // pred_fallthru
          _
        // Predicated region
        $region41: #{tpu_custom_call.1} parent=11 // pred_check
          %p408 = pneg %p223
        $region42: #{tpu_custom_call.1} parent=11 // pred_check_branch
          %410 = sbr.rel (%p408) target = $region44
        $region43: #{tpu_custom_call.1} parent=11 // pred_region
          _
        $region44: #{tpu_custom_call.1} parent=11 // pred_fallthru
          _
        // Predicated region
        $region45: #{tpu_custom_call.1} parent=11 // pred_check
          %p411 = pneg %p244
        $region46: #{tpu_custom_call.1} parent=11 // pred_check_branch
          %413 = sbr.rel (%p411) target = $region48
        $region47: #{tpu_custom_call.1} parent=11 // pred_region
          _
        $region48: #{tpu_custom_call.1} parent=11 // pred_fallthru
          _
      $region12: #{tpu_custom_call.1} parent=5 // pred_fallthru
        _
      %p414 = scmp.lt.s32.totalorder %s29, 2
      // Predicated region
      $region49: #{tpu_custom_call.1} parent=5 // pred_check
        %p415 = pneg %p414
      $region50: #{tpu_custom_call.1} parent=5 // pred_check_branch
        %417 = sbr.rel (%p415) target = $region52
      $region51: #{tpu_custom_call.1} parent=5 // pred_region
        // Predicated region
        $region53: #{tpu_custom_call.1} parent=51 // pred_check
          %p418 = pneg %p49
        $region54: #{tpu_custom_call.1} parent=51 // pred_check_branch
          %420 = sbr.rel (%p418) target = $region56
        $region55: #{tpu_custom_call.1} parent=51 // pred_region
          %s421 = sand.u32 %s39, 1
          %s422 = scalar_lea.sflag [#allocation6], %s421
          %s423 = sand.u32 %s39, 1
          %s424 = smul.addr %s423, 16
          %s425 = scalar_lea.vmem [#allocation5], %s424
          %s427 = ssub.s32 256, 256
          %428 = vsyncadd %s422, %s427
          %s429 = smul.addr %s29, 4
          %s430 = smul.addr %s429, 64
          %s431 = scalar_lea.hbm %s0, %s430
          %s432 = sshll.u32 %s425, 4
          %s433 = int_to_ptr.vmem [resolvable:$true] %s432
          %438 = dma.hbm_to_vmem [thread:$0]  %s431, 256, %s433, %s422, 64, 64, 4
        $region56: #{tpu_custom_call.1} parent=51 // pred_fallthru
          _
      $region52: #{tpu_custom_call.1} parent=5 // pred_fallthru
        _
      %p439 = scmp.le.s32.totalorder 1, %s29
      %p440 = scmp.lt.s32.totalorder %s29, 3
      %p441 = pnand %p439, %p440
      %p442 = pneg %p441
      // Predicated region
      $region57: #{tpu_custom_call.1} parent=5 // pred_check
        _
      $region58: #{tpu_custom_call.1} parent=5 // pred_check_branch
        %444 = sbr.rel (%p441) target = $region60
      $region59: #{tpu_custom_call.1} parent=5 // pred_region
        %s445 = ssub.s32 %s29, 1
        %s446 = sand.u32 %s42, 1
        %s447 = scalar_lea.sflag [#allocation6], %s446
        %s448 = sand.u32 %s42, 1
        %s449 = smul.addr %s448, 16
        %s450 = scalar_lea.vmem [#allocation5], %s449
        // Predicated region
        $region61: #{tpu_custom_call.1} parent=59 // pred_check
          %p451 = pneg %p55
        $region62: #{tpu_custom_call.1} parent=59 // pred_check_branch
          %453 = sbr.rel (%p451) target = $region64
        $region63: #{tpu_custom_call.1} parent=59 // pred_region
          %454 = dma.done %s447, 256
        $region64: #{tpu_custom_call.1} parent=59 // pred_fallthru
          _
        // Predicated region
        $region65: #{tpu_custom_call.1} parent=59 // pred_check
          %p455 = pneg %p97
        $region66: #{tpu_custom_call.1} parent=59 // pred_check_branch
          %457 = sbr.rel (%p455) target = $region68
        $region67: #{tpu_custom_call.1} parent=59 // pred_region
          %458 = dma.done [#allocation9], 256
        $region68: #{tpu_custom_call.1} parent=59 // pred_fallthru
          _
        // Predicated region
        $region69: #{tpu_custom_call.1} parent=59 // pred_check
          %p459 = pneg %p118
        $region70: #{tpu_custom_call.1} parent=59 // pred_check_branch
          %461 = sbr.rel (%p459) target = $region72
        $region71: #{tpu_custom_call.1} parent=59 // pred_region
          %462 = dma.done [#allocation9], 256
        $region72: #{tpu_custom_call.1} parent=59 // pred_fallthru
          _
        // Predicated region
        $region73: #{tpu_custom_call.1} parent=59 // pred_check
          %p463 = pneg %p139
        $region74: #{tpu_custom_call.1} parent=59 // pred_check_branch
          %465 = sbr.rel (%p463) target = $region76
        $region75: #{tpu_custom_call.1} parent=59 // pred_region
          %466 = dma.done [#allocation12], 4096
        $region76: #{tpu_custom_call.1} parent=59 // pred_fallthru
          _
        // Predicated region
        $region77: #{tpu_custom_call.1} parent=59 // pred_check
          %p467 = pneg %p160
        $region78: #{tpu_custom_call.1} parent=59 // pred_check_branch
          %469 = sbr.rel (%p467) target = $region80
        $region79: #{tpu_custom_call.1} parent=59 // pred_region
          %470 = dma.done [#allocation12], 4096
        $region80: #{tpu_custom_call.1} parent=59 // pred_fallthru
          _
        // Predicated region
        $region81: #{tpu_custom_call.1} parent=59 // pred_check
          %p471 = pneg %p181
        $region82: #{tpu_custom_call.1} parent=59 // pred_check_branch
          %473 = sbr.rel (%p471) target = $region84
        $region83: #{tpu_custom_call.1} parent=59 // pred_region
          %474 = dma.done [#allocation15], 4096
        $region84: #{tpu_custom_call.1} parent=59 // pred_fallthru
          _
        // Predicated region
        $region85: #{tpu_custom_call.1} parent=59 // pred_check
          %p475 = pneg %p202
        $region86: #{tpu_custom_call.1} parent=59 // pred_check_branch
          %477 = sbr.rel (%p475) target = $region88
        $region87: #{tpu_custom_call.1} parent=59 // pred_region
          %478 = dma.done [#allocation15], 4096
        $region88: #{tpu_custom_call.1} parent=59 // pred_fallthru
          _
        %s479 = sand.u32 %s42, 1
        %s480 = scalar_lea.sflag [#allocation6], %s479
        %s481 = sand.u32 %s42, 1
        %s482 = smul.addr %s481, 16
        %s483 = scalar_lea.vmem [#allocation5], %s482
        %p484 = pneg %p55
        %p485 = pneg %p52
        %p486 = pneg %p76
        %p487 = pneg %p73
        %p488 = pneg %p97
        %p489 = pneg %p94
        %p490 = pneg %p118
        %p491 = pneg %p115
        %p492 = pneg %p139
        %p493 = pneg %p136
        %p494 = pneg %p160
        %p495 = pneg %p157
        %p496 = pneg %p181
        %p497 = pneg %p178
        %p498 = pneg %p202
        %p499 = pneg %p199
        %p500 = pneg %p223
        %p501 = pneg %p220
        %p502 = pneg %p244
        %p503 = pneg %p241
        %p504 = pneg %p270
        %p505 = pneg %p267
        %s506 = sand.u32 %s257, 1
        %s507 = scalar_lea.sflag [#allocation7], %s506
        %s508 = sand.u32 %s257, 1
        %s509 = smul.addr %s508, 16
        %s510 = scalar_lea.vmem [#allocation17], %s509
        %p511 = pneg %p291
        %p512 = pneg %p288
        %p513 = pneg %p312
        %p514 = pneg %p309
        %s515 = smul.u32 4, %s34
        %p517 = scmp.eq.s32.totalorder %s34, 0
        // Predicated region
        $region89: #{tpu_custom_call.1} parent=59 // pred_check
          %p518 = pneg %p517
        $region90: #{tpu_custom_call.1} parent=59 // pred_check_branch
          %520 = sbr.rel (%p518) target = $region92
        $region91: #{tpu_custom_call.1} parent=59 // pred_region
          %v521 = vld [vmem:[#allocation8] sm:$0xff]
          %v522 = vld [vmem:[#allocation8 + $0x8] sm:$0xff]
          %523 = vst [vmem:[#allocation2] sm:$0xff] %v521
          %524 = vst [vmem:[#allocation2 + $0x8] sm:$0xff] %v522
          %v525 = vld [vmem:[#allocation10] sm:$0xff]
          %v526 = vld [vmem:[#allocation10 + $0x8] sm:$0xff]
          %527 = vst [vmem:[#allocation3] sm:$0xff] %v525
          %528 = vst [vmem:[#allocation3 + $0x8] sm:$0xff] %v526
        $region92: #{tpu_custom_call.1} parent=59 // pred_fallthru
          _
        %v529 = vld [vmem:[%s450] sm:$0xf]
        %v530 = vld [vmem:[%s450 + $0x4] sm:$0xf]
        %v531 = vld [vmem:[%s450 + $0x8] sm:$0xf]
        %v532 = vld [vmem:[%s450 + $0xc] sm:$0xf]
        %v533 = vld [vmem:[#allocation11] sm:$0xff]
        %v534 = vld [vmem:[#allocation11 + $0x8] sm:$0xff]
        %v535 = vld [vmem:[#allocation11 + $0x10] sm:$0xff]
        %v536 = vld [vmem:[#allocation11 + $0x18] sm:$0xff]
        %v537 = vld [vmem:[#allocation11 + $0x20] sm:$0xff]
        %v538 = vld [vmem:[#allocation11 + $0x28] sm:$0xff]
        %v539 = vld [vmem:[#allocation11 + $0x30] sm:$0xff]
        %v540 = vld [vmem:[#allocation11 + $0x38] sm:$0xff]
        %v541 = vld [vmem:[#allocation11 + $0x40] sm:$0xff]
        %v542 = vld [vmem:[#allocation11 + $0x48] sm:$0xff]
        %v543 = vld [vmem:[#allocation11 + $0x50] sm:$0xff]
        %v544 = vld [vmem:[#allocation11 + $0x58] sm:$0xff]
        %v545 = vld [vmem:[#allocation11 + $0x60] sm:$0xff]
        %v546 = vld [vmem:[#allocation11 + $0x68] sm:$0xff]
        %v547 = vld [vmem:[#allocation11 + $0x70] sm:$0xff]
        %v548 = vld [vmem:[#allocation11 + $0x78] sm:$0xff]
        %v549 = vld [vmem:[#allocation11 + $0x80] sm:$0xff]
        %v550 = vld [vmem:[#allocation11 + $0x88] sm:$0xff]
        %v551 = vld [vmem:[#allocation11 + $0x90] sm:$0xff]
        %v552 = vld [vmem:[#allocation11 + $0x98] sm:$0xff]
        %v553 = vld [vmem:[#allocation11 + $0xa0] sm:$0xff]
        %v554 = vld [vmem:[#allocation11 + $0xa8] sm:$0xff]
        %v555 = vld [vmem:[#allocation11 + $0xb0] sm:$0xff]
        %v556 = vld [vmem:[#allocation11 + $0xb8] sm:$0xff]
        %v557 = vld [vmem:[#allocation11 + $0xc0] sm:$0xff]
        %v558 = vld [vmem:[#allocation11 + $0xc8] sm:$0xff]
        %v559 = vld [vmem:[#allocation11 + $0xd0] sm:$0xff]
        %v560 = vld [vmem:[#allocation11 + $0xd8] sm:$0xff]
        %v561 = vld [vmem:[#allocation11 + $0xe0] sm:$0xff]
        %v562 = vld [vmem:[#allocation11 + $0xe8] sm:$0xff]
        %v563 = vld [vmem:[#allocation11 + $0xf0] sm:$0xff]
        %v564 = vld [vmem:[#allocation11 + $0xf8] sm:$0xff]
        %v565 = vld [vmem:[%s8] sm:$0xf]
        %v567 = vlaneseq
        %v568 = vshrl.u32 %v567, 7
        %v569 = vsub.s32 0, %v568
        %v570 = vrot.slane %v565, %v569
        %v571 = vlaneseq
        %v572 = vshrl.u32 %v571, 7
        %v573 = vsub.s32 1, %v572
        %v574 = vrot.slane %v565, %v573
        %v575 = vlaneseq
        %v576 = vshrl.u32 %v575, 7
        %v577 = vsub.s32 2, %v576
        %v578 = vrot.slane %v565, %v577
        %v579 = vlaneseq
        %v580 = vshrl.u32 %v579, 7
        %v581 = vsub.s32 3, %v580
        %v582 = vrot.slane %v565, %v581
        %v591 = vunpack.c.l.b16 %v529
        %v592 = vunpack.c.l.b16 %v530
        %v593 = vunpack.c.l.b16 %v531
        %v594 = vunpack.c.l.b16 %v532
        %v595 = vpack.c.b16 %v592, %v591
        %v596 = vpack.c.b16 %v594, %v593
        %v631 = vunpack.c.l.b16 %v533
        %v632 = vunpack.c.h.b16 %v533
        %v633 = vunpack.c.l.b16 %v534
        %v634 = vunpack.c.h.b16 %v534
        %v635 = vunpack.c.l.b16 %v535
        %v636 = vunpack.c.h.b16 %v535
        %v637 = vunpack.c.l.b16 %v536
        %v638 = vunpack.c.h.b16 %v536
        %v639 = vunpack.c.l.b16 %v537
        %v640 = vunpack.c.h.b16 %v537
        %v641 = vunpack.c.l.b16 %v538
        %v642 = vunpack.c.h.b16 %v538
        %v643 = vunpack.c.l.b16 %v539
        %v644 = vunpack.c.h.b16 %v539
        %v645 = vunpack.c.l.b16 %v540
        %v646 = vunpack.c.h.b16 %v540
        %v647 = vunpack.c.l.b16 %v541
        %v648 = vunpack.c.h.b16 %v541
        %v649 = vunpack.c.l.b16 %v542
        %v650 = vunpack.c.h.b16 %v542
        %v651 = vunpack.c.l.b16 %v543
        %v652 = vunpack.c.h.b16 %v543
        %v653 = vunpack.c.l.b16 %v544
        %v654 = vunpack.c.h.b16 %v544
        %v655 = vunpack.c.l.b16 %v545
        %v656 = vunpack.c.h.b16 %v545
        %v657 = vunpack.c.l.b16 %v546
        %v658 = vunpack.c.h.b16 %v546
        %v659 = vunpack.c.l.b16 %v547
        %v660 = vunpack.c.h.b16 %v547
        %v661 = vunpack.c.l.b16 %v548
        %v662 = vunpack.c.h.b16 %v548
        %v663 = vunpack.c.l.b16 %v549
        %v664 = vunpack.c.h.b16 %v549
        %v665 = vunpack.c.l.b16 %v550
        %v666 = vunpack.c.h.b16 %v550
        %v667 = vunpack.c.l.b16 %v551
        %v668 = vunpack.c.h.b16 %v551
        %v669 = vunpack.c.l.b16 %v552
        %v670 = vunpack.c.h.b16 %v552
        %v671 = vunpack.c.l.b16 %v553
        %v672 = vunpack.c.h.b16 %v553
        %v673 = vunpack.c.l.b16 %v554
        %v674 = vunpack.c.h.b16 %v554
        %v675 = vunpack.c.l.b16 %v555
        %v676 = vunpack.c.h.b16 %v555
        %v677 = vunpack.c.l.b16 %v556
        %v678 = vunpack.c.h.b16 %v556
        %v679 = vunpack.c.l.b16 %v557
        %v680 = vunpack.c.h.b16 %v557
        %v681 = vunpack.c.l.b16 %v558
        %v682 = vunpack.c.h.b16 %v558
        %v683 = vunpack.c.l.b16 %v559
        %v684 = vunpack.c.h.b16 %v559
        %v685 = vunpack.c.l.b16 %v560
        %v686 = vunpack.c.h.b16 %v560
        %v687 = vunpack.c.l.b16 %v561
        %v688 = vunpack.c.h.b16 %v561
        %v689 = vunpack.c.l.b16 %v562
        %v690 = vunpack.c.h.b16 %v562
        %v691 = vunpack.c.l.b16 %v563
        %v692 = vunpack.c.h.b16 %v563
        %v693 = vunpack.c.l.b16 %v564
        %v694 = vunpack.c.h.b16 %v564
        %v695 = vpack.c.b16 %v635, %v631
        %v696 = vpack.c.b16 %v636, %v632
        %v697 = vpack.c.b16 %v637, %v633
        %v698 = vpack.c.b16 %v638, %v634
        %v699 = vpack.c.b16 %v643, %v639
        %v700 = vpack.c.b16 %v644, %v640
        %v701 = vpack.c.b16 %v645, %v641
        %v702 = vpack.c.b16 %v646, %v642
        %v703 = vpack.c.b16 %v651, %v647
        %v704 = vpack.c.b16 %v652, %v648
        %v705 = vpack.c.b16 %v653, %v649
        %v706 = vpack.c.b16 %v654, %v650
        %v707 = vpack.c.b16 %v659, %v655
        %v708 = vpack.c.b16 %v660, %v656
        %v709 = vpack.c.b16 %v661, %v657
        %v710 = vpack.c.b16 %v662, %v658
        %v711 = vpack.c.b16 %v667, %v663
        %v712 = vpack.c.b16 %v668, %v664
        %v713 = vpack.c.b16 %v669, %v665
        %v714 = vpack.c.b16 %v670, %v666
        %v715 = vpack.c.b16 %v675, %v671
        %v716 = vpack.c.b16 %v676, %v672
        %v717 = vpack.c.b16 %v677, %v673
        %v718 = vpack.c.b16 %v678, %v674
        %v719 = vpack.c.b16 %v683, %v679
        %v720 = vpack.c.b16 %v684, %v680
        %v721 = vpack.c.b16 %v685, %v681
        %v722 = vpack.c.b16 %v686, %v682
        %v723 = vpack.c.b16 %v691, %v687
        %v724 = vpack.c.b16 %v692, %v688
        %v725 = vpack.c.b16 %v693, %v689
        %v726 = vpack.c.b16 %v694, %v690
        %759 = vmatprep.subr.bf16.mxu0 %v724
        %760 = vmatpush1.bf16.msra.mxu0 %v723
        %761 = vmatprep.subr.bf16.mxu0 %v720
        %762 = vmatpush1.bf16.msra.mxu0 %v719
        %763 = vmatprep.subr.bf16.mxu0 %v716
        %764 = vmatpush1.bf16.msra.mxu0 %v715
        %765 = vmatprep.subr.bf16.mxu0 %v712
        %766 = vmatpush1.bf16.msra.mxu0 %v711
        %767 = vmatprep.subr.bf16.mxu0 %v708
        %768 = vmatpush1.bf16.msra.mxu0 %v707
        %769 = vmatprep.subr.bf16.mxu0 %v704
        %770 = vmatpush1.bf16.msra.mxu0 %v703
        %771 = vmatprep.subr.bf16.mxu0 %v700
        %772 = vmatpush1.bf16.msra.mxu0 %v699
        %773 = vmatprep.subr.bf16.mxu0 %v696
        %774 = vmatpush1.bf16.msra.mxu0 %v695
        %775 = vmatprep.subr.bf16.mxu0 0
        %776 = vmatpush2.bf16.msra.mxu0 0
        %777 = vmatprep.subr.bf16.mxu0 0
        %778 = vmatpush2.bf16.msra.mxu0 0
        %779 = vmatprep.subr.bf16.mxu0 0
        %780 = vmatpush2.bf16.msra.mxu0 0
        %781 = vmatprep.subr.bf16.mxu0 0
        %782 = vmatpush2.bf16.msra.mxu0 0
        %783 = vmatprep.subr.bf16.mxu0 0
        %784 = vmatpush2.bf16.msra.mxu0 0
        %785 = vmatprep.subr.bf16.mxu0 0
        %786 = vmatpush2.bf16.msra.mxu0 0
        %787 = vmatprep.subr.bf16.mxu0 0
        %788 = vmatpush2.bf16.msra.mxu0 0
        %789 = vmatprep.subr.bf16.mxu0 0
        %790 = vmatpush2.bf16.msra.mxu0 0
        %791 = vmatprep.mubr.bf16.mxu0 0
        %792 = vmatmul.mubr.bf16.gmra.mxu0 %v595
        %v793 = vpop.f32.mrf.mxu0
        %v794 = vadd.f32 %v570, %v793
        %v795 = vpop.f32.mrf.mxu0
        %v796 = vadd.f32 %v574, %v795
        %v797 = vpop.f32.mrf.mxu0
        %v798 = vadd.f32 %v570, %v797
        %v799 = vpop.f32.mrf.mxu0
        %v800 = vadd.f32 %v574, %v799
        %801 = vmatprep.mubr.bf16.mxu0 0
        %802 = vmatmul.mubr.bf16.gmra.mxu0 %v596
        %v803 = vpop.f32.mrf.mxu0
        %v804 = vadd.f32 %v570, %v803
        %v805 = vpop.f32.mrf.mxu0
        %v806 = vadd.f32 %v574, %v805
        %v807 = vpop.f32.mrf.mxu0
        %v808 = vadd.f32 %v570, %v807
        %v809 = vpop.f32.mrf.mxu0
        %v810 = vadd.f32 %v574, %v809
        %811 = vdwg.mxu0
        %812 = vmatprep.subr.bf16.mxu0 %v726
        %813 = vmatpush1.bf16.msra.mxu0 %v725
        %814 = vmatprep.subr.bf16.mxu0 %v722
        %815 = vmatpush1.bf16.msra.mxu0 %v721
        %816 = vmatprep.subr.bf16.mxu0 %v718
        %817 = vmatpush1.bf16.msra.mxu0 %v717
        %818 = vmatprep.subr.bf16.mxu0 %v714
        %819 = vmatpush1.bf16.msra.mxu0 %v713
        %820 = vmatprep.subr.bf16.mxu0 %v710
        %821 = vmatpush1.bf16.msra.mxu0 %v709
        %822 = vmatprep.subr.bf16.mxu0 %v706
        %823 = vmatpush1.bf16.msra.mxu0 %v705
        %824 = vmatprep.subr.bf16.mxu0 %v702
        %825 = vmatpush1.bf16.msra.mxu0 %v701
        %826 = vmatprep.subr.bf16.mxu0 %v698
        %827 = vmatpush1.bf16.msra.mxu0 %v697
        %828 = vmatprep.subr.bf16.mxu0 0
        %829 = vmatpush2.bf16.msra.mxu0 0
        %830 = vmatprep.subr.bf16.mxu0 0
        %831 = vmatpush2.bf16.msra.mxu0 0
        %832 = vmatprep.subr.bf16.mxu0 0
        %833 = vmatpush2.bf16.msra.mxu0 0
        %834 = vmatprep.subr.bf16.mxu0 0
        %835 = vmatpush2.bf16.msra.mxu0 0
        %836 = vmatprep.subr.bf16.mxu0 0
        %837 = vmatpush2.bf16.msra.mxu0 0
        %838 = vmatprep.subr.bf16.mxu0 0
        %839 = vmatpush2.bf16.msra.mxu0 0
        %840 = vmatprep.subr.bf16.mxu0 0
        %841 = vmatpush2.bf16.msra.mxu0 0
        %842 = vmatprep.subr.bf16.mxu0 0
        %843 = vmatpush2.bf16.msra.mxu0 0
        %844 = vmatprep.mubr.bf16.mxu0 0
        %845 = vmatmul.mubr.bf16.gmra.mxu0 %v595
        %v846 = vpop.f32.mrf.mxu0
        %v847 = vadd.f32 %v578, %v846
        %v848 = vpop.f32.mrf.mxu0
        %v849 = vadd.f32 %v582, %v848
        %v850 = vpop.f32.mrf.mxu0
        %v851 = vadd.f32 %v578, %v850
        %v852 = vpop.f32.mrf.mxu0
        %v853 = vadd.f32 %v582, %v852
        %854 = vmatprep.mubr.bf16.mxu0 0
        %855 = vmatmul.mubr.bf16.gmra.mxu0 %v596
        %v856 = vpop.f32.mrf.mxu0
        %v857 = vadd.f32 %v578, %v856
        %v858 = vpop.f32.mrf.mxu0
        %v859 = vadd.f32 %v582, %v858
        %v860 = vpop.f32.mrf.mxu0
        %v861 = vadd.f32 %v578, %v860
        %v862 = vpop.f32.mrf.mxu0
        %v863 = vadd.f32 %v582, %v862
        %864 = vdwg.mxu0
        %865 = vst [vmem:[#allocation4] sm:$0xff] %v794
        %866 = vst [vmem:[#allocation4 + $0x8] sm:$0xff] %v796
        %867 = vst [vmem:[#allocation4 + $0x10] sm:$0xff] %v847
        %868 = vst [vmem:[#allocation4 + $0x18] sm:$0xff] %v849
        %869 = vst [vmem:[#allocation4 + $0x20] sm:$0xff] %v798
        %870 = vst [vmem:[#allocation4 + $0x28] sm:$0xff] %v800
        %871 = vst [vmem:[#allocation4 + $0x30] sm:$0xff] %v851
        %872 = vst [vmem:[#allocation4 + $0x38] sm:$0xff] %v853
        %873 = vst [vmem:[#allocation4 + $0x40] sm:$0xff] %v804
        %874 = vst [vmem:[#allocation4 + $0x48] sm:$0xff] %v806
        %875 = vst [vmem:[#allocation4 + $0x50] sm:$0xff] %v857
        %876 = vst [vmem:[#allocation4 + $0x58] sm:$0xff] %v859
        %877 = vst [vmem:[#allocation4 + $0x60] sm:$0xff] %v808
        %878 = vst [vmem:[#allocation4 + $0x68] sm:$0xff] %v810
        %879 = vst [vmem:[#allocation4 + $0x70] sm:$0xff] %v861
        %880 = vst [vmem:[#allocation4 + $0x78] sm:$0xff] %v863
        %v881 = vld [vmem:[%s1] sm:$0xff]
        %v882 = vld [vmem:[%s9] sm:$0xf]
        %v884 = vlaneseq
        %v885 = vshrl.u32 %v884, 7
        %v886 = vsub.s32 0, %v885
        %v887 = vrot.slane %v882, %v886
        %v888 = vlaneseq
        %v889 = vshrl.u32 %v888, 7
        %v890 = vsub.s32 1, %v889
        %v891 = vrot.slane %v882, %v890
        %v892 = vlaneseq
        %v893 = vshrl.u32 %v892, 7
        %v894 = vsub.s32 2, %v893
        %v895 = vrot.slane %v882, %v894
        %v896 = vlaneseq
        %v897 = vshrl.u32 %v896, 7
        %v898 = vsub.s32 3, %v897
        %v899 = vrot.slane %v882, %v898
        %s904 = smul.u32 %s34, 4
        %v905 = vld [vmem:[#allocation2] sm:$0xff]
        %v906 = vld [vmem:[#allocation3] sm:$0xff]
        %s907 = scalar_lea.vmem [#allocation2], 8
        %v908 = vld [vmem:[%s907] sm:$0xff]
        %s909 = scalar_lea.vmem [#allocation3], 8
        %v910 = vld [vmem:[%s909] sm:$0xff]
        %v911 = vstv %s904
        %vm912 = vcmp.gt.s32.totalorder %v881, %v911
        %v913 = vsel %vm912, 1, 0
        %914 = vset.pattern.permute.xlu0 0
        %915 = vperm.xlu0 %914, %v913
        %v916 = vpop.permute.xlu0 %915
        %vm917 = vcmp.eq.s32.totalorder %v916, 1
        %v918 = vld [vmem:[#allocation4] sm:$0xff]
        %v919 = vld [vmem:[#allocation4 + $0x8] sm:$0xff]
        %v920 = vld [vmem:[#allocation4 + $0x10] sm:$0xff]
        %v921 = vld [vmem:[#allocation4 + $0x18] sm:$0xff]
        %v922 = vpack.c.bf16 %v905, %v905
        %v923 = vld [vmem:[#allocation13] sm:$0xff]
        %v924 = vld [vmem:[#allocation13 + $0x8] sm:$0xff]
        %v925 = vld [vmem:[#allocation13 + $0x10] sm:$0xff]
        %v926 = vld [vmem:[#allocation13 + $0x18] sm:$0xff]
        %v927 = vld [vmem:[#allocation13 + $0x20] sm:$0xff]
        %v928 = vld [vmem:[#allocation13 + $0x28] sm:$0xff]
        %v929 = vld [vmem:[#allocation13 + $0x30] sm:$0xff]
        %v930 = vld [vmem:[#allocation13 + $0x38] sm:$0xff]
        %v931 = vld [vmem:[#allocation13 + $0x40] sm:$0xff]
        %v932 = vld [vmem:[#allocation13 + $0x48] sm:$0xff]
        %v933 = vld [vmem:[#allocation13 + $0x50] sm:$0xff]
        %v934 = vld [vmem:[#allocation13 + $0x58] sm:$0xff]
        %v935 = vld [vmem:[#allocation13 + $0x60] sm:$0xff]
        %v936 = vld [vmem:[#allocation13 + $0x68] sm:$0xff]
        %v937 = vld [vmem:[#allocation13 + $0x70] sm:$0xff]
        %v938 = vld [vmem:[#allocation13 + $0x78] sm:$0xff]
        %v939 = vld [vmem:[#allocation13 + $0x80] sm:$0xff]
        %v940 = vld [vmem:[#allocation13 + $0x88] sm:$0xff]
        %v941 = vld [vmem:[#allocation13 + $0x90] sm:$0xff]
        %v942 = vld [vmem:[#allocation13 + $0x98] sm:$0xff]
        %v943 = vld [vmem:[#allocation13 + $0xa0] sm:$0xff]
        %v944 = vld [vmem:[#allocation13 + $0xa8] sm:$0xff]
        %v945 = vld [vmem:[#allocation13 + $0xb0] sm:$0xff]
        %v946 = vld [vmem:[#allocation13 + $0xb8] sm:$0xff]
        %v947 = vld [vmem:[#allocation13 + $0xc0] sm:$0xff]
        %v948 = vld [vmem:[#allocation13 + $0xc8] sm:$0xff]
        %v949 = vld [vmem:[#allocation13 + $0xd0] sm:$0xff]
        %v950 = vld [vmem:[#allocation13 + $0xd8] sm:$0xff]
        %v951 = vld [vmem:[#allocation13 + $0xe0] sm:$0xff]
        %v952 = vld [vmem:[#allocation13 + $0xe8] sm:$0xff]
        %v953 = vld [vmem:[#allocation13 + $0xf0] sm:$0xff]
        %v954 = vld [vmem:[#allocation13 + $0xf8] sm:$0xff]
        %v987 = vunpack.c.l.b16 %v923
        %v988 = vunpack.c.h.b16 %v923
        %v989 = vunpack.c.l.b16 %v924
        %v990 = vunpack.c.h.b16 %v924
        %v991 = vunpack.c.l.b16 %v925
        %v992 = vunpack.c.h.b16 %v925
        %v993 = vunpack.c.l.b16 %v926
        %v994 = vunpack.c.h.b16 %v926
        %v995 = vunpack.c.l.b16 %v927
        %v996 = vunpack.c.h.b16 %v927
        %v997 = vunpack.c.l.b16 %v928
        %v998 = vunpack.c.h.b16 %v928
        %v999 = vunpack.c.l.b16 %v929
        %v1000 = vunpack.c.h.b16 %v929
        %v1001 = vunpack.c.l.b16 %v930
        %v1002 = vunpack.c.h.b16 %v930
        %v1003 = vunpack.c.l.b16 %v931
        %v1004 = vunpack.c.h.b16 %v931
        %v1005 = vunpack.c.l.b16 %v932
        %v1006 = vunpack.c.h.b16 %v932
        %v1007 = vunpack.c.l.b16 %v933
        %v1008 = vunpack.c.h.b16 %v933
        %v1009 = vunpack.c.l.b16 %v934
        %v1010 = vunpack.c.h.b16 %v934
        %v1011 = vunpack.c.l.b16 %v935
        %v1012 = vunpack.c.h.b16 %v935
        %v1013 = vunpack.c.l.b16 %v936
        %v1014 = vunpack.c.h.b16 %v936
        %v1015 = vunpack.c.l.b16 %v937
        %v1016 = vunpack.c.h.b16 %v937
        %v1017 = vunpack.c.l.b16 %v938
        %v1018 = vunpack.c.h.b16 %v938
        %v1019 = vunpack.c.l.b16 %v939
        %v1020 = vunpack.c.h.b16 %v939
        %v1021 = vunpack.c.l.b16 %v940
        %v1022 = vunpack.c.h.b16 %v940
        %v1023 = vunpack.c.l.b16 %v941
        %v1024 = vunpack.c.h.b16 %v941
        %v1025 = vunpack.c.l.b16 %v942
        %v1026 = vunpack.c.h.b16 %v942
        %v1027 = vunpack.c.l.b16 %v943
        %v1028 = vunpack.c.h.b16 %v943
        %v1029 = vunpack.c.l.b16 %v944
        %v1030 = vunpack.c.h.b16 %v944
        %v1031 = vunpack.c.l.b16 %v945
        %v1032 = vunpack.c.h.b16 %v945
        %v1033 = vunpack.c.l.b16 %v946
        %v1034 = vunpack.c.h.b16 %v946
        %v1035 = vunpack.c.l.b16 %v947
        %v1036 = vunpack.c.h.b16 %v947
        %v1037 = vunpack.c.l.b16 %v948
        %v1038 = vunpack.c.h.b16 %v948
        %v1039 = vunpack.c.l.b16 %v949
        %v1040 = vunpack.c.h.b16 %v949
        %v1041 = vunpack.c.l.b16 %v950
        %v1042 = vunpack.c.h.b16 %v950
        %v1043 = vunpack.c.l.b16 %v951
        %v1044 = vunpack.c.h.b16 %v951
        %v1045 = vunpack.c.l.b16 %v952
        %v1046 = vunpack.c.h.b16 %v952
        %v1047 = vunpack.c.l.b16 %v953
        %v1048 = vunpack.c.h.b16 %v953
        %v1049 = vunpack.c.l.b16 %v954
        %v1050 = vunpack.c.h.b16 %v954
        %v1051 = vpack.c.b16 %v991, %v987
        %v1052 = vpack.c.b16 %v992, %v988
        %v1053 = vpack.c.b16 %v993, %v989
        %v1054 = vpack.c.b16 %v994, %v990
        %v1055 = vpack.c.b16 %v999, %v995
        %v1056 = vpack.c.b16 %v1000, %v996
        %v1057 = vpack.c.b16 %v1001, %v997
        %v1058 = vpack.c.b16 %v1002, %v998
        %v1059 = vpack.c.b16 %v1007, %v1003
        %v1060 = vpack.c.b16 %v1008, %v1004
        %v1061 = vpack.c.b16 %v1009, %v1005
        %v1062 = vpack.c.b16 %v1010, %v1006
        %v1063 = vpack.c.b16 %v1015, %v1011
        %v1064 = vpack.c.b16 %v1016, %v1012
        %v1065 = vpack.c.b16 %v1017, %v1013
        %v1066 = vpack.c.b16 %v1018, %v1014
        %v1067 = vpack.c.b16 %v1023, %v1019
        %v1068 = vpack.c.b16 %v1024, %v1020
        %v1069 = vpack.c.b16 %v1025, %v1021
        %v1070 = vpack.c.b16 %v1026, %v1022
        %v1071 = vpack.c.b16 %v1031, %v1027
        %v1072 = vpack.c.b16 %v1032, %v1028
        %v1073 = vpack.c.b16 %v1033, %v1029
        %v1074 = vpack.c.b16 %v1034, %v1030
        %v1075 = vpack.c.b16 %v1039, %v1035
        %v1076 = vpack.c.b16 %v1040, %v1036
        %v1077 = vpack.c.b16 %v1041, %v1037
        %v1078 = vpack.c.b16 %v1042, %v1038
        %v1079 = vpack.c.b16 %v1047, %v1043
        %v1080 = vpack.c.b16 %v1048, %v1044
        %v1081 = vpack.c.b16 %v1049, %v1045
        %v1082 = vpack.c.b16 %v1050, %v1046
        %1115 = vmatprep.subr.bf16.mxu0 %v1080
        %1116 = vmatpush1.bf16.msra.mxu0 %v1079
        %1117 = vmatprep.subr.bf16.mxu0 %v1076
        %1118 = vmatpush1.bf16.msra.mxu0 %v1075
        %1119 = vmatprep.subr.bf16.mxu0 %v1072
        %1120 = vmatpush1.bf16.msra.mxu0 %v1071
        %1121 = vmatprep.subr.bf16.mxu0 %v1068
        %1122 = vmatpush1.bf16.msra.mxu0 %v1067
        %1123 = vmatprep.subr.bf16.mxu0 %v1064
        %1124 = vmatpush1.bf16.msra.mxu0 %v1063
        %1125 = vmatprep.subr.bf16.mxu0 %v1060
        %1126 = vmatpush1.bf16.msra.mxu0 %v1059
        %1127 = vmatprep.subr.bf16.mxu0 %v1056
        %1128 = vmatpush1.bf16.msra.mxu0 %v1055
        %1129 = vmatprep.subr.bf16.mxu0 %v1052
        %1130 = vmatpush1.bf16.msra.mxu0 %v1051
        %1131 = vmatprep.subr.bf16.mxu0 0
        %1132 = vmatpush2.bf16.msra.mxu0 0
        %1133 = vmatprep.subr.bf16.mxu0 0
        %1134 = vmatpush2.bf16.msra.mxu0 0
        %1135 = vmatprep.subr.bf16.mxu0 0
        %1136 = vmatpush2.bf16.msra.mxu0 0
        %1137 = vmatprep.subr.bf16.mxu0 0
        %1138 = vmatpush2.bf16.msra.mxu0 0
        %1139 = vmatprep.subr.bf16.mxu0 0
        %1140 = vmatpush2.bf16.msra.mxu0 0
        %1141 = vmatprep.subr.bf16.mxu0 0
        %1142 = vmatpush2.bf16.msra.mxu0 0
        %1143 = vmatprep.subr.bf16.mxu0 0
        %1144 = vmatpush2.bf16.msra.mxu0 0
        %1145 = vmatprep.subr.bf16.mxu0 0
        %1146 = vmatpush2.bf16.msra.mxu0 0
        %1147 = vmatprep.mubr.bf16.mxu0 0
        %1148 = vmatmul.mubr.bf16.gmra.mxu0 %v922
        %v1149 = vpop.f32.mrf.mxu0
        %v1150 = vadd.f32 0.0, %v1149
        %v1151 = vpop.f32.mrf.mxu0
        %v1152 = vadd.f32 0.0, %v1151
        %v1153 = vpop.f32.mrf.mxu0
        %v1154 = vpop.f32.mrf.mxu0
        %1155 = vdwg.mxu0
        %1156 = vmatprep.subr.bf16.mxu0 %v1082
        %1157 = vmatpush1.bf16.msra.mxu0 %v1081
        %1158 = vmatprep.subr.bf16.mxu0 %v1078
        %1159 = vmatpush1.bf16.msra.mxu0 %v1077
        %1160 = vmatprep.subr.bf16.mxu0 %v1074
        %1161 = vmatpush1.bf16.msra.mxu0 %v1073
        %1162 = vmatprep.subr.bf16.mxu0 %v1070
        %1163 = vmatpush1.bf16.msra.mxu0 %v1069
        %1164 = vmatprep.subr.bf16.mxu0 %v1066
        %1165 = vmatpush1.bf16.msra.mxu0 %v1065
        %1166 = vmatprep.subr.bf16.mxu0 %v1062
        %1167 = vmatpush1.bf16.msra.mxu0 %v1061
        %1168 = vmatprep.subr.bf16.mxu0 %v1058
        %1169 = vmatpush1.bf16.msra.mxu0 %v1057
        %1170 = vmatprep.subr.bf16.mxu0 %v1054
        %1171 = vmatpush1.bf16.msra.mxu0 %v1053
        %1172 = vmatprep.subr.bf16.mxu0 0
        %1173 = vmatpush2.bf16.msra.mxu0 0
        %1174 = vmatprep.subr.bf16.mxu0 0
        %1175 = vmatpush2.bf16.msra.mxu0 0
        %1176 = vmatprep.subr.bf16.mxu0 0
        %1177 = vmatpush2.bf16.msra.mxu0 0
        %1178 = vmatprep.subr.bf16.mxu0 0
        %1179 = vmatpush2.bf16.msra.mxu0 0
        %1180 = vmatprep.subr.bf16.mxu0 0
        %1181 = vmatpush2.bf16.msra.mxu0 0
        %1182 = vmatprep.subr.bf16.mxu0 0
        %1183 = vmatpush2.bf16.msra.mxu0 0
        %1184 = vmatprep.subr.bf16.mxu0 0
        %1185 = vmatpush2.bf16.msra.mxu0 0
        %1186 = vmatprep.subr.bf16.mxu0 0
        %1187 = vmatpush2.bf16.msra.mxu0 0
        %1188 = vmatprep.mubr.bf16.mxu0 0
        %1189 = vmatmul.mubr.bf16.gmra.mxu0 %v922
        %v1190 = vpop.f32.mrf.mxu0
        %v1191 = vadd.f32 0.0, %v1190
        %v1192 = vpop.f32.mrf.mxu0
        %v1193 = vadd.f32 0.0, %v1192
        %v1194 = vpop.f32.mrf.mxu0
        %v1195 = vpop.f32.mrf.mxu0
        %1196 = vdwg.mxu0
        %v1197 = vadd.f32 %v918, %v1150
        %v1198 = vadd.f32 %v919, %v1152
        %v1199 = vadd.f32 %v920, %v1191
        %v1200 = vadd.f32 %v921, %v1193
        %v1201 = vxor.u32 %v1197, 2147483648
        %v1202 = vmul.f32 %v1201, 1.442695
        %v1203 = vpow.pop %v1202
        %v1204 = vadd.f32 %v1203, 1.0
        %v1205 = vrcp.pop %v1204
        %v1206 = vmul.f32 1.0, %v1205
        %v1207 = vxor.u32 %v1198, 2147483648
        %v1208 = vmul.f32 %v1207, 1.442695
        %v1209 = vpow.pop %v1208
        %v1210 = vadd.f32 %v1209, 1.0
        %v1211 = vrcp.pop %v1210
        %v1212 = vmul.f32 1.0, %v1211
        %v1213 = vtanh.pop %v1199
        %v1214 = vxor.u32 %v1200, 2147483648
        %v1215 = vmul.f32 %v1214, 1.442695
        %v1216 = vpow.pop %v1215
        %v1217 = vadd.f32 %v1216, 1.0
        %v1218 = vrcp.pop %v1217
        %v1219 = vmul.f32 1.0, %v1218
        %v1220 = vmul.f32 %v1212, %v906
        %v1221 = vmul.f32 %v1206, %v1213
        %v1222 = vadd.f32 %v1220, %v1221
        %v1223 = vtanh.pop %v1222
        %v1224 = vmul.f32 %v1219, %v1223
        %v1225 = vsel %vm917, %v1222, %v906
        %v1226 = vsel %vm917, %v1224, %v905
        %v1227 = vpack.c.bf16 %v1224, %v1224
        %v1228 = vld [vmem:[#allocation14] sm:$0xff]
        %v1229 = vld [vmem:[#allocation14 + $0x8] sm:$0xff]
        %v1230 = vld [vmem:[#allocation14 + $0x10] sm:$0xff]
        %v1231 = vld [vmem:[#allocation14 + $0x18] sm:$0xff]
        %v1232 = vld [vmem:[#allocation14 + $0x20] sm:$0xff]
        %v1233 = vld [vmem:[#allocation14 + $0x28] sm:$0xff]
        %v1234 = vld [vmem:[#allocation14 + $0x30] sm:$0xff]
        %v1235 = vld [vmem:[#allocation14 + $0x38] sm:$0xff]
        %v1236 = vld [vmem:[#allocation14 + $0x40] sm:$0xff]
        %v1237 = vld [vmem:[#allocation14 + $0x48] sm:$0xff]
        %v1238 = vld [vmem:[#allocation14 + $0x50] sm:$0xff]
        %v1239 = vld [vmem:[#allocation14 + $0x58] sm:$0xff]
        %v1240 = vld [vmem:[#allocation14 + $0x60] sm:$0xff]
        %v1241 = vld [vmem:[#allocation14 + $0x68] sm:$0xff]
        %v1242 = vld [vmem:[#allocation14 + $0x70] sm:$0xff]
        %v1243 = vld [vmem:[#allocation14 + $0x78] sm:$0xff]
        %v1244 = vld [vmem:[#allocation14 + $0x80] sm:$0xff]
        %v1245 = vld [vmem:[#allocation14 + $0x88] sm:$0xff]
        %v1246 = vld [vmem:[#allocation14 + $0x90] sm:$0xff]
        %v1247 = vld [vmem:[#allocation14 + $0x98] sm:$0xff]
        %v1248 = vld [vmem:[#allocation14 + $0xa0] sm:$0xff]
        %v1249 = vld [vmem:[#allocation14 + $0xa8] sm:$0xff]
        %v1250 = vld [vmem:[#allocation14 + $0xb0] sm:$0xff]
        %v1251 = vld [vmem:[#allocation14 + $0xb8] sm:$0xff]
        %v1252 = vld [vmem:[#allocation14 + $0xc0] sm:$0xff]
        %v1253 = vld [vmem:[#allocation14 + $0xc8] sm:$0xff]
        %v1254 = vld [vmem:[#allocation14 + $0xd0] sm:$0xff]
        %v1255 = vld [vmem:[#allocation14 + $0xd8] sm:$0xff]
        %v1256 = vld [vmem:[#allocation14 + $0xe0] sm:$0xff]
        %v1257 = vld [vmem:[#allocation14 + $0xe8] sm:$0xff]
        %v1258 = vld [vmem:[#allocation14 + $0xf0] sm:$0xff]
        %v1259 = vld [vmem:[#allocation14 + $0xf8] sm:$0xff]
        %v1260 = vpack.c.bf16 %v908, %v908
        %v1261 = vld [vmem:[#allocation16] sm:$0xff]
        %v1262 = vld [vmem:[#allocation16 + $0x8] sm:$0xff]
        %v1263 = vld [vmem:[#allocation16 + $0x10] sm:$0xff]
        %v1264 = vld [vmem:[#allocation16 + $0x18] sm:$0xff]
        %v1265 = vld [vmem:[#allocation16 + $0x20] sm:$0xff]
        %v1266 = vld [vmem:[#allocation16 + $0x28] sm:$0xff]
        %v1267 = vld [vmem:[#allocation16 + $0x30] sm:$0xff]
        %v1268 = vld [vmem:[#allocation16 + $0x38] sm:$0xff]
        %v1269 = vld [vmem:[#allocation16 + $0x40] sm:$0xff]
        %v1270 = vld [vmem:[#allocation16 + $0x48] sm:$0xff]
        %v1271 = vld [vmem:[#allocation16 + $0x50] sm:$0xff]
        %v1272 = vld [vmem:[#allocation16 + $0x58] sm:$0xff]
        %v1273 = vld [vmem:[#allocation16 + $0x60] sm:$0xff]
        %v1274 = vld [vmem:[#allocation16 + $0x68] sm:$0xff]
        %v1275 = vld [vmem:[#allocation16 + $0x70] sm:$0xff]
        %v1276 = vld [vmem:[#allocation16 + $0x78] sm:$0xff]
        %v1277 = vld [vmem:[#allocation16 + $0x80] sm:$0xff]
        %v1278 = vld [vmem:[#allocation16 + $0x88] sm:$0xff]
        %v1279 = vld [vmem:[#allocation16 + $0x90] sm:$0xff]
        %v1280 = vld [vmem:[#allocation16 + $0x98] sm:$0xff]
        %v1281 = vld [vmem:[#allocation16 + $0xa0] sm:$0xff]
        %v1282 = vld [vmem:[#allocation16 + $0xa8] sm:$0xff]
        %v1283 = vld [vmem:[#allocation16 + $0xb0] sm:$0xff]
        %v1284 = vld [vmem:[#allocation16 + $0xb8] sm:$0xff]
        %v1285 = vld [vmem:[#allocation16 + $0xc0] sm:$0xff]
        %v1286 = vld [vmem:[#allocation16 + $0xc8] sm:$0xff]
        %v1287 = vld [vmem:[#allocation16 + $0xd0] sm:$0xff]
        %v1288 = vld [vmem:[#allocation16 + $0xd8] sm:$0xff]
        %v1289 = vld [vmem:[#allocation16 + $0xe0] sm:$0xff]
        %v1290 = vld [vmem:[#allocation16 + $0xe8] sm:$0xff]
        %v1291 = vld [vmem:[#allocation16 + $0xf0] sm:$0xff]
        %v1292 = vld [vmem:[#allocation16 + $0xf8] sm:$0xff]
        %v1325 = vunpack.c.l.b16 %v1261
        %v1326 = vunpack.c.h.b16 %v1261
        %v1327 = vunpack.c.l.b16 %v1262
        %v1328 = vunpack.c.h.b16 %v1262
        %v1329 = vunpack.c.l.b16 %v1263
        %v1330 = vunpack.c.h.b16 %v1263
        %v1331 = vunpack.c.l.b16 %v1264
        %v1332 = vunpack.c.h.b16 %v1264
        %v1333 = vunpack.c.l.b16 %v1265
        %v1334 = vunpack.c.h.b16 %v1265
        %v1335 = vunpack.c.l.b16 %v1266
        %v1336 = vunpack.c.h.b16 %v1266
        %v1337 = vunpack.c.l.b16 %v1267
        %v1338 = vunpack.c.h.b16 %v1267
        %v1339 = vunpack.c.l.b16 %v1268
        %v1340 = vunpack.c.h.b16 %v1268
        %v1341 = vunpack.c.l.b16 %v1269
        %v1342 = vunpack.c.h.b16 %v1269
        %v1343 = vunpack.c.l.b16 %v1270
        %v1344 = vunpack.c.h.b16 %v1270
        %v1345 = vunpack.c.l.b16 %v1271
        %v1346 = vunpack.c.h.b16 %v1271
        %v1347 = vunpack.c.l.b16 %v1272
        %v1348 = vunpack.c.h.b16 %v1272
        %v1349 = vunpack.c.l.b16 %v1273
        %v1350 = vunpack.c.h.b16 %v1273
        %v1351 = vunpack.c.l.b16 %v1274
        %v1352 = vunpack.c.h.b16 %v1274
        %v1353 = vunpack.c.l.b16 %v1275
        %v1354 = vunpack.c.h.b16 %v1275
        %v1355 = vunpack.c.l.b16 %v1276
        %v1356 = vunpack.c.h.b16 %v1276
        %v1357 = vunpack.c.l.b16 %v1277
        %v1358 = vunpack.c.h.b16 %v1277
        %v1359 = vunpack.c.l.b16 %v1278
        %v1360 = vunpack.c.h.b16 %v1278
        %v1361 = vunpack.c.l.b16 %v1279
        %v1362 = vunpack.c.h.b16 %v1279
        %v1363 = vunpack.c.l.b16 %v1280
        %v1364 = vunpack.c.h.b16 %v1280
        %v1365 = vunpack.c.l.b16 %v1281
        %v1366 = vunpack.c.h.b16 %v1281
        %v1367 = vunpack.c.l.b16 %v1282
        %v1368 = vunpack.c.h.b16 %v1282
        %v1369 = vunpack.c.l.b16 %v1283
        %v1370 = vunpack.c.h.b16 %v1283
        %v1371 = vunpack.c.l.b16 %v1284
        %v1372 = vunpack.c.h.b16 %v1284
        %v1373 = vunpack.c.l.b16 %v1285
        %v1374 = vunpack.c.h.b16 %v1285
        %v1375 = vunpack.c.l.b16 %v1286
        %v1376 = vunpack.c.h.b16 %v1286
        %v1377 = vunpack.c.l.b16 %v1287
        %v1378 = vunpack.c.h.b16 %v1287
        %v1379 = vunpack.c.l.b16 %v1288
        %v1380 = vunpack.c.h.b16 %v1288
        %v1381 = vunpack.c.l.b16 %v1289
        %v1382 = vunpack.c.h.b16 %v1289
        %v1383 = vunpack.c.l.b16 %v1290
        %v1384 = vunpack.c.h.b16 %v1290
        %v1385 = vunpack.c.l.b16 %v1291
        %v1386 = vunpack.c.h.b16 %v1291
        %v1387 = vunpack.c.l.b16 %v1292
        %v1388 = vunpack.c.h.b16 %v1292
        %v1389 = vpack.c.b16 %v1329, %v1325
        %v1390 = vpack.c.b16 %v1330, %v1326
        %v1391 = vpack.c.b16 %v1331, %v1327
        %v1392 = vpack.c.b16 %v1332, %v1328
        %v1393 = vpack.c.b16 %v1337, %v1333
        %v1394 = vpack.c.b16 %v1338, %v1334
        %v1395 = vpack.c.b16 %v1339, %v1335
        %v1396 = vpack.c.b16 %v1340, %v1336
        %v1397 = vpack.c.b16 %v1345, %v1341
        %v1398 = vpack.c.b16 %v1346, %v1342
        %v1399 = vpack.c.b16 %v1347, %v1343
        %v1400 = vpack.c.b16 %v1348, %v1344
        %v1401 = vpack.c.b16 %v1353, %v1349
        %v1402 = vpack.c.b16 %v1354, %v1350
        %v1403 = vpack.c.b16 %v1355, %v1351
        %v1404 = vpack.c.b16 %v1356, %v1352
        %v1405 = vpack.c.b16 %v1361, %v1357
        %v1406 = vpack.c.b16 %v1362, %v1358
        %v1407 = vpack.c.b16 %v1363, %v1359
        %v1408 = vpack.c.b16 %v1364, %v1360
        %v1409 = vpack.c.b16 %v1369, %v1365
        %v1410 = vpack.c.b16 %v1370, %v1366
        %v1411 = vpack.c.b16 %v1371, %v1367
        %v1412 = vpack.c.b16 %v1372, %v1368
        %v1413 = vpack.c.b16 %v1377, %v1373
        %v1414 = vpack.c.b16 %v1378, %v1374
        %v1415 = vpack.c.b16 %v1379, %v1375
        %v1416 = vpack.c.b16 %v1380, %v1376
        %v1417 = vpack.c.b16 %v1385, %v1381
        %v1418 = vpack.c.b16 %v1386, %v1382
        %v1419 = vpack.c.b16 %v1387, %v1383
        %v1420 = vpack.c.b16 %v1388, %v1384
        %1453 = vmatprep.subr.bf16.mxu0 %v1418
        %1454 = vmatpush1.bf16.msra.mxu0 %v1417
        %1455 = vmatprep.subr.bf16.mxu0 %v1414
        %1456 = vmatpush1.bf16.msra.mxu0 %v1413
        %1457 = vmatprep.subr.bf16.mxu0 %v1410
        %1458 = vmatpush1.bf16.msra.mxu0 %v1409
        %1459 = vmatprep.subr.bf16.mxu0 %v1406
        %1460 = vmatpush1.bf16.msra.mxu0 %v1405
        %1461 = vmatprep.subr.bf16.mxu0 %v1402
        %1462 = vmatpush1.bf16.msra.mxu0 %v1401
        %1463 = vmatprep.subr.bf16.mxu0 %v1398
        %1464 = vmatpush1.bf16.msra.mxu0 %v1397
        %1465 = vmatprep.subr.bf16.mxu0 %v1394
        %1466 = vmatpush1.bf16.msra.mxu0 %v1393
        %1467 = vmatprep.subr.bf16.mxu0 %v1390
        %1468 = vmatpush1.bf16.msra.mxu0 %v1389
        %1469 = vmatprep.subr.bf16.mxu0 0
        %1470 = vmatpush2.bf16.msra.mxu0 0
        %1471 = vmatprep.subr.bf16.mxu0 0
        %1472 = vmatpush2.bf16.msra.mxu0 0
        %1473 = vmatprep.subr.bf16.mxu0 0
        %1474 = vmatpush2.bf16.msra.mxu0 0
        %1475 = vmatprep.subr.bf16.mxu0 0
        %1476 = vmatpush2.bf16.msra.mxu0 0
        %1477 = vmatprep.subr.bf16.mxu0 0
        %1478 = vmatpush2.bf16.msra.mxu0 0
        %1479 = vmatprep.subr.bf16.mxu0 0
        %1480 = vmatpush2.bf16.msra.mxu0 0
        %1481 = vmatprep.subr.bf16.mxu0 0
        %1482 = vmatpush2.bf16.msra.mxu0 0
        %1483 = vmatprep.subr.bf16.mxu0 0
        %1484 = vmatpush2.bf16.msra.mxu0 0
        %1485 = vmatprep.mubr.bf16.mxu0 0
        %1486 = vmatmul.mubr.bf16.gmra.mxu0 %v1260
        %v1487 = vpop.f32.mrf.mxu0
        %v1488 = vadd.f32 0.0, %v1487
        %v1489 = vpop.f32.mrf.mxu0
        %v1490 = vadd.f32 0.0, %v1489
        %v1491 = vpop.f32.mrf.mxu0
        %v1492 = vpop.f32.mrf.mxu0
        %1493 = vdwg.mxu0
        %1494 = vmatprep.subr.bf16.mxu0 %v1420
        %1495 = vmatpush1.bf16.msra.mxu0 %v1419
        %1496 = vmatprep.subr.bf16.mxu0 %v1416
        %1497 = vmatpush1.bf16.msra.mxu0 %v1415
        %1498 = vmatprep.subr.bf16.mxu0 %v1412
        %1499 = vmatpush1.bf16.msra.mxu0 %v1411
        %1500 = vmatprep.subr.bf16.mxu0 %v1408
        %1501 = vmatpush1.bf16.msra.mxu0 %v1407
        %1502 = vmatprep.subr.bf16.mxu0 %v1404
        %1503 = vmatpush1.bf16.msra.mxu0 %v1403
        %1504 = vmatprep.subr.bf16.mxu0 %v1400
        %1505 = vmatpush1.bf16.msra.mxu0 %v1399
        %1506 = vmatprep.subr.bf16.mxu0 %v1396
        %1507 = vmatpush1.bf16.msra.mxu0 %v1395
        %1508 = vmatprep.subr.bf16.mxu0 %v1392
        %1509 = vmatpush1.bf16.msra.mxu0 %v1391
        %1510 = vmatprep.subr.bf16.mxu0 0
        %1511 = vmatpush2.bf16.msra.mxu0 0
        %1512 = vmatprep.subr.bf16.mxu0 0
        %1513 = vmatpush2.bf16.msra.mxu0 0
        %1514 = vmatprep.subr.bf16.mxu0 0
        %1515 = vmatpush2.bf16.msra.mxu0 0
        %1516 = vmatprep.subr.bf16.mxu0 0
        %1517 = vmatpush2.bf16.msra.mxu0 0
        %1518 = vmatprep.subr.bf16.mxu0 0
        %1519 = vmatpush2.bf16.msra.mxu0 0
        %1520 = vmatprep.subr.bf16.mxu0 0
        %1521 = vmatpush2.bf16.msra.mxu0 0
        %1522 = vmatprep.subr.bf16.mxu0 0
        %1523 = vmatpush2.bf16.msra.mxu0 0
        %1524 = vmatprep.subr.bf16.mxu0 0
        %1525 = vmatpush2.bf16.msra.mxu0 0
        %1526 = vmatprep.mubr.bf16.mxu0 0
        %1527 = vmatmul.mubr.bf16.gmra.mxu0 %v1260
        %v1528 = vpop.f32.mrf.mxu0
        %v1529 = vadd.f32 0.0, %v1528
        %v1530 = vpop.f32.mrf.mxu0
        %v1531 = vadd.f32 0.0, %v1530
        %v1532 = vpop.f32.mrf.mxu0
        %v1533 = vpop.f32.mrf.mxu0
        %1534 = vdwg.mxu0
        %v1567 = vunpack.c.l.b16 %v1228
        %v1568 = vunpack.c.h.b16 %v1228
        %v1569 = vunpack.c.l.b16 %v1229
        %v1570 = vunpack.c.h.b16 %v1229
        %v1571 = vunpack.c.l.b16 %v1230
        %v1572 = vunpack.c.h.b16 %v1230
        %v1573 = vunpack.c.l.b16 %v1231
        %v1574 = vunpack.c.h.b16 %v1231
        %v1575 = vunpack.c.l.b16 %v1232
        %v1576 = vunpack.c.h.b16 %v1232
        %v1577 = vunpack.c.l.b16 %v1233
        %v1578 = vunpack.c.h.b16 %v1233
        %v1579 = vunpack.c.l.b16 %v1234
        %v1580 = vunpack.c.h.b16 %v1234
        %v1581 = vunpack.c.l.b16 %v1235
        %v1582 = vunpack.c.h.b16 %v1235
        %v1583 = vunpack.c.l.b16 %v1236
        %v1584 = vunpack.c.h.b16 %v1236
        %v1585 = vunpack.c.l.b16 %v1237
        %v1586 = vunpack.c.h.b16 %v1237
        %v1587 = vunpack.c.l.b16 %v1238
        %v1588 = vunpack.c.h.b16 %v1238
        %v1589 = vunpack.c.l.b16 %v1239
        %v1590 = vunpack.c.h.b16 %v1239
        %v1591 = vunpack.c.l.b16 %v1240
        %v1592 = vunpack.c.h.b16 %v1240
        %v1593 = vunpack.c.l.b16 %v1241
        %v1594 = vunpack.c.h.b16 %v1241
        %v1595 = vunpack.c.l.b16 %v1242
        %v1596 = vunpack.c.h.b16 %v1242
        %v1597 = vunpack.c.l.b16 %v1243
        %v1598 = vunpack.c.h.b16 %v1243
        %v1599 = vunpack.c.l.b16 %v1244
        %v1600 = vunpack.c.h.b16 %v1244
        %v1601 = vunpack.c.l.b16 %v1245
        %v1602 = vunpack.c.h.b16 %v1245
        %v1603 = vunpack.c.l.b16 %v1246
        %v1604 = vunpack.c.h.b16 %v1246
        %v1605 = vunpack.c.l.b16 %v1247
        %v1606 = vunpack.c.h.b16 %v1247
        %v1607 = vunpack.c.l.b16 %v1248
        %v1608 = vunpack.c.h.b16 %v1248
        %v1609 = vunpack.c.l.b16 %v1249
        %v1610 = vunpack.c.h.b16 %v1249
        %v1611 = vunpack.c.l.b16 %v1250
        %v1612 = vunpack.c.h.b16 %v1250
        %v1613 = vunpack.c.l.b16 %v1251
        %v1614 = vunpack.c.h.b16 %v1251
        %v1615 = vunpack.c.l.b16 %v1252
        %v1616 = vunpack.c.h.b16 %v1252
        %v1617 = vunpack.c.l.b16 %v1253
        %v1618 = vunpack.c.h.b16 %v1253
        %v1619 = vunpack.c.l.b16 %v1254
        %v1620 = vunpack.c.h.b16 %v1254
        %v1621 = vunpack.c.l.b16 %v1255
        %v1622 = vunpack.c.h.b16 %v1255
        %v1623 = vunpack.c.l.b16 %v1256
        %v1624 = vunpack.c.h.b16 %v1256
        %v1625 = vunpack.c.l.b16 %v1257
        %v1626 = vunpack.c.h.b16 %v1257
        %v1627 = vunpack.c.l.b16 %v1258
        %v1628 = vunpack.c.h.b16 %v1258
        %v1629 = vunpack.c.l.b16 %v1259
        %v1630 = vunpack.c.h.b16 %v1259
        %v1631 = vpack.c.b16 %v1571, %v1567
        %v1632 = vpack.c.b16 %v1572, %v1568
        %v1633 = vpack.c.b16 %v1573, %v1569
        %v1634 = vpack.c.b16 %v1574, %v1570
        %v1635 = vpack.c.b16 %v1579, %v1575
        %v1636 = vpack.c.b16 %v1580, %v1576
        %v1637 = vpack.c.b16 %v1581, %v1577
        %v1638 = vpack.c.b16 %v1582, %v1578
        %v1639 = vpack.c.b16 %v1587, %v1583
        %v1640 = vpack.c.b16 %v1588, %v1584
        %v1641 = vpack.c.b16 %v1589, %v1585
        %v1642 = vpack.c.b16 %v1590, %v1586
        %v1643 = vpack.c.b16 %v1595, %v1591
        %v1644 = vpack.c.b16 %v1596, %v1592
        %v1645 = vpack.c.b16 %v1597, %v1593
        %v1646 = vpack.c.b16 %v1598, %v1594
        %v1647 = vpack.c.b16 %v1603, %v1599
        %v1648 = vpack.c.b16 %v1604, %v1600
        %v1649 = vpack.c.b16 %v1605, %v1601
        %v1650 = vpack.c.b16 %v1606, %v1602
        %v1651 = vpack.c.b16 %v1611, %v1607
        %v1652 = vpack.c.b16 %v1612, %v1608
        %v1653 = vpack.c.b16 %v1613, %v1609
        %v1654 = vpack.c.b16 %v1614, %v1610
        %v1655 = vpack.c.b16 %v1619, %v1615
        %v1656 = vpack.c.b16 %v1620, %v1616
        %v1657 = vpack.c.b16 %v1621, %v1617
        %v1658 = vpack.c.b16 %v1622, %v1618
        %v1659 = vpack.c.b16 %v1627, %v1623
        %v1660 = vpack.c.b16 %v1628, %v1624
        %v1661 = vpack.c.b16 %v1629, %v1625
        %v1662 = vpack.c.b16 %v1630, %v1626
        %1695 = vmatprep.subr.bf16.mxu0 %v1660
        %1696 = vmatpush1.bf16.msra.mxu0 %v1659
        %1697 = vmatprep.subr.bf16.mxu0 %v1656
        %1698 = vmatpush1.bf16.msra.mxu0 %v1655
        %1699 = vmatprep.subr.bf16.mxu0 %v1652
        %1700 = vmatpush1.bf16.msra.mxu0 %v1651
        %1701 = vmatprep.subr.bf16.mxu0 %v1648
        %1702 = vmatpush1.bf16.msra.mxu0 %v1647
        %1703 = vmatprep.subr.bf16.mxu0 %v1644
        %1704 = vmatpush1.bf16.msra.mxu0 %v1643
        %1705 = vmatprep.subr.bf16.mxu0 %v1640
        %1706 = vmatpush1.bf16.msra.mxu0 %v1639
        %1707 = vmatprep.subr.bf16.mxu0 %v1636
        %1708 = vmatpush1.bf16.msra.mxu0 %v1635
        %1709 = vmatprep.subr.bf16.mxu0 %v1632
        %1710 = vmatpush1.bf16.msra.mxu0 %v1631
        %1711 = vmatprep.subr.bf16.mxu0 0
        %1712 = vmatpush2.bf16.msra.mxu0 0
        %1713 = vmatprep.subr.bf16.mxu0 0
        %1714 = vmatpush2.bf16.msra.mxu0 0
        %1715 = vmatprep.subr.bf16.mxu0 0
        %1716 = vmatpush2.bf16.msra.mxu0 0
        %1717 = vmatprep.subr.bf16.mxu0 0
        %1718 = vmatpush2.bf16.msra.mxu0 0
        %1719 = vmatprep.subr.bf16.mxu0 0
        %1720 = vmatpush2.bf16.msra.mxu0 0
        %1721 = vmatprep.subr.bf16.mxu0 0
        %1722 = vmatpush2.bf16.msra.mxu0 0
        %1723 = vmatprep.subr.bf16.mxu0 0
        %1724 = vmatpush2.bf16.msra.mxu0 0
        %1725 = vmatprep.subr.bf16.mxu0 0
        %1726 = vmatpush2.bf16.msra.mxu0 0
        %1727 = vmatprep.mubr.bf16.mxu0 0
        %1728 = vmatmul.mubr.bf16.gmra.mxu0 %v1227
        %v1729 = vpop.f32.mrf.mxu0
        %v1730 = vadd.f32 %v1488, %v1729
        %v1731 = vpop.f32.mrf.mxu0
        %v1732 = vadd.f32 %v1490, %v1731
        %v1733 = vpop.f32.mrf.mxu0
        %v1734 = vpop.f32.mrf.mxu0
        %1735 = vdwg.mxu0
        %1736 = vmatprep.subr.bf16.mxu0 %v1662
        %1737 = vmatpush1.bf16.msra.mxu0 %v1661
        %1738 = vmatprep.subr.bf16.mxu0 %v1658
        %1739 = vmatpush1.bf16.msra.mxu0 %v1657
        %1740 = vmatprep.subr.bf16.mxu0 %v1654
        %1741 = vmatpush1.bf16.msra.mxu0 %v1653
        %1742 = vmatprep.subr.bf16.mxu0 %v1650
        %1743 = vmatpush1.bf16.msra.mxu0 %v1649
        %1744 = vmatprep.subr.bf16.mxu0 %v1646
        %1745 = vmatpush1.bf16.msra.mxu0 %v1645
        %1746 = vmatprep.subr.bf16.mxu0 %v1642
        %1747 = vmatpush1.bf16.msra.mxu0 %v1641
        %1748 = vmatprep.subr.bf16.mxu0 %v1638
        %1749 = vmatpush1.bf16.msra.mxu0 %v1637
        %1750 = vmatprep.subr.bf16.mxu0 %v1634
        %1751 = vmatpush1.bf16.msra.mxu0 %v1633
        %1752 = vmatprep.subr.bf16.mxu0 0
        %1753 = vmatpush2.bf16.msra.mxu0 0
        %1754 = vmatprep.subr.bf16.mxu0 0
        %1755 = vmatpush2.bf16.msra.mxu0 0
        %1756 = vmatprep.subr.bf16.mxu0 0
        %1757 = vmatpush2.bf16.msra.mxu0 0
        %1758 = vmatprep.subr.bf16.mxu0 0
        %1759 = vmatpush2.bf16.msra.mxu0 0
        %1760 = vmatprep.subr.bf16.mxu0 0
        %1761 = vmatpush2.bf16.msra.mxu0 0
        %1762 = vmatprep.subr.bf16.mxu0 0
        %1763 = vmatpush2.bf16.msra.mxu0 0
        %1764 = vmatprep.subr.bf16.mxu0 0
        %1765 = vmatpush2.bf16.msra.mxu0 0
        %1766 = vmatprep.subr.bf16.mxu0 0
        %1767 = vmatpush2.bf16.msra.mxu0 0
        %1768 = vmatprep.mubr.bf16.mxu0 0
        %1769 = vmatmul.mubr.bf16.gmra.mxu0 %v1227
        %v1770 = vpop.f32.mrf.mxu0
        %v1771 = vadd.f32 %v1529, %v1770
        %v1772 = vpop.f32.mrf.mxu0
        %v1773 = vadd.f32 %v1531, %v1772
        %v1774 = vpop.f32.mrf.mxu0
        %v1775 = vpop.f32.mrf.mxu0
        %1776 = vdwg.mxu0
        %v1777 = vadd.f32 %v1730, %v887
        %v1778 = vadd.f32 %v1732, %v891
        %v1779 = vadd.f32 %v1771, %v895
        %v1780 = vadd.f32 %v1773, %v899
        %v1781 = vxor.u32 %v1777, 2147483648
        %v1782 = vmul.f32 %v1781, 1.442695
        %v1783 = vpow.pop %v1782
        %v1784 = vadd.f32 %v1783, 1.0
        %v1785 = vrcp.pop %v1784
        %v1786 = vmul.f32 1.0, %v1785
        %v1787 = vxor.u32 %v1778, 2147483648
        %v1788 = vmul.f32 %v1787, 1.442695
        %v1789 = vpow.pop %v1788
        %v1790 = vadd.f32 %v1789, 1.0
        %v1791 = vrcp.pop %v1790
        %v1792 = vmul.f32 1.0, %v1791
        %v1793 = vtanh.pop %v1779
        %v1794 = vxor.u32 %v1780, 2147483648
        %v1795 = vmul.f32 %v1794, 1.442695
        %v1796 = vpow.pop %v1795
        %v1797 = vadd.f32 %v1796, 1.0
        %v1798 = vrcp.pop %v1797
        %v1799 = vmul.f32 1.0, %v1798
        %v1800 = vmul.f32 %v1792, %v910
        %v1801 = vmul.f32 %v1786, %v1793
        %v1802 = vadd.f32 %v1800, %v1801
        %v1803 = vtanh.pop %v1802
        %v1804 = vmul.f32 %v1799, %v1803
        %v1805 = vsel %vm917, %v1802, %v910
        %v1806 = vsel %vm917, %v1804, %v908
        %v1807 = vsel %vm917, %v1804, 0.0
        %v1808 = vpack.c.bf16 %v1807, %v1807
        %1809 = vst [vmem:[%s510] sm:$0xf] %v1808
        %s1810 = sadd.s32 %s904, 1
        %v1811 = vstv %s1810
        %vm1812 = vcmp.gt.s32.totalorder %v881, %v1811
        %v1813 = vsel %vm1812, 1, 0
        %1814 = vset.pattern.permute.xlu0 0
        %1815 = vperm.xlu0 %1814, %v1813
        %v1816 = vpop.permute.xlu0 %1815
        %vm1817 = vcmp.eq.s32.totalorder %v1816, 1
        %v1818 = vld [vmem:[#allocation4 + $0x20] sm:$0xff]
        %v1819 = vld [vmem:[#allocation4 + $0x28] sm:$0xff]
        %v1820 = vld [vmem:[#allocation4 + $0x30] sm:$0xff]
        %v1821 = vld [vmem:[#allocation4 + $0x38] sm:$0xff]
        %v1822 = vpack.c.bf16 %v1226, %v1226
        %v1823 = vld [vmem:[#allocation13] sm:$0xff]
        %v1824 = vld [vmem:[#allocation13 + $0x8] sm:$0xff]
        %v1825 = vld [vmem:[#allocation13 + $0x10] sm:$0xff]
        %v1826 = vld [vmem:[#allocation13 + $0x18] sm:$0xff]
        %v1827 = vld [vmem:[#allocation13 + $0x20] sm:$0xff]
        %v1828 = vld [vmem:[#allocation13 + $0x28] sm:$0xff]
        %v1829 = vld [vmem:[#allocation13 + $0x30] sm:$0xff]
        %v1830 = vld [vmem:[#allocation13 + $0x38] sm:$0xff]
        %v1831 = vld [vmem:[#allocation13 + $0x40] sm:$0xff]
        %v1832 = vld [vmem:[#allocation13 + $0x48] sm:$0xff]
        %v1833 = vld [vmem:[#allocation13 + $0x50] sm:$0xff]
        %v1834 = vld [vmem:[#allocation13 + $0x58] sm:$0xff]
        %v1835 = vld [vmem:[#allocation13 + $0x60] sm:$0xff]
        %v1836 = vld [vmem:[#allocation13 + $0x68] sm:$0xff]
        %v1837 = vld [vmem:[#allocation13 + $0x70] sm:$0xff]
        %v1838 = vld [vmem:[#allocation13 + $0x78] sm:$0xff]
        %v1839 = vld [vmem:[#allocation13 + $0x80] sm:$0xff]
        %v1840 = vld [vmem:[#allocation13 + $0x88] sm:$0xff]
        %v1841 = vld [vmem:[#allocation13 + $0x90] sm:$0xff]
        %v1842 = vld [vmem:[#allocation13 + $0x98] sm:$0xff]
        %v1843 = vld [vmem:[#allocation13 + $0xa0] sm:$0xff]
        %v1844 = vld [vmem:[#allocation13 + $0xa8] sm:$0xff]
        %v1845 = vld [vmem:[#allocation13 + $0xb0] sm:$0xff]
        %v1846 = vld [vmem:[#allocation13 + $0xb8] sm:$0xff]
        %v1847 = vld [vmem:[#allocation13 + $0xc0] sm:$0xff]
        %v1848 = vld [vmem:[#allocation13 + $0xc8] sm:$0xff]
        %v1849 = vld [vmem:[#allocation13 + $0xd0] sm:$0xff]
        %v1850 = vld [vmem:[#allocation13 + $0xd8] sm:$0xff]
        %v1851 = vld [vmem:[#allocation13 + $0xe0] sm:$0xff]
        %v1852 = vld [vmem:[#allocation13 + $0xe8] sm:$0xff]
        %v1853 = vld [vmem:[#allocation13 + $0xf0] sm:$0xff]
        %v1854 = vld [vmem:[#allocation13 + $0xf8] sm:$0xff]
        %v1887 = vunpack.c.l.b16 %v1823
        %v1888 = vunpack.c.h.b16 %v1823
        %v1889 = vunpack.c.l.b16 %v1824
        %v1890 = vunpack.c.h.b16 %v1824
        %v1891 = vunpack.c.l.b16 %v1825
        %v1892 = vunpack.c.h.b16 %v1825
        %v1893 = vunpack.c.l.b16 %v1826
        %v1894 = vunpack.c.h.b16 %v1826
        %v1895 = vunpack.c.l.b16 %v1827
        %v1896 = vunpack.c.h.b16 %v1827
        %v1897 = vunpack.c.l.b16 %v1828
        %v1898 = vunpack.c.h.b16 %v1828
        %v1899 = vunpack.c.l.b16 %v1829
        %v1900 = vunpack.c.h.b16 %v1829
        %v1901 = vunpack.c.l.b16 %v1830
        %v1902 = vunpack.c.h.b16 %v1830
        %v1903 = vunpack.c.l.b16 %v1831
        %v1904 = vunpack.c.h.b16 %v1831
        %v1905 = vunpack.c.l.b16 %v1832
        %v1906 = vunpack.c.h.b16 %v1832
        %v1907 = vunpack.c.l.b16 %v1833
        %v1908 = vunpack.c.h.b16 %v1833
        %v1909 = vunpack.c.l.b16 %v1834
        %v1910 = vunpack.c.h.b16 %v1834
        %v1911 = vunpack.c.l.b16 %v1835
        %v1912 = vunpack.c.h.b16 %v1835
        %v1913 = vunpack.c.l.b16 %v1836
        %v1914 = vunpack.c.h.b16 %v1836
        %v1915 = vunpack.c.l.b16 %v1837
        %v1916 = vunpack.c.h.b16 %v1837
        %v1917 = vunpack.c.l.b16 %v1838
        %v1918 = vunpack.c.h.b16 %v1838
        %v1919 = vunpack.c.l.b16 %v1839
        %v1920 = vunpack.c.h.b16 %v1839
        %v1921 = vunpack.c.l.b16 %v1840
        %v1922 = vunpack.c.h.b16 %v1840
        %v1923 = vunpack.c.l.b16 %v1841
        %v1924 = vunpack.c.h.b16 %v1841
        %v1925 = vunpack.c.l.b16 %v1842
        %v1926 = vunpack.c.h.b16 %v1842
        %v1927 = vunpack.c.l.b16 %v1843
        %v1928 = vunpack.c.h.b16 %v1843
        %v1929 = vunpack.c.l.b16 %v1844
        %v1930 = vunpack.c.h.b16 %v1844
        %v1931 = vunpack.c.l.b16 %v1845
        %v1932 = vunpack.c.h.b16 %v1845
        %v1933 = vunpack.c.l.b16 %v1846
        %v1934 = vunpack.c.h.b16 %v1846
        %v1935 = vunpack.c.l.b16 %v1847
        %v1936 = vunpack.c.h.b16 %v1847
        %v1937 = vunpack.c.l.b16 %v1848
        %v1938 = vunpack.c.h.b16 %v1848
        %v1939 = vunpack.c.l.b16 %v1849
        %v1940 = vunpack.c.h.b16 %v1849
        %v1941 = vunpack.c.l.b16 %v1850
        %v1942 = vunpack.c.h.b16 %v1850
        %v1943 = vunpack.c.l.b16 %v1851
        %v1944 = vunpack.c.h.b16 %v1851
        %v1945 = vunpack.c.l.b16 %v1852
        %v1946 = vunpack.c.h.b16 %v1852
        %v1947 = vunpack.c.l.b16 %v1853
        %v1948 = vunpack.c.h.b16 %v1853
        %v1949 = vunpack.c.l.b16 %v1854
        %v1950 = vunpack.c.h.b16 %v1854
        %v1951 = vpack.c.b16 %v1891, %v1887
        %v1952 = vpack.c.b16 %v1892, %v1888
        %v1953 = vpack.c.b16 %v1893, %v1889
        %v1954 = vpack.c.b16 %v1894, %v1890
        %v1955 = vpack.c.b16 %v1899, %v1895
        %v1956 = vpack.c.b16 %v1900, %v1896
        %v1957 = vpack.c.b16 %v1901, %v1897
        %v1958 = vpack.c.b16 %v1902, %v1898
        %v1959 = vpack.c.b16 %v1907, %v1903
        %v1960 = vpack.c.b16 %v1908, %v1904
        %v1961 = vpack.c.b16 %v1909, %v1905
        %v1962 = vpack.c.b16 %v1910, %v1906
        %v1963 = vpack.c.b16 %v1915, %v1911
        %v1964 = vpack.c.b16 %v1916, %v1912
        %v1965 = vpack.c.b16 %v1917, %v1913
        %v1966 = vpack.c.b16 %v1918, %v1914
        %v1967 = vpack.c.b16 %v1923, %v1919
        %v1968 = vpack.c.b16 %v1924, %v1920
        %v1969 = vpack.c.b16 %v1925, %v1921
        %v1970 = vpack.c.b16 %v1926, %v1922
        %v1971 = vpack.c.b16 %v1931, %v1927
        %v1972 = vpack.c.b16 %v1932, %v1928
        %v1973 = vpack.c.b16 %v1933, %v1929
        %v1974 = vpack.c.b16 %v1934, %v1930
        %v1975 = vpack.c.b16 %v1939, %v1935
        %v1976 = vpack.c.b16 %v1940, %v1936
        %v1977 = vpack.c.b16 %v1941, %v1937
        %v1978 = vpack.c.b16 %v1942, %v1938
        %v1979 = vpack.c.b16 %v1947, %v1943
        %v1980 = vpack.c.b16 %v1948, %v1944
        %v1981 = vpack.c.b16 %v1949, %v1945
        %v1982 = vpack.c.b16 %v1950, %v1946
        %2015 = vmatprep.subr.bf16.mxu0 %v1980
        %2016 = vmatpush1.bf16.msra.mxu0 %v1979
        %2017 = vmatprep.subr.bf16.mxu0 %v1976
        %2018 = vmatpush1.bf16.msra.mxu0 %v1975
        %2019 = vmatprep.subr.bf16.mxu0 %v1972
        %2020 = vmatpush1.bf16.msra.mxu0 %v1971
        %2021 = vmatprep.subr.bf16.mxu0 %v1968
        %2022 = vmatpush1.bf16.msra.mxu0 %v1967
        %2023 = vmatprep.subr.bf16.mxu0 %v1964
        %2024 = vmatpush1.bf16.msra.mxu0 %v1963
        %2025 = vmatprep.subr.bf16.mxu0 %v1960
        %2026 = vmatpush1.bf16.msra.mxu0 %v1959
        %2027 = vmatprep.subr.bf16.mxu0 %v1956
        %2028 = vmatpush1.bf16.msra.mxu0 %v1955
        %2029 = vmatprep.subr.bf16.mxu0 %v1952
        %2030 = vmatpush1.bf16.msra.mxu0 %v1951
        %2031 = vmatprep.subr.bf16.mxu0 0
        %2032 = vmatpush2.bf16.msra.mxu0 0
        %2033 = vmatprep.subr.bf16.mxu0 0
        %2034 = vmatpush2.bf16.msra.mxu0 0
        %2035 = vmatprep.subr.bf16.mxu0 0
        %2036 = vmatpush2.bf16.msra.mxu0 0
        %2037 = vmatprep.subr.bf16.mxu0 0
        %2038 = vmatpush2.bf16.msra.mxu0 0
        %2039 = vmatprep.subr.bf16.mxu0 0
        %2040 = vmatpush2.bf16.msra.mxu0 0
        %2041 = vmatprep.subr.bf16.mxu0 0
        %2042 = vmatpush2.bf16.msra.mxu0 0
        %2043 = vmatprep.subr.bf16.mxu0 0
        %2044 = vmatpush2.bf16.msra.mxu0 0
        %2045 = vmatprep.subr.bf16.mxu0 0
        %2046 = vmatpush2.bf16.msra.mxu0 0
        %2047 = vmatprep.mubr.bf16.mxu0 0
        %2048 = vmatmul.mubr.bf16.gmra.mxu0 %v1822
        %v2049 = vpop.f32.mrf.mxu0
        %v2050 = vadd.f32 0.0, %v2049
        %v2051 = vpop.f32.mrf.mxu0
        %v2052 = vadd.f32 0.0, %v2051
        %v2053 = vpop.f32.mrf.mxu0
        %v2054 = vpop.f32.mrf.mxu0
        %2055 = vdwg.mxu0
        %2056 = vmatprep.subr.bf16.mxu0 %v1982
        %2057 = vmatpush1.bf16.msra.mxu0 %v1981
        %2058 = vmatprep.subr.bf16.mxu0 %v1978
        %2059 = vmatpush1.bf16.msra.mxu0 %v1977
        %2060 = vmatprep.subr.bf16.mxu0 %v1974
        %2061 = vmatpush1.bf16.msra.mxu0 %v1973
        %2062 = vmatprep.subr.bf16.mxu0 %v1970
        %2063 = vmatpush1.bf16.msra.mxu0 %v1969
        %2064 = vmatprep.subr.bf16.mxu0 %v1966
        %2065 = vmatpush1.bf16.msra.mxu0 %v1965
        %2066 = vmatprep.subr.bf16.mxu0 %v1962
        %2067 = vmatpush1.bf16.msra.mxu0 %v1961
        %2068 = vmatprep.subr.bf16.mxu0 %v1958
        %2069 = vmatpush1.bf16.msra.mxu0 %v1957
        %2070 = vmatprep.subr.bf16.mxu0 %v1954
        %2071 = vmatpush1.bf16.msra.mxu0 %v1953
        %2072 = vmatprep.subr.bf16.mxu0 0
        %2073 = vmatpush2.bf16.msra.mxu0 0
        %2074 = vmatprep.subr.bf16.mxu0 0
        %2075 = vmatpush2.bf16.msra.mxu0 0
        %2076 = vmatprep.subr.bf16.mxu0 0
        %2077 = vmatpush2.bf16.msra.mxu0 0
        %2078 = vmatprep.subr.bf16.mxu0 0
        %2079 = vmatpush2.bf16.msra.mxu0 0
        %2080 = vmatprep.subr.bf16.mxu0 0
        %2081 = vmatpush2.bf16.msra.mxu0 0
        %2082 = vmatprep.subr.bf16.mxu0 0
        %2083 = vmatpush2.bf16.msra.mxu0 0
        %2084 = vmatprep.subr.bf16.mxu0 0
        %2085 = vmatpush2.bf16.msra.mxu0 0
        %2086 = vmatprep.subr.bf16.mxu0 0
        %2087 = vmatpush2.bf16.msra.mxu0 0
        %2088 = vmatprep.mubr.bf16.mxu0 0
        %2089 = vmatmul.mubr.bf16.gmra.mxu0 %v1822
        %v2090 = vpop.f32.mrf.mxu0
        %v2091 = vadd.f32 0.0, %v2090
        %v2092 = vpop.f32.mrf.mxu0
        %v2093 = vadd.f32 0.0, %v2092
        %v2094 = vpop.f32.mrf.mxu0
        %v2095 = vpop.f32.mrf.mxu0
        %2096 = vdwg.mxu0
        %v2097 = vadd.f32 %v1818, %v2050
        %v2098 = vadd.f32 %v1819, %v2052
        %v2099 = vadd.f32 %v1820, %v2091
        %v2100 = vadd.f32 %v1821, %v2093
        %v2101 = vxor.u32 %v2097, 2147483648
        %v2102 = vmul.f32 %v2101, 1.442695
        %v2103 = vpow.pop %v2102
        %v2104 = vadd.f32 %v2103, 1.0
        %v2105 = vrcp.pop %v2104
        %v2106 = vmul.f32 1.0, %v2105
        %v2107 = vxor.u32 %v2098, 2147483648
        %v2108 = vmul.f32 %v2107, 1.442695
        %v2109 = vpow.pop %v2108
        %v2110 = vadd.f32 %v2109, 1.0
        %v2111 = vrcp.pop %v2110
        %v2112 = vmul.f32 1.0, %v2111
        %v2113 = vtanh.pop %v2099
        %v2114 = vxor.u32 %v2100, 2147483648
        %v2115 = vmul.f32 %v2114, 1.442695
        %v2116 = vpow.pop %v2115
        %v2117 = vadd.f32 %v2116, 1.0
        %v2118 = vrcp.pop %v2117
        %v2119 = vmul.f32 1.0, %v2118
        %v2120 = vmul.f32 %v2112, %v1225
        %v2121 = vmul.f32 %v2106, %v2113
        %v2122 = vadd.f32 %v2120, %v2121
        %v2123 = vtanh.pop %v2122
        %v2124 = vmul.f32 %v2119, %v2123
        %v2125 = vsel %vm1817, %v2122, %v1225
        %v2126 = vsel %vm1817, %v2124, %v1226
        %v2127 = vpack.c.bf16 %v2124, %v2124
        %v2128 = vld [vmem:[#allocation14] sm:$0xff]
        %v2129 = vld [vmem:[#allocation14 + $0x8] sm:$0xff]
        %v2130 = vld [vmem:[#allocation14 + $0x10] sm:$0xff]
        %v2131 = vld [vmem:[#allocation14 + $0x18] sm:$0xff]
        %v2132 = vld [vmem:[#allocation14 + $0x20] sm:$0xff]
        %v2133 = vld [vmem:[#allocation14 + $0x28] sm:$0xff]
        %v2134 = vld [vmem:[#allocation14 + $0x30] sm:$0xff]
        %v2135 = vld [vmem:[#allocation14 + $0x38] sm:$0xff]
        %v2136 = vld [vmem:[#allocation14 + $0x40] sm:$0xff]
        %v2137 = vld [vmem:[#allocation14 + $0x48] sm:$0xff]
        %v2138 = vld [vmem:[#allocation14 + $0x50] sm:$0xff]
        %v2139 = vld [vmem:[#allocation14 + $0x58] sm:$0xff]
        %v2140 = vld [vmem:[#allocation14 + $0x60] sm:$0xff]
        %v2141 = vld [vmem:[#allocation14 + $0x68] sm:$0xff]
        %v2142 = vld [vmem:[#allocation14 + $0x70] sm:$0xff]
        %v2143 = vld [vmem:[#allocation14 + $0x78] sm:$0xff]
        %v2144 = vld [vmem:[#allocation14 + $0x80] sm:$0xff]
        %v2145 = vld [vmem:[#allocation14 + $0x88] sm:$0xff]
        %v2146 = vld [vmem:[#allocation14 + $0x90] sm:$0xff]
        %v2147 = vld [vmem:[#allocation14 + $0x98] sm:$0xff]
        %v2148 = vld [vmem:[#allocation14 + $0xa0] sm:$0xff]
        %v2149 = vld [vmem:[#allocation14 + $0xa8] sm:$0xff]
        %v2150 = vld [vmem:[#allocation14 + $0xb0] sm:$0xff]
        %v2151 = vld [vmem:[#allocation14 + $0xb8] sm:$0xff]
        %v2152 = vld [vmem:[#allocation14 + $0xc0] sm:$0xff]
        %v2153 = vld [vmem:[#allocation14 + $0xc8] sm:$0xff]
        %v2154 = vld [vmem:[#allocation14 + $0xd0] sm:$0xff]
        %v2155 = vld [vmem:[#allocation14 + $0xd8] sm:$0xff]
        %v2156 = vld [vmem:[#allocation14 + $0xe0] sm:$0xff]
        %v2157 = vld [vmem:[#allocation14 + $0xe8] sm:$0xff]
        %v2158 = vld [vmem:[#allocation14 + $0xf0] sm:$0xff]
        %v2159 = vld [vmem:[#allocation14 + $0xf8] sm:$0xff]
        %v2160 = vpack.c.bf16 %v1806, %v1806
        %v2161 = vld [vmem:[#allocation16] sm:$0xff]
        %v2162 = vld [vmem:[#allocation16 + $0x8] sm:$0xff]
        %v2163 = vld [vmem:[#allocation16 + $0x10] sm:$0xff]
        %v2164 = vld [vmem:[#allocation16 + $0x18] sm:$0xff]
        %v2165 = vld [vmem:[#allocation16 + $0x20] sm:$0xff]
        %v2166 = vld [vmem:[#allocation16 + $0x28] sm:$0xff]
        %v2167 = vld [vmem:[#allocation16 + $0x30] sm:$0xff]
        %v2168 = vld [vmem:[#allocation16 + $0x38] sm:$0xff]
        %v2169 = vld [vmem:[#allocation16 + $0x40] sm:$0xff]
        %v2170 = vld [vmem:[#allocation16 + $0x48] sm:$0xff]
        %v2171 = vld [vmem:[#allocation16 + $0x50] sm:$0xff]
        %v2172 = vld [vmem:[#allocation16 + $0x58] sm:$0xff]
        %v2173 = vld [vmem:[#allocation16 + $0x60] sm:$0xff]
        %v2174 = vld [vmem:[#allocation16 + $0x68] sm:$0xff]
        %v2175 = vld [vmem:[#allocation16 + $0x70] sm:$0xff]
        %v2176 = vld [vmem:[#allocation16 + $0x78] sm:$0xff]
        %v2177 = vld [vmem:[#allocation16 + $0x80] sm:$0xff]
        %v2178 = vld [vmem:[#allocation16 + $0x88] sm:$0xff]
        %v2179 = vld [vmem:[#allocation16 + $0x90] sm:$0xff]
        %v2180 = vld [vmem:[#allocation16 + $0x98] sm:$0xff]
        %v2181 = vld [vmem:[#allocation16 + $0xa0] sm:$0xff]
        %v2182 = vld [vmem:[#allocation16 + $0xa8] sm:$0xff]
        %v2183 = vld [vmem:[#allocation16 + $0xb0] sm:$0xff]
        %v2184 = vld [vmem:[#allocation16 + $0xb8] sm:$0xff]
        %v2185 = vld [vmem:[#allocation16 + $0xc0] sm:$0xff]
        %v2186 = vld [vmem:[#allocation16 + $0xc8] sm:$0xff]
        %v2187 = vld [vmem:[#allocation16 + $0xd0] sm:$0xff]
        %v2188 = vld [vmem:[#allocation16 + $0xd8] sm:$0xff]
        %v2189 = vld [vmem:[#allocation16 + $0xe0] sm:$0xff]
        %v2190 = vld [vmem:[#allocation16 + $0xe8] sm:$0xff]
        %v2191 = vld [vmem:[#allocation16 + $0xf0] sm:$0xff]
        %v2192 = vld [vmem:[#allocation16 + $0xf8] sm:$0xff]
        %v2225 = vunpack.c.l.b16 %v2161
        %v2226 = vunpack.c.h.b16 %v2161
        %v2227 = vunpack.c.l.b16 %v2162
        %v2228 = vunpack.c.h.b16 %v2162
        %v2229 = vunpack.c.l.b16 %v2163
        %v2230 = vunpack.c.h.b16 %v2163
        %v2231 = vunpack.c.l.b16 %v2164
        %v2232 = vunpack.c.h.b16 %v2164
        %v2233 = vunpack.c.l.b16 %v2165
        %v2234 = vunpack.c.h.b16 %v2165
        %v2235 = vunpack.c.l.b16 %v2166
        %v2236 = vunpack.c.h.b16 %v2166
        %v2237 = vunpack.c.l.b16 %v2167
        %v2238 = vunpack.c.h.b16 %v2167
        %v2239 = vunpack.c.l.b16 %v2168
        %v2240 = vunpack.c.h.b16 %v2168
        %v2241 = vunpack.c.l.b16 %v2169
        %v2242 = vunpack.c.h.b16 %v2169
        %v2243 = vunpack.c.l.b16 %v2170
        %v2244 = vunpack.c.h.b16 %v2170
        %v2245 = vunpack.c.l.b16 %v2171
        %v2246 = vunpack.c.h.b16 %v2171
        %v2247 = vunpack.c.l.b16 %v2172
        %v2248 = vunpack.c.h.b16 %v2172
        %v2249 = vunpack.c.l.b16 %v2173
        %v2250 = vunpack.c.h.b16 %v2173
        %v2251 = vunpack.c.l.b16 %v2174
        %v2252 = vunpack.c.h.b16 %v2174
        %v2253 = vunpack.c.l.b16 %v2175
        %v2254 = vunpack.c.h.b16 %v2175
        %v2255 = vunpack.c.l.b16 %v2176
        %v2256 = vunpack.c.h.b16 %v2176
        %v2257 = vunpack.c.l.b16 %v2177
        %v2258 = vunpack.c.h.b16 %v2177
        %v2259 = vunpack.c.l.b16 %v2178
        %v2260 = vunpack.c.h.b16 %v2178
        %v2261 = vunpack.c.l.b16 %v2179
        %v2262 = vunpack.c.h.b16 %v2179
        %v2263 = vunpack.c.l.b16 %v2180
        %v2264 = vunpack.c.h.b16 %v2180
        %v2265 = vunpack.c.l.b16 %v2181
        %v2266 = vunpack.c.h.b16 %v2181
        %v2267 = vunpack.c.l.b16 %v2182
        %v2268 = vunpack.c.h.b16 %v2182
        %v2269 = vunpack.c.l.b16 %v2183
        %v2270 = vunpack.c.h.b16 %v2183
        %v2271 = vunpack.c.l.b16 %v2184
        %v2272 = vunpack.c.h.b16 %v2184
        %v2273 = vunpack.c.l.b16 %v2185
        %v2274 = vunpack.c.h.b16 %v2185
        %v2275 = vunpack.c.l.b16 %v2186
        %v2276 = vunpack.c.h.b16 %v2186
        %v2277 = vunpack.c.l.b16 %v2187
        %v2278 = vunpack.c.h.b16 %v2187
        %v2279 = vunpack.c.l.b16 %v2188
        %v2280 = vunpack.c.h.b16 %v2188
        %v2281 = vunpack.c.l.b16 %v2189
        %v2282 = vunpack.c.h.b16 %v2189
        %v2283 = vunpack.c.l.b16 %v2190
        %v2284 = vunpack.c.h.b16 %v2190
        %v2285 = vunpack.c.l.b16 %v2191
        %v2286 = vunpack.c.h.b16 %v2191
        %v2287 = vunpack.c.l.b16 %v2192
        %v2288 = vunpack.c.h.b16 %v2192
        %v2289 = vpack.c.b16 %v2229, %v2225
        %v2290 = vpack.c.b16 %v2230, %v2226
        %v2291 = vpack.c.b16 %v2231, %v2227
        %v2292 = vpack.c.b16 %v2232, %v2228
        %v2293 = vpack.c.b16 %v2237, %v2233
        %v2294 = vpack.c.b16 %v2238, %v2234
        %v2295 = vpack.c.b16 %v2239, %v2235
        %v2296 = vpack.c.b16 %v2240, %v2236
        %v2297 = vpack.c.b16 %v2245, %v2241
        %v2298 = vpack.c.b16 %v2246, %v2242
        %v2299 = vpack.c.b16 %v2247, %v2243
        %v2300 = vpack.c.b16 %v2248, %v2244
        %v2301 = vpack.c.b16 %v2253, %v2249
        %v2302 = vpack.c.b16 %v2254, %v2250
        %v2303 = vpack.c.b16 %v2255, %v2251
        %v2304 = vpack.c.b16 %v2256, %v2252
        %v2305 = vpack.c.b16 %v2261, %v2257
        %v2306 = vpack.c.b16 %v2262, %v2258
        %v2307 = vpack.c.b16 %v2263, %v2259
        %v2308 = vpack.c.b16 %v2264, %v2260
        %v2309 = vpack.c.b16 %v2269, %v2265
        %v2310 = vpack.c.b16 %v2270, %v2266
        %v2311 = vpack.c.b16 %v2271, %v2267
        %v2312 = vpack.c.b16 %v2272, %v2268
        %v2313 = vpack.c.b16 %v2277, %v2273
        %v2314 = vpack.c.b16 %v2278, %v2274
        %v2315 = vpack.c.b16 %v2279, %v2275
        %v2316 = vpack.c.b16 %v2280, %v2276
        %v2317 = vpack.c.b16 %v2285, %v2281
        %v2318 = vpack.c.b16 %v2286, %v2282
        %v2319 = vpack.c.b16 %v2287, %v2283
        %v2320 = vpack.c.b16 %v2288, %v2284
        %2353 = vmatprep.subr.bf16.mxu0 %v2318
        %2354 = vmatpush1.bf16.msra.mxu0 %v2317
        %2355 = vmatprep.subr.bf16.mxu0 %v2314
        %2356 = vmatpush1.bf16.msra.mxu0 %v2313
        %2357 = vmatprep.subr.bf16.mxu0 %v2310
        %2358 = vmatpush1.bf16.msra.mxu0 %v2309
        %2359 = vmatprep.subr.bf16.mxu0 %v2306
        %2360 = vmatpush1.bf16.msra.mxu0 %v2305
        %2361 = vmatprep.subr.bf16.mxu0 %v2302
        %2362 = vmatpush1.bf16.msra.mxu0 %v2301
        %2363 = vmatprep.subr.bf16.mxu0 %v2298
        %2364 = vmatpush1.bf16.msra.mxu0 %v2297
        %2365 = vmatprep.subr.bf16.mxu0 %v2294
        %2366 = vmatpush1.bf16.msra.mxu0 %v2293
        %2367 = vmatprep.subr.bf16.mxu0 %v2290
        %2368 = vmatpush1.bf16.msra.mxu0 %v2289
        %2369 = vmatprep.subr.bf16.mxu0 0
        %2370 = vmatpush2.bf16.msra.mxu0 0
        %2371 = vmatprep.subr.bf16.mxu0 0
        %2372 = vmatpush2.bf16.msra.mxu0 0
        %2373 = vmatprep.subr.bf16.mxu0 0
        %2374 = vmatpush2.bf16.msra.mxu0 0
        %2375 = vmatprep.subr.bf16.mxu0 0
        %2376 = vmatpush2.bf16.msra.mxu0 0
        %2377 = vmatprep.subr.bf16.mxu0 0
        %2378 = vmatpush2.bf16.msra.mxu0 0
        %2379 = vmatprep.subr.bf16.mxu0 0
        %2380 = vmatpush2.bf16.msra.mxu0 0
        %2381 = vmatprep.subr.bf16.mxu0 0
        %2382 = vmatpush2.bf16.msra.mxu0 0
        %2383 = vmatprep.subr.bf16.mxu0 0
        %2384 = vmatpush2.bf16.msra.mxu0 0
        %2385 = vmatprep.mubr.bf16.mxu0 0
        %2386 = vmatmul.mubr.bf16.gmra.mxu0 %v2160
        %v2387 = vpop.f32.mrf.mxu0
        %v2388 = vadd.f32 0.0, %v2387
        %v2389 = vpop.f32.mrf.mxu0
        %v2390 = vadd.f32 0.0, %v2389
        %v2391 = vpop.f32.mrf.mxu0
        %v2392 = vpop.f32.mrf.mxu0
        %2393 = vdwg.mxu0
        %2394 = vmatprep.subr.bf16.mxu0 %v2320
        %2395 = vmatpush1.bf16.msra.mxu0 %v2319
        %2396 = vmatprep.subr.bf16.mxu0 %v2316
        %2397 = vmatpush1.bf16.msra.mxu0 %v2315
        %2398 = vmatprep.subr.bf16.mxu0 %v2312
        %2399 = vmatpush1.bf16.msra.mxu0 %v2311
        %2400 = vmatprep.subr.bf16.mxu0 %v2308
        %2401 = vmatpush1.bf16.msra.mxu0 %v2307
        %2402 = vmatprep.subr.bf16.mxu0 %v2304
        %2403 = vmatpush1.bf16.msra.mxu0 %v2303
        %2404 = vmatprep.subr.bf16.mxu0 %v2300
        %2405 = vmatpush1.bf16.msra.mxu0 %v2299
        %2406 = vmatprep.subr.bf16.mxu0 %v2296
        %2407 = vmatpush1.bf16.msra.mxu0 %v2295
        %2408 = vmatprep.subr.bf16.mxu0 %v2292
        %2409 = vmatpush1.bf16.msra.mxu0 %v2291
        %2410 = vmatprep.subr.bf16.mxu0 0
        %2411 = vmatpush2.bf16.msra.mxu0 0
        %2412 = vmatprep.subr.bf16.mxu0 0
        %2413 = vmatpush2.bf16.msra.mxu0 0
        %2414 = vmatprep.subr.bf16.mxu0 0
        %2415 = vmatpush2.bf16.msra.mxu0 0
        %2416 = vmatprep.subr.bf16.mxu0 0
        %2417 = vmatpush2.bf16.msra.mxu0 0
        %2418 = vmatprep.subr.bf16.mxu0 0
        %2419 = vmatpush2.bf16.msra.mxu0 0
        %2420 = vmatprep.subr.bf16.mxu0 0
        %2421 = vmatpush2.bf16.msra.mxu0 0
        %2422 = vmatprep.subr.bf16.mxu0 0
        %2423 = vmatpush2.bf16.msra.mxu0 0
        %2424 = vmatprep.subr.bf16.mxu0 0
        %2425 = vmatpush2.bf16.msra.mxu0 0
        %2426 = vmatprep.mubr.bf16.mxu0 0
        %2427 = vmatmul.mubr.bf16.gmra.mxu0 %v2160
        %v2428 = vpop.f32.mrf.mxu0
        %v2429 = vadd.f32 0.0, %v2428
        %v2430 = vpop.f32.mrf.mxu0
        %v2431 = vadd.f32 0.0, %v2430
        %v2432 = vpop.f32.mrf.mxu0
        %v2433 = vpop.f32.mrf.mxu0
        %2434 = vdwg.mxu0
        %v2467 = vunpack.c.l.b16 %v2128
        %v2468 = vunpack.c.h.b16 %v2128
        %v2469 = vunpack.c.l.b16 %v2129
        %v2470 = vunpack.c.h.b16 %v2129
        %v2471 = vunpack.c.l.b16 %v2130
        %v2472 = vunpack.c.h.b16 %v2130
        %v2473 = vunpack.c.l.b16 %v2131
        %v2474 = vunpack.c.h.b16 %v2131
        %v2475 = vunpack.c.l.b16 %v2132
        %v2476 = vunpack.c.h.b16 %v2132
        %v2477 = vunpack.c.l.b16 %v2133
        %v2478 = vunpack.c.h.b16 %v2133
        %v2479 = vunpack.c.l.b16 %v2134
        %v2480 = vunpack.c.h.b16 %v2134
        %v2481 = vunpack.c.l.b16 %v2135
        %v2482 = vunpack.c.h.b16 %v2135
        %v2483 = vunpack.c.l.b16 %v2136
        %v2484 = vunpack.c.h.b16 %v2136
        %v2485 = vunpack.c.l.b16 %v2137
        %v2486 = vunpack.c.h.b16 %v2137
        %v2487 = vunpack.c.l.b16 %v2138
        %v2488 = vunpack.c.h.b16 %v2138
        %v2489 = vunpack.c.l.b16 %v2139
        %v2490 = vunpack.c.h.b16 %v2139
        %v2491 = vunpack.c.l.b16 %v2140
        %v2492 = vunpack.c.h.b16 %v2140
        %v2493 = vunpack.c.l.b16 %v2141
        %v2494 = vunpack.c.h.b16 %v2141
        %v2495 = vunpack.c.l.b16 %v2142
        %v2496 = vunpack.c.h.b16 %v2142
        %v2497 = vunpack.c.l.b16 %v2143
        %v2498 = vunpack.c.h.b16 %v2143
        %v2499 = vunpack.c.l.b16 %v2144
        %v2500 = vunpack.c.h.b16 %v2144
        %v2501 = vunpack.c.l.b16 %v2145
        %v2502 = vunpack.c.h.b16 %v2145
        %v2503 = vunpack.c.l.b16 %v2146
        %v2504 = vunpack.c.h.b16 %v2146
        %v2505 = vunpack.c.l.b16 %v2147
        %v2506 = vunpack.c.h.b16 %v2147
        %v2507 = vunpack.c.l.b16 %v2148
        %v2508 = vunpack.c.h.b16 %v2148
        %v2509 = vunpack.c.l.b16 %v2149
        %v2510 = vunpack.c.h.b16 %v2149
        %v2511 = vunpack.c.l.b16 %v2150
        %v2512 = vunpack.c.h.b16 %v2150
        %v2513 = vunpack.c.l.b16 %v2151
        %v2514 = vunpack.c.h.b16 %v2151
        %v2515 = vunpack.c.l.b16 %v2152
        %v2516 = vunpack.c.h.b16 %v2152
        %v2517 = vunpack.c.l.b16 %v2153
        %v2518 = vunpack.c.h.b16 %v2153
        %v2519 = vunpack.c.l.b16 %v2154
        %v2520 = vunpack.c.h.b16 %v2154
        %v2521 = vunpack.c.l.b16 %v2155
        %v2522 = vunpack.c.h.b16 %v2155
        %v2523 = vunpack.c.l.b16 %v2156
        %v2524 = vunpack.c.h.b16 %v2156
        %v2525 = vunpack.c.l.b16 %v2157
        %v2526 = vunpack.c.h.b16 %v2157
        %v2527 = vunpack.c.l.b16 %v2158
        %v2528 = vunpack.c.h.b16 %v2158
        %v2529 = vunpack.c.l.b16 %v2159
        %v2530 = vunpack.c.h.b16 %v2159
        %v2531 = vpack.c.b16 %v2471, %v2467
        %v2532 = vpack.c.b16 %v2472, %v2468
        %v2533 = vpack.c.b16 %v2473, %v2469
        %v2534 = vpack.c.b16 %v2474, %v2470
        %v2535 = vpack.c.b16 %v2479, %v2475
        %v2536 = vpack.c.b16 %v2480, %v2476
        %v2537 = vpack.c.b16 %v2481, %v2477
        %v2538 = vpack.c.b16 %v2482, %v2478
        %v2539 = vpack.c.b16 %v2487, %v2483
        %v2540 = vpack.c.b16 %v2488, %v2484
        %v2541 = vpack.c.b16 %v2489, %v2485
        %v2542 = vpack.c.b16 %v2490, %v2486
        %v2543 = vpack.c.b16 %v2495, %v2491
        %v2544 = vpack.c.b16 %v2496, %v2492
        %v2545 = vpack.c.b16 %v2497, %v2493
        %v2546 = vpack.c.b16 %v2498, %v2494
        %v2547 = vpack.c.b16 %v2503, %v2499
        %v2548 = vpack.c.b16 %v2504, %v2500
        %v2549 = vpack.c.b16 %v2505, %v2501
        %v2550 = vpack.c.b16 %v2506, %v2502
        %v2551 = vpack.c.b16 %v2511, %v2507
        %v2552 = vpack.c.b16 %v2512, %v2508
        %v2553 = vpack.c.b16 %v2513, %v2509
        %v2554 = vpack.c.b16 %v2514, %v2510
        %v2555 = vpack.c.b16 %v2519, %v2515
        %v2556 = vpack.c.b16 %v2520, %v2516
        %v2557 = vpack.c.b16 %v2521, %v2517
        %v2558 = vpack.c.b16 %v2522, %v2518
        %v2559 = vpack.c.b16 %v2527, %v2523
        %v2560 = vpack.c.b16 %v2528, %v2524
        %v2561 = vpack.c.b16 %v2529, %v2525
        %v2562 = vpack.c.b16 %v2530, %v2526
        %2595 = vmatprep.subr.bf16.mxu0 %v2560
        %2596 = vmatpush1.bf16.msra.mxu0 %v2559
        %2597 = vmatprep.subr.bf16.mxu0 %v2556
        %2598 = vmatpush1.bf16.msra.mxu0 %v2555
        %2599 = vmatprep.subr.bf16.mxu0 %v2552
        %2600 = vmatpush1.bf16.msra.mxu0 %v2551
        %2601 = vmatprep.subr.bf16.mxu0 %v2548
        %2602 = vmatpush1.bf16.msra.mxu0 %v2547
        %2603 = vmatprep.subr.bf16.mxu0 %v2544
        %2604 = vmatpush1.bf16.msra.mxu0 %v2543
        %2605 = vmatprep.subr.bf16.mxu0 %v2540
        %2606 = vmatpush1.bf16.msra.mxu0 %v2539
        %2607 = vmatprep.subr.bf16.mxu0 %v2536
        %2608 = vmatpush1.bf16.msra.mxu0 %v2535
        %2609 = vmatprep.subr.bf16.mxu0 %v2532
        %2610 = vmatpush1.bf16.msra.mxu0 %v2531
        %2611 = vmatprep.subr.bf16.mxu0 0
        %2612 = vmatpush2.bf16.msra.mxu0 0
        %2613 = vmatprep.subr.bf16.mxu0 0
        %2614 = vmatpush2.bf16.msra.mxu0 0
        %2615 = vmatprep.subr.bf16.mxu0 0
        %2616 = vmatpush2.bf16.msra.mxu0 0
        %2617 = vmatprep.subr.bf16.mxu0 0
        %2618 = vmatpush2.bf16.msra.mxu0 0
        %2619 = vmatprep.subr.bf16.mxu0 0
        %2620 = vmatpush2.bf16.msra.mxu0 0
        %2621 = vmatprep.subr.bf16.mxu0 0
        %2622 = vmatpush2.bf16.msra.mxu0 0
        %2623 = vmatprep.subr.bf16.mxu0 0
        %2624 = vmatpush2.bf16.msra.mxu0 0
        %2625 = vmatprep.subr.bf16.mxu0 0
        %2626 = vmatpush2.bf16.msra.mxu0 0
        %2627 = vmatprep.mubr.bf16.mxu0 0
        %2628 = vmatmul.mubr.bf16.gmra.mxu0 %v2127
        %v2629 = vpop.f32.mrf.mxu0
        %v2630 = vadd.f32 %v2388, %v2629
        %v2631 = vpop.f32.mrf.mxu0
        %v2632 = vadd.f32 %v2390, %v2631
        %v2633 = vpop.f32.mrf.mxu0
        %v2634 = vpop.f32.mrf.mxu0
        %2635 = vdwg.mxu0
        %2636 = vmatprep.subr.bf16.mxu0 %v2562
        %2637 = vmatpush1.bf16.msra.mxu0 %v2561
        %2638 = vmatprep.subr.bf16.mxu0 %v2558
        %2639 = vmatpush1.bf16.msra.mxu0 %v2557
        %2640 = vmatprep.subr.bf16.mxu0 %v2554
        %2641 = vmatpush1.bf16.msra.mxu0 %v2553
        %2642 = vmatprep.subr.bf16.mxu0 %v2550
        %2643 = vmatpush1.bf16.msra.mxu0 %v2549
        %2644 = vmatprep.subr.bf16.mxu0 %v2546
        %2645 = vmatpush1.bf16.msra.mxu0 %v2545
        %2646 = vmatprep.subr.bf16.mxu0 %v2542
        %2647 = vmatpush1.bf16.msra.mxu0 %v2541
        %2648 = vmatprep.subr.bf16.mxu0 %v2538
        %2649 = vmatpush1.bf16.msra.mxu0 %v2537
        %2650 = vmatprep.subr.bf16.mxu0 %v2534
        %2651 = vmatpush1.bf16.msra.mxu0 %v2533
        %2652 = vmatprep.subr.bf16.mxu0 0
        %2653 = vmatpush2.bf16.msra.mxu0 0
        %2654 = vmatprep.subr.bf16.mxu0 0
        %2655 = vmatpush2.bf16.msra.mxu0 0
        %2656 = vmatprep.subr.bf16.mxu0 0
        %2657 = vmatpush2.bf16.msra.mxu0 0
        %2658 = vmatprep.subr.bf16.mxu0 0
        %2659 = vmatpush2.bf16.msra.mxu0 0
        %2660 = vmatprep.subr.bf16.mxu0 0
        %2661 = vmatpush2.bf16.msra.mxu0 0
        %2662 = vmatprep.subr.bf16.mxu0 0
        %2663 = vmatpush2.bf16.msra.mxu0 0
        %2664 = vmatprep.subr.bf16.mxu0 0
        %2665 = vmatpush2.bf16.msra.mxu0 0
        %2666 = vmatprep.subr.bf16.mxu0 0
        %2667 = vmatpush2.bf16.msra.mxu0 0
        %2668 = vmatprep.mubr.bf16.mxu0 0
        %2669 = vmatmul.mubr.bf16.gmra.mxu0 %v2127
        %v2670 = vpop.f32.mrf.mxu0
        %v2671 = vadd.f32 %v2429, %v2670
        %v2672 = vpop.f32.mrf.mxu0
        %v2673 = vadd.f32 %v2431, %v2672
        %v2674 = vpop.f32.mrf.mxu0
        %v2675 = vpop.f32.mrf.mxu0
        %2676 = vdwg.mxu0
        %v2677 = vadd.f32 %v2630, %v887
        %v2678 = vadd.f32 %v2632, %v891
        %v2679 = vadd.f32 %v2671, %v895
        %v2680 = vadd.f32 %v2673, %v899
        %v2681 = vxor.u32 %v2677, 2147483648
        %v2682 = vmul.f32 %v2681, 1.442695
        %v2683 = vpow.pop %v2682
        %v2684 = vadd.f32 %v2683, 1.0
        %v2685 = vrcp.pop %v2684
        %v2686 = vmul.f32 1.0, %v2685
        %v2687 = vxor.u32 %v2678, 2147483648
        %v2688 = vmul.f32 %v2687, 1.442695
        %v2689 = vpow.pop %v2688
        %v2690 = vadd.f32 %v2689, 1.0
        %v2691 = vrcp.pop %v2690
        %v2692 = vmul.f32 1.0, %v2691
        %v2693 = vtanh.pop %v2679
        %v2694 = vxor.u32 %v2680, 2147483648
        %v2695 = vmul.f32 %v2694, 1.442695
        %v2696 = vpow.pop %v2695
        %v2697 = vadd.f32 %v2696, 1.0
        %v2698 = vrcp.pop %v2697
        %v2699 = vmul.f32 1.0, %v2698
        %v2700 = vmul.f32 %v2692, %v1805
        %v2701 = vmul.f32 %v2686, %v2693
        %v2702 = vadd.f32 %v2700, %v2701
        %v2703 = vtanh.pop %v2702
        %v2704 = vmul.f32 %v2699, %v2703
        %v2705 = vsel %vm1817, %v2702, %v1805
        %v2706 = vsel %vm1817, %v2704, %v1806
        %v2707 = vsel %vm1817, %v2704, 0.0
        %v2708 = vpack.c.bf16 %v2707, %v2707
        %s2709 = scalar_lea.vmem %s510, 4 [#allocation17]
        %2710 = vst [vmem:[%s2709] sm:$0xf] %v2708
        %s2711 = sadd.s32 %s904, 2
        %v2712 = vstv %s2711
        %vm2713 = vcmp.gt.s32.totalorder %v881, %v2712
        %v2714 = vsel %vm2713, 1, 0
        %2715 = vset.pattern.permute.xlu0 0
        %2716 = vperm.xlu0 %2715, %v2714
        %v2717 = vpop.permute.xlu0 %2716
        %vm2718 = vcmp.eq.s32.totalorder %v2717, 1
        %v2719 = vld [vmem:[#allocation4 + $0x40] sm:$0xff]
        %v2720 = vld [vmem:[#allocation4 + $0x48] sm:$0xff]
        %v2721 = vld [vmem:[#allocation4 + $0x50] sm:$0xff]
        %v2722 = vld [vmem:[#allocation4 + $0x58] sm:$0xff]
        %v2723 = vpack.c.bf16 %v2126, %v2126
        %v2724 = vld [vmem:[#allocation13] sm:$0xff]
        %v2725 = vld [vmem:[#allocation13 + $0x8] sm:$0xff]
        %v2726 = vld [vmem:[#allocation13 + $0x10] sm:$0xff]
        %v2727 = vld [vmem:[#allocation13 + $0x18] sm:$0xff]
        %v2728 = vld [vmem:[#allocation13 + $0x20] sm:$0xff]
        %v2729 = vld [vmem:[#allocation13 + $0x28] sm:$0xff]
        %v2730 = vld [vmem:[#allocation13 + $0x30] sm:$0xff]
        %v2731 = vld [vmem:[#allocation13 + $0x38] sm:$0xff]
        %v2732 = vld [vmem:[#allocation13 + $0x40] sm:$0xff]
        %v2733 = vld [vmem:[#allocation13 + $0x48] sm:$0xff]
        %v2734 = vld [vmem:[#allocation13 + $0x50] sm:$0xff]
        %v2735 = vld [vmem:[#allocation13 + $0x58] sm:$0xff]
        %v2736 = vld [vmem:[#allocation13 + $0x60] sm:$0xff]
        %v2737 = vld [vmem:[#allocation13 + $0x68] sm:$0xff]
        %v2738 = vld [vmem:[#allocation13 + $0x70] sm:$0xff]
        %v2739 = vld [vmem:[#allocation13 + $0x78] sm:$0xff]
        %v2740 = vld [vmem:[#allocation13 + $0x80] sm:$0xff]
        %v2741 = vld [vmem:[#allocation13 + $0x88] sm:$0xff]
        %v2742 = vld [vmem:[#allocation13 + $0x90] sm:$0xff]
        %v2743 = vld [vmem:[#allocation13 + $0x98] sm:$0xff]
        %v2744 = vld [vmem:[#allocation13 + $0xa0] sm:$0xff]
        %v2745 = vld [vmem:[#allocation13 + $0xa8] sm:$0xff]
        %v2746 = vld [vmem:[#allocation13 + $0xb0] sm:$0xff]
        %v2747 = vld [vmem:[#allocation13 + $0xb8] sm:$0xff]
        %v2748 = vld [vmem:[#allocation13 + $0xc0] sm:$0xff]
        %v2749 = vld [vmem:[#allocation13 + $0xc8] sm:$0xff]
        %v2750 = vld [vmem:[#allocation13 + $0xd0] sm:$0xff]
        %v2751 = vld [vmem:[#allocation13 + $0xd8] sm:$0xff]
        %v2752 = vld [vmem:[#allocation13 + $0xe0] sm:$0xff]
        %v2753 = vld [vmem:[#allocation13 + $0xe8] sm:$0xff]
        %v2754 = vld [vmem:[#allocation13 + $0xf0] sm:$0xff]
        %v2755 = vld [vmem:[#allocation13 + $0xf8] sm:$0xff]
        %v2788 = vunpack.c.l.b16 %v2724
        %v2789 = vunpack.c.h.b16 %v2724
        %v2790 = vunpack.c.l.b16 %v2725
        %v2791 = vunpack.c.h.b16 %v2725
        %v2792 = vunpack.c.l.b16 %v2726
        %v2793 = vunpack.c.h.b16 %v2726
        %v2794 = vunpack.c.l.b16 %v2727
        %v2795 = vunpack.c.h.b16 %v2727
        %v2796 = vunpack.c.l.b16 %v2728
        %v2797 = vunpack.c.h.b16 %v2728
        %v2798 = vunpack.c.l.b16 %v2729
        %v2799 = vunpack.c.h.b16 %v2729
        %v2800 = vunpack.c.l.b16 %v2730
        %v2801 = vunpack.c.h.b16 %v2730
        %v2802 = vunpack.c.l.b16 %v2731
        %v2803 = vunpack.c.h.b16 %v2731
        %v2804 = vunpack.c.l.b16 %v2732
        %v2805 = vunpack.c.h.b16 %v2732
        %v2806 = vunpack.c.l.b16 %v2733
        %v2807 = vunpack.c.h.b16 %v2733
        %v2808 = vunpack.c.l.b16 %v2734
        %v2809 = vunpack.c.h.b16 %v2734
        %v2810 = vunpack.c.l.b16 %v2735
        %v2811 = vunpack.c.h.b16 %v2735
        %v2812 = vunpack.c.l.b16 %v2736
        %v2813 = vunpack.c.h.b16 %v2736
        %v2814 = vunpack.c.l.b16 %v2737
        %v2815 = vunpack.c.h.b16 %v2737
        %v2816 = vunpack.c.l.b16 %v2738
        %v2817 = vunpack.c.h.b16 %v2738
        %v2818 = vunpack.c.l.b16 %v2739
        %v2819 = vunpack.c.h.b16 %v2739
        %v2820 = vunpack.c.l.b16 %v2740
        %v2821 = vunpack.c.h.b16 %v2740
        %v2822 = vunpack.c.l.b16 %v2741
        %v2823 = vunpack.c.h.b16 %v2741
        %v2824 = vunpack.c.l.b16 %v2742
        %v2825 = vunpack.c.h.b16 %v2742
        %v2826 = vunpack.c.l.b16 %v2743
        %v2827 = vunpack.c.h.b16 %v2743
        %v2828 = vunpack.c.l.b16 %v2744
        %v2829 = vunpack.c.h.b16 %v2744
        %v2830 = vunpack.c.l.b16 %v2745
        %v2831 = vunpack.c.h.b16 %v2745
        %v2832 = vunpack.c.l.b16 %v2746
        %v2833 = vunpack.c.h.b16 %v2746
        %v2834 = vunpack.c.l.b16 %v2747
        %v2835 = vunpack.c.h.b16 %v2747
        %v2836 = vunpack.c.l.b16 %v2748
        %v2837 = vunpack.c.h.b16 %v2748
        %v2838 = vunpack.c.l.b16 %v2749
        %v2839 = vunpack.c.h.b16 %v2749
        %v2840 = vunpack.c.l.b16 %v2750
        %v2841 = vunpack.c.h.b16 %v2750
        %v2842 = vunpack.c.l.b16 %v2751
        %v2843 = vunpack.c.h.b16 %v2751
        %v2844 = vunpack.c.l.b16 %v2752
        %v2845 = vunpack.c.h.b16 %v2752
        %v2846 = vunpack.c.l.b16 %v2753
        %v2847 = vunpack.c.h.b16 %v2753
        %v2848 = vunpack.c.l.b16 %v2754
        %v2849 = vunpack.c.h.b16 %v2754
        %v2850 = vunpack.c.l.b16 %v2755
        %v2851 = vunpack.c.h.b16 %v2755
        %v2852 = vpack.c.b16 %v2792, %v2788
        %v2853 = vpack.c.b16 %v2793, %v2789
        %v2854 = vpack.c.b16 %v2794, %v2790
        %v2855 = vpack.c.b16 %v2795, %v2791
        %v2856 = vpack.c.b16 %v2800, %v2796
        %v2857 = vpack.c.b16 %v2801, %v2797
        %v2858 = vpack.c.b16 %v2802, %v2798
        %v2859 = vpack.c.b16 %v2803, %v2799
        %v2860 = vpack.c.b16 %v2808, %v2804
        %v2861 = vpack.c.b16 %v2809, %v2805
        %v2862 = vpack.c.b16 %v2810, %v2806
        %v2863 = vpack.c.b16 %v2811, %v2807
        %v2864 = vpack.c.b16 %v2816, %v2812
        %v2865 = vpack.c.b16 %v2817, %v2813
        %v2866 = vpack.c.b16 %v2818, %v2814
        %v2867 = vpack.c.b16 %v2819, %v2815
        %v2868 = vpack.c.b16 %v2824, %v2820
        %v2869 = vpack.c.b16 %v2825, %v2821
        %v2870 = vpack.c.b16 %v2826, %v2822
        %v2871 = vpack.c.b16 %v2827, %v2823
        %v2872 = vpack.c.b16 %v2832, %v2828
        %v2873 = vpack.c.b16 %v2833, %v2829
        %v2874 = vpack.c.b16 %v2834, %v2830
        %v2875 = vpack.c.b16 %v2835, %v2831
        %v2876 = vpack.c.b16 %v2840, %v2836
        %v2877 = vpack.c.b16 %v2841, %v2837
        %v2878 = vpack.c.b16 %v2842, %v2838
        %v2879 = vpack.c.b16 %v2843, %v2839
        %v2880 = vpack.c.b16 %v2848, %v2844
        %v2881 = vpack.c.b16 %v2849, %v2845
        %v2882 = vpack.c.b16 %v2850, %v2846
        %v2883 = vpack.c.b16 %v2851, %v2847
        %2916 = vmatprep.subr.bf16.mxu0 %v2881
        %2917 = vmatpush1.bf16.msra.mxu0 %v2880
        %2918 = vmatprep.subr.bf16.mxu0 %v2877
        %2919 = vmatpush1.bf16.msra.mxu0 %v2876
        %2920 = vmatprep.subr.bf16.mxu0 %v2873
        %2921 = vmatpush1.bf16.msra.mxu0 %v2872
        %2922 = vmatprep.subr.bf16.mxu0 %v2869
        %2923 = vmatpush1.bf16.msra.mxu0 %v2868
        %2924 = vmatprep.subr.bf16.mxu0 %v2865
        %2925 = vmatpush1.bf16.msra.mxu0 %v2864
        %2926 = vmatprep.subr.bf16.mxu0 %v2861
        %2927 = vmatpush1.bf16.msra.mxu0 %v2860
        %2928 = vmatprep.subr.bf16.mxu0 %v2857
        %2929 = vmatpush1.bf16.msra.mxu0 %v2856
        %2930 = vmatprep.subr.bf16.mxu0 %v2853
        %2931 = vmatpush1.bf16.msra.mxu0 %v2852
        %2932 = vmatprep.subr.bf16.mxu0 0
        %2933 = vmatpush2.bf16.msra.mxu0 0
        %2934 = vmatprep.subr.bf16.mxu0 0
        %2935 = vmatpush2.bf16.msra.mxu0 0
        %2936 = vmatprep.subr.bf16.mxu0 0
        %2937 = vmatpush2.bf16.msra.mxu0 0
        %2938 = vmatprep.subr.bf16.mxu0 0
        %2939 = vmatpush2.bf16.msra.mxu0 0
        %2940 = vmatprep.subr.bf16.mxu0 0
        %2941 = vmatpush2.bf16.msra.mxu0 0
        %2942 = vmatprep.subr.bf16.mxu0 0
        %2943 = vmatpush2.bf16.msra.mxu0 0
        %2944 = vmatprep.subr.bf16.mxu0 0
        %2945 = vmatpush2.bf16.msra.mxu0 0
        %2946 = vmatprep.subr.bf16.mxu0 0
        %2947 = vmatpush2.bf16.msra.mxu0 0
        %2948 = vmatprep.mubr.bf16.mxu0 0
        %2949 = vmatmul.mubr.bf16.gmra.mxu0 %v2723
        %v2950 = vpop.f32.mrf.mxu0
        %v2951 = vadd.f32 0.0, %v2950
        %v2952 = vpop.f32.mrf.mxu0
        %v2953 = vadd.f32 0.0, %v2952
        %v2954 = vpop.f32.mrf.mxu0
        %v2955 = vpop.f32.mrf.mxu0
        %2956 = vdwg.mxu0
        %2957 = vmatprep.subr.bf16.mxu0 %v2883
        %2958 = vmatpush1.bf16.msra.mxu0 %v2882
        %2959 = vmatprep.subr.bf16.mxu0 %v2879
        %2960 = vmatpush1.bf16.msra.mxu0 %v2878
        %2961 = vmatprep.subr.bf16.mxu0 %v2875
        %2962 = vmatpush1.bf16.msra.mxu0 %v2874
        %2963 = vmatprep.subr.bf16.mxu0 %v2871
        %2964 = vmatpush1.bf16.msra.mxu0 %v2870
        %2965 = vmatprep.subr.bf16.mxu0 %v2867
        %2966 = vmatpush1.bf16.msra.mxu0 %v2866
        %2967 = vmatprep.subr.bf16.mxu0 %v2863
        %2968 = vmatpush1.bf16.msra.mxu0 %v2862
        %2969 = vmatprep.subr.bf16.mxu0 %v2859
        %2970 = vmatpush1.bf16.msra.mxu0 %v2858
        %2971 = vmatprep.subr.bf16.mxu0 %v2855
        %2972 = vmatpush1.bf16.msra.mxu0 %v2854
        %2973 = vmatprep.subr.bf16.mxu0 0
        %2974 = vmatpush2.bf16.msra.mxu0 0
        %2975 = vmatprep.subr.bf16.mxu0 0
        %2976 = vmatpush2.bf16.msra.mxu0 0
        %2977 = vmatprep.subr.bf16.mxu0 0
        %2978 = vmatpush2.bf16.msra.mxu0 0
        %2979 = vmatprep.subr.bf16.mxu0 0
        %2980 = vmatpush2.bf16.msra.mxu0 0
        %2981 = vmatprep.subr.bf16.mxu0 0
        %2982 = vmatpush2.bf16.msra.mxu0 0
        %2983 = vmatprep.subr.bf16.mxu0 0
        %2984 = vmatpush2.bf16.msra.mxu0 0
        %2985 = vmatprep.subr.bf16.mxu0 0
        %2986 = vmatpush2.bf16.msra.mxu0 0
        %2987 = vmatprep.subr.bf16.mxu0 0
        %2988 = vmatpush2.bf16.msra.mxu0 0
        %2989 = vmatprep.mubr.bf16.mxu0 0
        %2990 = vmatmul.mubr.bf16.gmra.mxu0 %v2723
        %v2991 = vpop.f32.mrf.mxu0
        %v2992 = vadd.f32 0.0, %v2991
        %v2993 = vpop.f32.mrf.mxu0
        %v2994 = vadd.f32 0.0, %v2993
        %v2995 = vpop.f32.mrf.mxu0
        %v2996 = vpop.f32.mrf.mxu0
        %2997 = vdwg.mxu0
        %v2998 = vadd.f32 %v2719, %v2951
        %v2999 = vadd.f32 %v2720, %v2953
        %v3000 = vadd.f32 %v2721, %v2992
        %v3001 = vadd.f32 %v2722, %v2994
        %v3002 = vxor.u32 %v2998, 2147483648
        %v3003 = vmul.f32 %v3002, 1.442695
        %v3004 = vpow.pop %v3003
        %v3005 = vadd.f32 %v3004, 1.0
        %v3006 = vrcp.pop %v3005
        %v3007 = vmul.f32 1.0, %v3006
        %v3008 = vxor.u32 %v2999, 2147483648
        %v3009 = vmul.f32 %v3008, 1.442695
        %v3010 = vpow.pop %v3009
        %v3011 = vadd.f32 %v3010, 1.0
        %v3012 = vrcp.pop %v3011
        %v3013 = vmul.f32 1.0, %v3012
        %v3014 = vtanh.pop %v3000
        %v3015 = vxor.u32 %v3001, 2147483648
        %v3016 = vmul.f32 %v3015, 1.442695
        %v3017 = vpow.pop %v3016
        %v3018 = vadd.f32 %v3017, 1.0
        %v3019 = vrcp.pop %v3018
        %v3020 = vmul.f32 1.0, %v3019
        %v3021 = vmul.f32 %v3013, %v2125
        %v3022 = vmul.f32 %v3007, %v3014
        %v3023 = vadd.f32 %v3021, %v3022
        %v3024 = vtanh.pop %v3023
        %v3025 = vmul.f32 %v3020, %v3024
        %v3026 = vsel %vm2718, %v3023, %v2125
        %v3027 = vsel %vm2718, %v3025, %v2126
        %v3028 = vpack.c.bf16 %v3025, %v3025
        %v3029 = vld [vmem:[#allocation14] sm:$0xff]
        %v3030 = vld [vmem:[#allocation14 + $0x8] sm:$0xff]
        %v3031 = vld [vmem:[#allocation14 + $0x10] sm:$0xff]
        %v3032 = vld [vmem:[#allocation14 + $0x18] sm:$0xff]
        %v3033 = vld [vmem:[#allocation14 + $0x20] sm:$0xff]
        %v3034 = vld [vmem:[#allocation14 + $0x28] sm:$0xff]
        %v3035 = vld [vmem:[#allocation14 + $0x30] sm:$0xff]
        %v3036 = vld [vmem:[#allocation14 + $0x38] sm:$0xff]
        %v3037 = vld [vmem:[#allocation14 + $0x40] sm:$0xff]
        %v3038 = vld [vmem:[#allocation14 + $0x48] sm:$0xff]
        %v3039 = vld [vmem:[#allocation14 + $0x50] sm:$0xff]
        %v3040 = vld [vmem:[#allocation14 + $0x58] sm:$0xff]
        %v3041 = vld [vmem:[#allocation14 + $0x60] sm:$0xff]
        %v3042 = vld [vmem:[#allocation14 + $0x68] sm:$0xff]
        %v3043 = vld [vmem:[#allocation14 + $0x70] sm:$0xff]
        %v3044 = vld [vmem:[#allocation14 + $0x78] sm:$0xff]
        %v3045 = vld [vmem:[#allocation14 + $0x80] sm:$0xff]
        %v3046 = vld [vmem:[#allocation14 + $0x88] sm:$0xff]
        %v3047 = vld [vmem:[#allocation14 + $0x90] sm:$0xff]
        %v3048 = vld [vmem:[#allocation14 + $0x98] sm:$0xff]
        %v3049 = vld [vmem:[#allocation14 + $0xa0] sm:$0xff]
        %v3050 = vld [vmem:[#allocation14 + $0xa8] sm:$0xff]
        %v3051 = vld [vmem:[#allocation14 + $0xb0] sm:$0xff]
        %v3052 = vld [vmem:[#allocation14 + $0xb8] sm:$0xff]
        %v3053 = vld [vmem:[#allocation14 + $0xc0] sm:$0xff]
        %v3054 = vld [vmem:[#allocation14 + $0xc8] sm:$0xff]
        %v3055 = vld [vmem:[#allocation14 + $0xd0] sm:$0xff]
        %v3056 = vld [vmem:[#allocation14 + $0xd8] sm:$0xff]
        %v3057 = vld [vmem:[#allocation14 + $0xe0] sm:$0xff]
        %v3058 = vld [vmem:[#allocation14 + $0xe8] sm:$0xff]
        %v3059 = vld [vmem:[#allocation14 + $0xf0] sm:$0xff]
        %v3060 = vld [vmem:[#allocation14 + $0xf8] sm:$0xff]
        %v3061 = vpack.c.bf16 %v2706, %v2706
        %v3062 = vld [vmem:[#allocation16] sm:$0xff]
        %v3063 = vld [vmem:[#allocation16 + $0x8] sm:$0xff]
        %v3064 = vld [vmem:[#allocation16 + $0x10] sm:$0xff]
        %v3065 = vld [vmem:[#allocation16 + $0x18] sm:$0xff]
        %v3066 = vld [vmem:[#allocation16 + $0x20] sm:$0xff]
        %v3067 = vld [vmem:[#allocation16 + $0x28] sm:$0xff]
        %v3068 = vld [vmem:[#allocation16 + $0x30] sm:$0xff]
        %v3069 = vld [vmem:[#allocation16 + $0x38] sm:$0xff]
        %v3070 = vld [vmem:[#allocation16 + $0x40] sm:$0xff]
        %v3071 = vld [vmem:[#allocation16 + $0x48] sm:$0xff]
        %v3072 = vld [vmem:[#allocation16 + $0x50] sm:$0xff]
        %v3073 = vld [vmem:[#allocation16 + $0x58] sm:$0xff]
        %v3074 = vld [vmem:[#allocation16 + $0x60] sm:$0xff]
        %v3075 = vld [vmem:[#allocation16 + $0x68] sm:$0xff]
        %v3076 = vld [vmem:[#allocation16 + $0x70] sm:$0xff]
        %v3077 = vld [vmem:[#allocation16 + $0x78] sm:$0xff]
        %v3078 = vld [vmem:[#allocation16 + $0x80] sm:$0xff]
        %v3079 = vld [vmem:[#allocation16 + $0x88] sm:$0xff]
        %v3080 = vld [vmem:[#allocation16 + $0x90] sm:$0xff]
        %v3081 = vld [vmem:[#allocation16 + $0x98] sm:$0xff]
        %v3082 = vld [vmem:[#allocation16 + $0xa0] sm:$0xff]
        %v3083 = vld [vmem:[#allocation16 + $0xa8] sm:$0xff]
        %v3084 = vld [vmem:[#allocation16 + $0xb0] sm:$0xff]
        %v3085 = vld [vmem:[#allocation16 + $0xb8] sm:$0xff]
        %v3086 = vld [vmem:[#allocation16 + $0xc0] sm:$0xff]
        %v3087 = vld [vmem:[#allocation16 + $0xc8] sm:$0xff]
        %v3088 = vld [vmem:[#allocation16 + $0xd0] sm:$0xff]
        %v3089 = vld [vmem:[#allocation16 + $0xd8] sm:$0xff]
        %v3090 = vld [vmem:[#allocation16 + $0xe0] sm:$0xff]
        %v3091 = vld [vmem:[#allocation16 + $0xe8] sm:$0xff]
        %v3092 = vld [vmem:[#allocation16 + $0xf0] sm:$0xff]
        %v3093 = vld [vmem:[#allocation16 + $0xf8] sm:$0xff]
        %v3126 = vunpack.c.l.b16 %v3062
        %v3127 = vunpack.c.h.b16 %v3062
        %v3128 = vunpack.c.l.b16 %v3063
        %v3129 = vunpack.c.h.b16 %v3063
        %v3130 = vunpack.c.l.b16 %v3064
        %v3131 = vunpack.c.h.b16 %v3064
        %v3132 = vunpack.c.l.b16 %v3065
        %v3133 = vunpack.c.h.b16 %v3065
        %v3134 = vunpack.c.l.b16 %v3066
        %v3135 = vunpack.c.h.b16 %v3066
        %v3136 = vunpack.c.l.b16 %v3067
        %v3137 = vunpack.c.h.b16 %v3067
        %v3138 = vunpack.c.l.b16 %v3068
        %v3139 = vunpack.c.h.b16 %v3068
        %v3140 = vunpack.c.l.b16 %v3069
        %v3141 = vunpack.c.h.b16 %v3069
        %v3142 = vunpack.c.l.b16 %v3070
        %v3143 = vunpack.c.h.b16 %v3070
        %v3144 = vunpack.c.l.b16 %v3071
        %v3145 = vunpack.c.h.b16 %v3071
        %v3146 = vunpack.c.l.b16 %v3072
        %v3147 = vunpack.c.h.b16 %v3072
        %v3148 = vunpack.c.l.b16 %v3073
        %v3149 = vunpack.c.h.b16 %v3073
        %v3150 = vunpack.c.l.b16 %v3074
        %v3151 = vunpack.c.h.b16 %v3074
        %v3152 = vunpack.c.l.b16 %v3075
        %v3153 = vunpack.c.h.b16 %v3075
        %v3154 = vunpack.c.l.b16 %v3076
        %v3155 = vunpack.c.h.b16 %v3076
        %v3156 = vunpack.c.l.b16 %v3077
        %v3157 = vunpack.c.h.b16 %v3077
        %v3158 = vunpack.c.l.b16 %v3078
        %v3159 = vunpack.c.h.b16 %v3078
        %v3160 = vunpack.c.l.b16 %v3079
        %v3161 = vunpack.c.h.b16 %v3079
        %v3162 = vunpack.c.l.b16 %v3080
        %v3163 = vunpack.c.h.b16 %v3080
        %v3164 = vunpack.c.l.b16 %v3081
        %v3165 = vunpack.c.h.b16 %v3081
        %v3166 = vunpack.c.l.b16 %v3082
        %v3167 = vunpack.c.h.b16 %v3082
        %v3168 = vunpack.c.l.b16 %v3083
        %v3169 = vunpack.c.h.b16 %v3083
        %v3170 = vunpack.c.l.b16 %v3084
        %v3171 = vunpack.c.h.b16 %v3084
        %v3172 = vunpack.c.l.b16 %v3085
        %v3173 = vunpack.c.h.b16 %v3085
        %v3174 = vunpack.c.l.b16 %v3086
        %v3175 = vunpack.c.h.b16 %v3086
        %v3176 = vunpack.c.l.b16 %v3087
        %v3177 = vunpack.c.h.b16 %v3087
        %v3178 = vunpack.c.l.b16 %v3088
        %v3179 = vunpack.c.h.b16 %v3088
        %v3180 = vunpack.c.l.b16 %v3089
        %v3181 = vunpack.c.h.b16 %v3089
        %v3182 = vunpack.c.l.b16 %v3090
        %v3183 = vunpack.c.h.b16 %v3090
        %v3184 = vunpack.c.l.b16 %v3091
        %v3185 = vunpack.c.h.b16 %v3091
        %v3186 = vunpack.c.l.b16 %v3092
        %v3187 = vunpack.c.h.b16 %v3092
        %v3188 = vunpack.c.l.b16 %v3093
        %v3189 = vunpack.c.h.b16 %v3093
        %v3190 = vpack.c.b16 %v3130, %v3126
        %v3191 = vpack.c.b16 %v3131, %v3127
        %v3192 = vpack.c.b16 %v3132, %v3128
        %v3193 = vpack.c.b16 %v3133, %v3129
        %v3194 = vpack.c.b16 %v3138, %v3134
        %v3195 = vpack.c.b16 %v3139, %v3135
        %v3196 = vpack.c.b16 %v3140, %v3136
        %v3197 = vpack.c.b16 %v3141, %v3137
        %v3198 = vpack.c.b16 %v3146, %v3142
        %v3199 = vpack.c.b16 %v3147, %v3143
        %v3200 = vpack.c.b16 %v3148, %v3144
        %v3201 = vpack.c.b16 %v3149, %v3145
        %v3202 = vpack.c.b16 %v3154, %v3150
        %v3203 = vpack.c.b16 %v3155, %v3151
        %v3204 = vpack.c.b16 %v3156, %v3152
        %v3205 = vpack.c.b16 %v3157, %v3153
        %v3206 = vpack.c.b16 %v3162, %v3158
        %v3207 = vpack.c.b16 %v3163, %v3159
        %v3208 = vpack.c.b16 %v3164, %v3160
        %v3209 = vpack.c.b16 %v3165, %v3161
        %v3210 = vpack.c.b16 %v3170, %v3166
        %v3211 = vpack.c.b16 %v3171, %v3167
        %v3212 = vpack.c.b16 %v3172, %v3168
        %v3213 = vpack.c.b16 %v3173, %v3169
        %v3214 = vpack.c.b16 %v3178, %v3174
        %v3215 = vpack.c.b16 %v3179, %v3175
        %v3216 = vpack.c.b16 %v3180, %v3176
        %v3217 = vpack.c.b16 %v3181, %v3177
        %v3218 = vpack.c.b16 %v3186, %v3182
        %v3219 = vpack.c.b16 %v3187, %v3183
        %v3220 = vpack.c.b16 %v3188, %v3184
        %v3221 = vpack.c.b16 %v3189, %v3185
        %3254 = vmatprep.subr.bf16.mxu0 %v3219
        %3255 = vmatpush1.bf16.msra.mxu0 %v3218
        %3256 = vmatprep.subr.bf16.mxu0 %v3215
        %3257 = vmatpush1.bf16.msra.mxu0 %v3214
        %3258 = vmatprep.subr.bf16.mxu0 %v3211
        %3259 = vmatpush1.bf16.msra.mxu0 %v3210
        %3260 = vmatprep.subr.bf16.mxu0 %v3207
        %3261 = vmatpush1.bf16.msra.mxu0 %v3206
        %3262 = vmatprep.subr.bf16.mxu0 %v3203
        %3263 = vmatpush1.bf16.msra.mxu0 %v3202
        %3264 = vmatprep.subr.bf16.mxu0 %v3199
        %3265 = vmatpush1.bf16.msra.mxu0 %v3198
        %3266 = vmatprep.subr.bf16.mxu0 %v3195
        %3267 = vmatpush1.bf16.msra.mxu0 %v3194
        %3268 = vmatprep.subr.bf16.mxu0 %v3191
        %3269 = vmatpush1.bf16.msra.mxu0 %v3190
        %3270 = vmatprep.subr.bf16.mxu0 0
        %3271 = vmatpush2.bf16.msra.mxu0 0
        %3272 = vmatprep.subr.bf16.mxu0 0
        %3273 = vmatpush2.bf16.msra.mxu0 0
        %3274 = vmatprep.subr.bf16.mxu0 0
        %3275 = vmatpush2.bf16.msra.mxu0 0
        %3276 = vmatprep.subr.bf16.mxu0 0
        %3277 = vmatpush2.bf16.msra.mxu0 0
        %3278 = vmatprep.subr.bf16.mxu0 0
        %3279 = vmatpush2.bf16.msra.mxu0 0
        %3280 = vmatprep.subr.bf16.mxu0 0
        %3281 = vmatpush2.bf16.msra.mxu0 0
        %3282 = vmatprep.subr.bf16.mxu0 0
        %3283 = vmatpush2.bf16.msra.mxu0 0
        %3284 = vmatprep.subr.bf16.mxu0 0
        %3285 = vmatpush2.bf16.msra.mxu0 0
        %3286 = vmatprep.mubr.bf16.mxu0 0
        %3287 = vmatmul.mubr.bf16.gmra.mxu0 %v3061
        %v3288 = vpop.f32.mrf.mxu0
        %v3289 = vadd.f32 0.0, %v3288
        %v3290 = vpop.f32.mrf.mxu0
        %v3291 = vadd.f32 0.0, %v3290
        %v3292 = vpop.f32.mrf.mxu0
        %v3293 = vpop.f32.mrf.mxu0
        %3294 = vdwg.mxu0
        %3295 = vmatprep.subr.bf16.mxu0 %v3221
        %3296 = vmatpush1.bf16.msra.mxu0 %v3220
        %3297 = vmatprep.subr.bf16.mxu0 %v3217
        %3298 = vmatpush1.bf16.msra.mxu0 %v3216
        %3299 = vmatprep.subr.bf16.mxu0 %v3213
        %3300 = vmatpush1.bf16.msra.mxu0 %v3212
        %3301 = vmatprep.subr.bf16.mxu0 %v3209
        %3302 = vmatpush1.bf16.msra.mxu0 %v3208
        %3303 = vmatprep.subr.bf16.mxu0 %v3205
        %3304 = vmatpush1.bf16.msra.mxu0 %v3204
        %3305 = vmatprep.subr.bf16.mxu0 %v3201
        %3306 = vmatpush1.bf16.msra.mxu0 %v3200
        %3307 = vmatprep.subr.bf16.mxu0 %v3197
        %3308 = vmatpush1.bf16.msra.mxu0 %v3196
        %3309 = vmatprep.subr.bf16.mxu0 %v3193
        %3310 = vmatpush1.bf16.msra.mxu0 %v3192
        %3311 = vmatprep.subr.bf16.mxu0 0
        %3312 = vmatpush2.bf16.msra.mxu0 0
        %3313 = vmatprep.subr.bf16.mxu0 0
        %3314 = vmatpush2.bf16.msra.mxu0 0
        %3315 = vmatprep.subr.bf16.mxu0 0
        %3316 = vmatpush2.bf16.msra.mxu0 0
        %3317 = vmatprep.subr.bf16.mxu0 0
        %3318 = vmatpush2.bf16.msra.mxu0 0
        %3319 = vmatprep.subr.bf16.mxu0 0
        %3320 = vmatpush2.bf16.msra.mxu0 0
        %3321 = vmatprep.subr.bf16.mxu0 0
        %3322 = vmatpush2.bf16.msra.mxu0 0
        %3323 = vmatprep.subr.bf16.mxu0 0
        %3324 = vmatpush2.bf16.msra.mxu0 0
        %3325 = vmatprep.subr.bf16.mxu0 0
        %3326 = vmatpush2.bf16.msra.mxu0 0
        %3327 = vmatprep.mubr.bf16.mxu0 0
        %3328 = vmatmul.mubr.bf16.gmra.mxu0 %v3061
        %v3329 = vpop.f32.mrf.mxu0
        %v3330 = vadd.f32 0.0, %v3329
        %v3331 = vpop.f32.mrf.mxu0
        %v3332 = vadd.f32 0.0, %v3331
        %v3333 = vpop.f32.mrf.mxu0
        %v3334 = vpop.f32.mrf.mxu0
        %3335 = vdwg.mxu0
        %v3368 = vunpack.c.l.b16 %v3029
        %v3369 = vunpack.c.h.b16 %v3029
        %v3370 = vunpack.c.l.b16 %v3030
        %v3371 = vunpack.c.h.b16 %v3030
        %v3372 = vunpack.c.l.b16 %v3031
        %v3373 = vunpack.c.h.b16 %v3031
        %v3374 = vunpack.c.l.b16 %v3032
        %v3375 = vunpack.c.h.b16 %v3032
        %v3376 = vunpack.c.l.b16 %v3033
        %v3377 = vunpack.c.h.b16 %v3033
        %v3378 = vunpack.c.l.b16 %v3034
        %v3379 = vunpack.c.h.b16 %v3034
        %v3380 = vunpack.c.l.b16 %v3035
        %v3381 = vunpack.c.h.b16 %v3035
        %v3382 = vunpack.c.l.b16 %v3036
        %v3383 = vunpack.c.h.b16 %v3036
        %v3384 = vunpack.c.l.b16 %v3037
        %v3385 = vunpack.c.h.b16 %v3037
        %v3386 = vunpack.c.l.b16 %v3038
        %v3387 = vunpack.c.h.b16 %v3038
        %v3388 = vunpack.c.l.b16 %v3039
        %v3389 = vunpack.c.h.b16 %v3039
        %v3390 = vunpack.c.l.b16 %v3040
        %v3391 = vunpack.c.h.b16 %v3040
        %v3392 = vunpack.c.l.b16 %v3041
        %v3393 = vunpack.c.h.b16 %v3041
        %v3394 = vunpack.c.l.b16 %v3042
        %v3395 = vunpack.c.h.b16 %v3042
        %v3396 = vunpack.c.l.b16 %v3043
        %v3397 = vunpack.c.h.b16 %v3043
        %v3398 = vunpack.c.l.b16 %v3044
        %v3399 = vunpack.c.h.b16 %v3044
        %v3400 = vunpack.c.l.b16 %v3045
        %v3401 = vunpack.c.h.b16 %v3045
        %v3402 = vunpack.c.l.b16 %v3046
        %v3403 = vunpack.c.h.b16 %v3046
        %v3404 = vunpack.c.l.b16 %v3047
        %v3405 = vunpack.c.h.b16 %v3047
        %v3406 = vunpack.c.l.b16 %v3048
        %v3407 = vunpack.c.h.b16 %v3048
        %v3408 = vunpack.c.l.b16 %v3049
        %v3409 = vunpack.c.h.b16 %v3049
        %v3410 = vunpack.c.l.b16 %v3050
        %v3411 = vunpack.c.h.b16 %v3050
        %v3412 = vunpack.c.l.b16 %v3051
        %v3413 = vunpack.c.h.b16 %v3051
        %v3414 = vunpack.c.l.b16 %v3052
        %v3415 = vunpack.c.h.b16 %v3052
        %v3416 = vunpack.c.l.b16 %v3053
        %v3417 = vunpack.c.h.b16 %v3053
        %v3418 = vunpack.c.l.b16 %v3054
        %v3419 = vunpack.c.h.b16 %v3054
        %v3420 = vunpack.c.l.b16 %v3055
        %v3421 = vunpack.c.h.b16 %v3055
        %v3422 = vunpack.c.l.b16 %v3056
        %v3423 = vunpack.c.h.b16 %v3056
        %v3424 = vunpack.c.l.b16 %v3057
        %v3425 = vunpack.c.h.b16 %v3057
        %v3426 = vunpack.c.l.b16 %v3058
        %v3427 = vunpack.c.h.b16 %v3058
        %v3428 = vunpack.c.l.b16 %v3059
        %v3429 = vunpack.c.h.b16 %v3059
        %v3430 = vunpack.c.l.b16 %v3060
        %v3431 = vunpack.c.h.b16 %v3060
        %v3432 = vpack.c.b16 %v3372, %v3368
        %v3433 = vpack.c.b16 %v3373, %v3369
        %v3434 = vpack.c.b16 %v3374, %v3370
        %v3435 = vpack.c.b16 %v3375, %v3371
        %v3436 = vpack.c.b16 %v3380, %v3376
        %v3437 = vpack.c.b16 %v3381, %v3377
        %v3438 = vpack.c.b16 %v3382, %v3378
        %v3439 = vpack.c.b16 %v3383, %v3379
        %v3440 = vpack.c.b16 %v3388, %v3384
        %v3441 = vpack.c.b16 %v3389, %v3385
        %v3442 = vpack.c.b16 %v3390, %v3386
        %v3443 = vpack.c.b16 %v3391, %v3387
        %v3444 = vpack.c.b16 %v3396, %v3392
        %v3445 = vpack.c.b16 %v3397, %v3393
        %v3446 = vpack.c.b16 %v3398, %v3394
        %v3447 = vpack.c.b16 %v3399, %v3395
        %v3448 = vpack.c.b16 %v3404, %v3400
        %v3449 = vpack.c.b16 %v3405, %v3401
        %v3450 = vpack.c.b16 %v3406, %v3402
        %v3451 = vpack.c.b16 %v3407, %v3403
        %v3452 = vpack.c.b16 %v3412, %v3408
        %v3453 = vpack.c.b16 %v3413, %v3409
        %v3454 = vpack.c.b16 %v3414, %v3410
        %v3455 = vpack.c.b16 %v3415, %v3411
        %v3456 = vpack.c.b16 %v3420, %v3416
        %v3457 = vpack.c.b16 %v3421, %v3417
        %v3458 = vpack.c.b16 %v3422, %v3418
        %v3459 = vpack.c.b16 %v3423, %v3419
        %v3460 = vpack.c.b16 %v3428, %v3424
        %v3461 = vpack.c.b16 %v3429, %v3425
        %v3462 = vpack.c.b16 %v3430, %v3426
        %v3463 = vpack.c.b16 %v3431, %v3427
        %3496 = vmatprep.subr.bf16.mxu0 %v3461
        %3497 = vmatpush1.bf16.msra.mxu0 %v3460
        %3498 = vmatprep.subr.bf16.mxu0 %v3457
        %3499 = vmatpush1.bf16.msra.mxu0 %v3456
        %3500 = vmatprep.subr.bf16.mxu0 %v3453
        %3501 = vmatpush1.bf16.msra.mxu0 %v3452
        %3502 = vmatprep.subr.bf16.mxu0 %v3449
        %3503 = vmatpush1.bf16.msra.mxu0 %v3448
        %3504 = vmatprep.subr.bf16.mxu0 %v3445
        %3505 = vmatpush1.bf16.msra.mxu0 %v3444
        %3506 = vmatprep.subr.bf16.mxu0 %v3441
        %3507 = vmatpush1.bf16.msra.mxu0 %v3440
        %3508 = vmatprep.subr.bf16.mxu0 %v3437
        %3509 = vmatpush1.bf16.msra.mxu0 %v3436
        %3510 = vmatprep.subr.bf16.mxu0 %v3433
        %3511 = vmatpush1.bf16.msra.mxu0 %v3432
        %3512 = vmatprep.subr.bf16.mxu0 0
        %3513 = vmatpush2.bf16.msra.mxu0 0
        %3514 = vmatprep.subr.bf16.mxu0 0
        %3515 = vmatpush2.bf16.msra.mxu0 0
        %3516 = vmatprep.subr.bf16.mxu0 0
        %3517 = vmatpush2.bf16.msra.mxu0 0
        %3518 = vmatprep.subr.bf16.mxu0 0
        %3519 = vmatpush2.bf16.msra.mxu0 0
        %3520 = vmatprep.subr.bf16.mxu0 0
        %3521 = vmatpush2.bf16.msra.mxu0 0
        %3522 = vmatprep.subr.bf16.mxu0 0
        %3523 = vmatpush2.bf16.msra.mxu0 0
        %3524 = vmatprep.subr.bf16.mxu0 0
        %3525 = vmatpush2.bf16.msra.mxu0 0
        %3526 = vmatprep.subr.bf16.mxu0 0
        %3527 = vmatpush2.bf16.msra.mxu0 0
        %3528 = vmatprep.mubr.bf16.mxu0 0
        %3529 = vmatmul.mubr.bf16.gmra.mxu0 %v3028
        %v3530 = vpop.f32.mrf.mxu0
        %v3531 = vadd.f32 %v3289, %v3530
        %v3532 = vpop.f32.mrf.mxu0
        %v3533 = vadd.f32 %v3291, %v3532
        %v3534 = vpop.f32.mrf.mxu0
        %v3535 = vpop.f32.mrf.mxu0
        %3536 = vdwg.mxu0
        %3537 = vmatprep.subr.bf16.mxu0 %v3463
        %3538 = vmatpush1.bf16.msra.mxu0 %v3462
        %3539 = vmatprep.subr.bf16.mxu0 %v3459
        %3540 = vmatpush1.bf16.msra.mxu0 %v3458
        %3541 = vmatprep.subr.bf16.mxu0 %v3455
        %3542 = vmatpush1.bf16.msra.mxu0 %v3454
        %3543 = vmatprep.subr.bf16.mxu0 %v3451
        %3544 = vmatpush1.bf16.msra.mxu0 %v3450
        %3545 = vmatprep.subr.bf16.mxu0 %v3447
        %3546 = vmatpush1.bf16.msra.mxu0 %v3446
        %3547 = vmatprep.subr.bf16.mxu0 %v3443
        %3548 = vmatpush1.bf16.msra.mxu0 %v3442
        %3549 = vmatprep.subr.bf16.mxu0 %v3439
        %3550 = vmatpush1.bf16.msra.mxu0 %v3438
        %3551 = vmatprep.subr.bf16.mxu0 %v3435
        %3552 = vmatpush1.bf16.msra.mxu0 %v3434
        %3553 = vmatprep.subr.bf16.mxu0 0
        %3554 = vmatpush2.bf16.msra.mxu0 0
        %3555 = vmatprep.subr.bf16.mxu0 0
        %3556 = vmatpush2.bf16.msra.mxu0 0
        %3557 = vmatprep.subr.bf16.mxu0 0
        %3558 = vmatpush2.bf16.msra.mxu0 0
        %3559 = vmatprep.subr.bf16.mxu0 0
        %3560 = vmatpush2.bf16.msra.mxu0 0
        %3561 = vmatprep.subr.bf16.mxu0 0
        %3562 = vmatpush2.bf16.msra.mxu0 0
        %3563 = vmatprep.subr.bf16.mxu0 0
        %3564 = vmatpush2.bf16.msra.mxu0 0
        %3565 = vmatprep.subr.bf16.mxu0 0
        %3566 = vmatpush2.bf16.msra.mxu0 0
        %3567 = vmatprep.subr.bf16.mxu0 0
        %3568 = vmatpush2.bf16.msra.mxu0 0
        %3569 = vmatprep.mubr.bf16.mxu0 0
        %3570 = vmatmul.mubr.bf16.gmra.mxu0 %v3028
        %v3571 = vpop.f32.mrf.mxu0
        %v3572 = vadd.f32 %v3330, %v3571
        %v3573 = vpop.f32.mrf.mxu0
        %v3574 = vadd.f32 %v3332, %v3573
        %v3575 = vpop.f32.mrf.mxu0
        %v3576 = vpop.f32.mrf.mxu0
        %3577 = vdwg.mxu0
        %v3578 = vadd.f32 %v3531, %v887
        %v3579 = vadd.f32 %v3533, %v891
        %v3580 = vadd.f32 %v3572, %v895
        %v3581 = vadd.f32 %v3574, %v899
        %v3582 = vxor.u32 %v3578, 2147483648
        %v3583 = vmul.f32 %v3582, 1.442695
        %v3584 = vpow.pop %v3583
        %v3585 = vadd.f32 %v3584, 1.0
        %v3586 = vrcp.pop %v3585
        %v3587 = vmul.f32 1.0, %v3586
        %v3588 = vxor.u32 %v3579, 2147483648
        %v3589 = vmul.f32 %v3588, 1.442695
        %v3590 = vpow.pop %v3589
        %v3591 = vadd.f32 %v3590, 1.0
        %v3592 = vrcp.pop %v3591
        %v3593 = vmul.f32 1.0, %v3592
        %v3594 = vtanh.pop %v3580
        %v3595 = vxor.u32 %v3581, 2147483648
        %v3596 = vmul.f32 %v3595, 1.442695
        %v3597 = vpow.pop %v3596
        %v3598 = vadd.f32 %v3597, 1.0
        %v3599 = vrcp.pop %v3598
        %v3600 = vmul.f32 1.0, %v3599
        %v3601 = vmul.f32 %v3593, %v2705
        %v3602 = vmul.f32 %v3587, %v3594
        %v3603 = vadd.f32 %v3601, %v3602
        %v3604 = vtanh.pop %v3603
        %v3605 = vmul.f32 %v3600, %v3604
        %v3606 = vsel %vm2718, %v3603, %v2705
        %v3607 = vsel %vm2718, %v3605, %v2706
        %v3608 = vsel %vm2718, %v3605, 0.0
        %v3609 = vpack.c.bf16 %v3608, %v3608
        %s3610 = scalar_lea.vmem %s510, 8 [#allocation17]
        %3611 = vst [vmem:[%s3610] sm:$0xf] %v3609
        %s3612 = sadd.s32 %s904, 3
        %v3613 = vstv %s3612
        %vm3614 = vcmp.gt.s32.totalorder %v881, %v3613
        %v3615 = vsel %vm3614, 1, 0
        %3616 = vset.pattern.permute.xlu0 0
        %3617 = vperm.xlu0 %3616, %v3615
        %v3618 = vpop.permute.xlu0 %3617
        %vm3619 = vcmp.eq.s32.totalorder %v3618, 1
        %v3620 = vld [vmem:[#allocation4 + $0x60] sm:$0xff]
        %v3621 = vld [vmem:[#allocation4 + $0x68] sm:$0xff]
        %v3622 = vld [vmem:[#allocation4 + $0x70] sm:$0xff]
        %v3623 = vld [vmem:[#allocation4 + $0x78] sm:$0xff]
        %v3624 = vpack.c.bf16 %v3027, %v3027
        %v3625 = vld [vmem:[#allocation13] sm:$0xff]
        %v3626 = vld [vmem:[#allocation13 + $0x8] sm:$0xff]
        %v3627 = vld [vmem:[#allocation13 + $0x10] sm:$0xff]
        %v3628 = vld [vmem:[#allocation13 + $0x18] sm:$0xff]
        %v3629 = vld [vmem:[#allocation13 + $0x20] sm:$0xff]
        %v3630 = vld [vmem:[#allocation13 + $0x28] sm:$0xff]
        %v3631 = vld [vmem:[#allocation13 + $0x30] sm:$0xff]
        %v3632 = vld [vmem:[#allocation13 + $0x38] sm:$0xff]
        %v3633 = vld [vmem:[#allocation13 + $0x40] sm:$0xff]
        %v3634 = vld [vmem:[#allocation13 + $0x48] sm:$0xff]
        %v3635 = vld [vmem:[#allocation13 + $0x50] sm:$0xff]
        %v3636 = vld [vmem:[#allocation13 + $0x58] sm:$0xff]
        %v3637 = vld [vmem:[#allocation13 + $0x60] sm:$0xff]
        %v3638 = vld [vmem:[#allocation13 + $0x68] sm:$0xff]
        %v3639 = vld [vmem:[#allocation13 + $0x70] sm:$0xff]
        %v3640 = vld [vmem:[#allocation13 + $0x78] sm:$0xff]
        %v3641 = vld [vmem:[#allocation13 + $0x80] sm:$0xff]
        %v3642 = vld [vmem:[#allocation13 + $0x88] sm:$0xff]
        %v3643 = vld [vmem:[#allocation13 + $0x90] sm:$0xff]
        %v3644 = vld [vmem:[#allocation13 + $0x98] sm:$0xff]
        %v3645 = vld [vmem:[#allocation13 + $0xa0] sm:$0xff]
        %v3646 = vld [vmem:[#allocation13 + $0xa8] sm:$0xff]
        %v3647 = vld [vmem:[#allocation13 + $0xb0] sm:$0xff]
        %v3648 = vld [vmem:[#allocation13 + $0xb8] sm:$0xff]
        %v3649 = vld [vmem:[#allocation13 + $0xc0] sm:$0xff]
        %v3650 = vld [vmem:[#allocation13 + $0xc8] sm:$0xff]
        %v3651 = vld [vmem:[#allocation13 + $0xd0] sm:$0xff]
        %v3652 = vld [vmem:[#allocation13 + $0xd8] sm:$0xff]
        %v3653 = vld [vmem:[#allocation13 + $0xe0] sm:$0xff]
        %v3654 = vld [vmem:[#allocation13 + $0xe8] sm:$0xff]
        %v3655 = vld [vmem:[#allocation13 + $0xf0] sm:$0xff]
        %v3656 = vld [vmem:[#allocation13 + $0xf8] sm:$0xff]
        %v3689 = vunpack.c.l.b16 %v3625
        %v3690 = vunpack.c.h.b16 %v3625
        %v3691 = vunpack.c.l.b16 %v3626
        %v3692 = vunpack.c.h.b16 %v3626
        %v3693 = vunpack.c.l.b16 %v3627
        %v3694 = vunpack.c.h.b16 %v3627
        %v3695 = vunpack.c.l.b16 %v3628
        %v3696 = vunpack.c.h.b16 %v3628
        %v3697 = vunpack.c.l.b16 %v3629
        %v3698 = vunpack.c.h.b16 %v3629
        %v3699 = vunpack.c.l.b16 %v3630
        %v3700 = vunpack.c.h.b16 %v3630
        %v3701 = vunpack.c.l.b16 %v3631
        %v3702 = vunpack.c.h.b16 %v3631
        %v3703 = vunpack.c.l.b16 %v3632
        %v3704 = vunpack.c.h.b16 %v3632
        %v3705 = vunpack.c.l.b16 %v3633
        %v3706 = vunpack.c.h.b16 %v3633
        %v3707 = vunpack.c.l.b16 %v3634
        %v3708 = vunpack.c.h.b16 %v3634
        %v3709 = vunpack.c.l.b16 %v3635
        %v3710 = vunpack.c.h.b16 %v3635
        %v3711 = vunpack.c.l.b16 %v3636
        %v3712 = vunpack.c.h.b16 %v3636
        %v3713 = vunpack.c.l.b16 %v3637
        %v3714 = vunpack.c.h.b16 %v3637
        %v3715 = vunpack.c.l.b16 %v3638
        %v3716 = vunpack.c.h.b16 %v3638
        %v3717 = vunpack.c.l.b16 %v3639
        %v3718 = vunpack.c.h.b16 %v3639
        %v3719 = vunpack.c.l.b16 %v3640
        %v3720 = vunpack.c.h.b16 %v3640
        %v3721 = vunpack.c.l.b16 %v3641
        %v3722 = vunpack.c.h.b16 %v3641
        %v3723 = vunpack.c.l.b16 %v3642
        %v3724 = vunpack.c.h.b16 %v3642
        %v3725 = vunpack.c.l.b16 %v3643
        %v3726 = vunpack.c.h.b16 %v3643
        %v3727 = vunpack.c.l.b16 %v3644
        %v3728 = vunpack.c.h.b16 %v3644
        %v3729 = vunpack.c.l.b16 %v3645
        %v3730 = vunpack.c.h.b16 %v3645
        %v3731 = vunpack.c.l.b16 %v3646
        %v3732 = vunpack.c.h.b16 %v3646
        %v3733 = vunpack.c.l.b16 %v3647
        %v3734 = vunpack.c.h.b16 %v3647
        %v3735 = vunpack.c.l.b16 %v3648
        %v3736 = vunpack.c.h.b16 %v3648
        %v3737 = vunpack.c.l.b16 %v3649
        %v3738 = vunpack.c.h.b16 %v3649
        %v3739 = vunpack.c.l.b16 %v3650
        %v3740 = vunpack.c.h.b16 %v3650
        %v3741 = vunpack.c.l.b16 %v3651
        %v3742 = vunpack.c.h.b16 %v3651
        %v3743 = vunpack.c.l.b16 %v3652
        %v3744 = vunpack.c.h.b16 %v3652
        %v3745 = vunpack.c.l.b16 %v3653
        %v3746 = vunpack.c.h.b16 %v3653
        %v3747 = vunpack.c.l.b16 %v3654
        %v3748 = vunpack.c.h.b16 %v3654
        %v3749 = vunpack.c.l.b16 %v3655
        %v3750 = vunpack.c.h.b16 %v3655
        %v3751 = vunpack.c.l.b16 %v3656
        %v3752 = vunpack.c.h.b16 %v3656
        %v3753 = vpack.c.b16 %v3693, %v3689
        %v3754 = vpack.c.b16 %v3694, %v3690
        %v3755 = vpack.c.b16 %v3695, %v3691
        %v3756 = vpack.c.b16 %v3696, %v3692
        %v3757 = vpack.c.b16 %v3701, %v3697
        %v3758 = vpack.c.b16 %v3702, %v3698
        %v3759 = vpack.c.b16 %v3703, %v3699
        %v3760 = vpack.c.b16 %v3704, %v3700
        %v3761 = vpack.c.b16 %v3709, %v3705
        %v3762 = vpack.c.b16 %v3710, %v3706
        %v3763 = vpack.c.b16 %v3711, %v3707
        %v3764 = vpack.c.b16 %v3712, %v3708
        %v3765 = vpack.c.b16 %v3717, %v3713
        %v3766 = vpack.c.b16 %v3718, %v3714
        %v3767 = vpack.c.b16 %v3719, %v3715
        %v3768 = vpack.c.b16 %v3720, %v3716
        %v3769 = vpack.c.b16 %v3725, %v3721
        %v3770 = vpack.c.b16 %v3726, %v3722
        %v3771 = vpack.c.b16 %v3727, %v3723
        %v3772 = vpack.c.b16 %v3728, %v3724
        %v3773 = vpack.c.b16 %v3733, %v3729
        %v3774 = vpack.c.b16 %v3734, %v3730
        %v3775 = vpack.c.b16 %v3735, %v3731
        %v3776 = vpack.c.b16 %v3736, %v3732
        %v3777 = vpack.c.b16 %v3741, %v3737
        %v3778 = vpack.c.b16 %v3742, %v3738
        %v3779 = vpack.c.b16 %v3743, %v3739
        %v3780 = vpack.c.b16 %v3744, %v3740
        %v3781 = vpack.c.b16 %v3749, %v3745
        %v3782 = vpack.c.b16 %v3750, %v3746
        %v3783 = vpack.c.b16 %v3751, %v3747
        %v3784 = vpack.c.b16 %v3752, %v3748
        %3817 = vmatprep.subr.bf16.mxu0 %v3782
        %3818 = vmatpush1.bf16.msra.mxu0 %v3781
        %3819 = vmatprep.subr.bf16.mxu0 %v3778
        %3820 = vmatpush1.bf16.msra.mxu0 %v3777
        %3821 = vmatprep.subr.bf16.mxu0 %v3774
        %3822 = vmatpush1.bf16.msra.mxu0 %v3773
        %3823 = vmatprep.subr.bf16.mxu0 %v3770
        %3824 = vmatpush1.bf16.msra.mxu0 %v3769
        %3825 = vmatprep.subr.bf16.mxu0 %v3766
        %3826 = vmatpush1.bf16.msra.mxu0 %v3765
        %3827 = vmatprep.subr.bf16.mxu0 %v3762
        %3828 = vmatpush1.bf16.msra.mxu0 %v3761
        %3829 = vmatprep.subr.bf16.mxu0 %v3758
        %3830 = vmatpush1.bf16.msra.mxu0 %v3757
        %3831 = vmatprep.subr.bf16.mxu0 %v3754
        %3832 = vmatpush1.bf16.msra.mxu0 %v3753
        %3833 = vmatprep.subr.bf16.mxu0 0
        %3834 = vmatpush2.bf16.msra.mxu0 0
        %3835 = vmatprep.subr.bf16.mxu0 0
        %3836 = vmatpush2.bf16.msra.mxu0 0
        %3837 = vmatprep.subr.bf16.mxu0 0
        %3838 = vmatpush2.bf16.msra.mxu0 0
        %3839 = vmatprep.subr.bf16.mxu0 0
        %3840 = vmatpush2.bf16.msra.mxu0 0
        %3841 = vmatprep.subr.bf16.mxu0 0
        %3842 = vmatpush2.bf16.msra.mxu0 0
        %3843 = vmatprep.subr.bf16.mxu0 0
        %3844 = vmatpush2.bf16.msra.mxu0 0
        %3845 = vmatprep.subr.bf16.mxu0 0
        %3846 = vmatpush2.bf16.msra.mxu0 0
        %3847 = vmatprep.subr.bf16.mxu0 0
        %3848 = vmatpush2.bf16.msra.mxu0 0
        %3849 = vmatprep.mubr.bf16.mxu0 0
        %3850 = vmatmul.mubr.bf16.gmra.mxu0 %v3624
        %v3851 = vpop.f32.mrf.mxu0
        %v3852 = vadd.f32 0.0, %v3851
        %v3853 = vpop.f32.mrf.mxu0
        %v3854 = vadd.f32 0.0, %v3853
        %v3855 = vpop.f32.mrf.mxu0
        %v3856 = vpop.f32.mrf.mxu0
        %3857 = vdwg.mxu0
        %3858 = vmatprep.subr.bf16.mxu0 %v3784
        %3859 = vmatpush1.bf16.msra.mxu0 %v3783
        %3860 = vmatprep.subr.bf16.mxu0 %v3780
        %3861 = vmatpush1.bf16.msra.mxu0 %v3779
        %3862 = vmatprep.subr.bf16.mxu0 %v3776
        %3863 = vmatpush1.bf16.msra.mxu0 %v3775
        %3864 = vmatprep.subr.bf16.mxu0 %v3772
        %3865 = vmatpush1.bf16.msra.mxu0 %v3771
        %3866 = vmatprep.subr.bf16.mxu0 %v3768
        %3867 = vmatpush1.bf16.msra.mxu0 %v3767
        %3868 = vmatprep.subr.bf16.mxu0 %v3764
        %3869 = vmatpush1.bf16.msra.mxu0 %v3763
        %3870 = vmatprep.subr.bf16.mxu0 %v3760
        %3871 = vmatpush1.bf16.msra.mxu0 %v3759
        %3872 = vmatprep.subr.bf16.mxu0 %v3756
        %3873 = vmatpush1.bf16.msra.mxu0 %v3755
        %3874 = vmatprep.subr.bf16.mxu0 0
        %3875 = vmatpush2.bf16.msra.mxu0 0
        %3876 = vmatprep.subr.bf16.mxu0 0
        %3877 = vmatpush2.bf16.msra.mxu0 0
        %3878 = vmatprep.subr.bf16.mxu0 0
        %3879 = vmatpush2.bf16.msra.mxu0 0
        %3880 = vmatprep.subr.bf16.mxu0 0
        %3881 = vmatpush2.bf16.msra.mxu0 0
        %3882 = vmatprep.subr.bf16.mxu0 0
        %3883 = vmatpush2.bf16.msra.mxu0 0
        %3884 = vmatprep.subr.bf16.mxu0 0
        %3885 = vmatpush2.bf16.msra.mxu0 0
        %3886 = vmatprep.subr.bf16.mxu0 0
        %3887 = vmatpush2.bf16.msra.mxu0 0
        %3888 = vmatprep.subr.bf16.mxu0 0
        %3889 = vmatpush2.bf16.msra.mxu0 0
        %3890 = vmatprep.mubr.bf16.mxu0 0
        %3891 = vmatmul.mubr.bf16.gmra.mxu0 %v3624
        %v3892 = vpop.f32.mrf.mxu0
        %v3893 = vadd.f32 0.0, %v3892
        %v3894 = vpop.f32.mrf.mxu0
        %v3895 = vadd.f32 0.0, %v3894
        %v3896 = vpop.f32.mrf.mxu0
        %v3897 = vpop.f32.mrf.mxu0
        %3898 = vdwg.mxu0
        %v3899 = vadd.f32 %v3620, %v3852
        %v3900 = vadd.f32 %v3621, %v3854
        %v3901 = vadd.f32 %v3622, %v3893
        %v3902 = vadd.f32 %v3623, %v3895
        %v3903 = vxor.u32 %v3899, 2147483648
        %v3904 = vmul.f32 %v3903, 1.442695
        %v3905 = vpow.pop %v3904
        %v3906 = vadd.f32 %v3905, 1.0
        %v3907 = vrcp.pop %v3906
        %v3908 = vmul.f32 1.0, %v3907
        %v3909 = vxor.u32 %v3900, 2147483648
        %v3910 = vmul.f32 %v3909, 1.442695
        %v3911 = vpow.pop %v3910
        %v3912 = vadd.f32 %v3911, 1.0
        %v3913 = vrcp.pop %v3912
        %v3914 = vmul.f32 1.0, %v3913
        %v3915 = vtanh.pop %v3901
        %v3916 = vxor.u32 %v3902, 2147483648
        %v3917 = vmul.f32 %v3916, 1.442695
        %v3918 = vpow.pop %v3917
        %v3919 = vadd.f32 %v3918, 1.0
        %v3920 = vrcp.pop %v3919
        %v3921 = vmul.f32 1.0, %v3920
        %v3922 = vmul.f32 %v3914, %v3026
        %v3923 = vmul.f32 %v3908, %v3915
        %v3924 = vadd.f32 %v3922, %v3923
        %v3925 = vtanh.pop %v3924
        %v3926 = vmul.f32 %v3921, %v3925
        %v3927 = vsel %vm3619, %v3924, %v3026
        %v3928 = vsel %vm3619, %v3926, %v3027
        %v3929 = vpack.c.bf16 %v3926, %v3926
        %v3930 = vld [vmem:[#allocation14] sm:$0xff]
        %v3931 = vld [vmem:[#allocation14 + $0x8] sm:$0xff]
        %v3932 = vld [vmem:[#allocation14 + $0x10] sm:$0xff]
        %v3933 = vld [vmem:[#allocation14 + $0x18] sm:$0xff]
        %v3934 = vld [vmem:[#allocation14 + $0x20] sm:$0xff]
        %v3935 = vld [vmem:[#allocation14 + $0x28] sm:$0xff]
        %v3936 = vld [vmem:[#allocation14 + $0x30] sm:$0xff]
        %v3937 = vld [vmem:[#allocation14 + $0x38] sm:$0xff]
        %v3938 = vld [vmem:[#allocation14 + $0x40] sm:$0xff]
        %v3939 = vld [vmem:[#allocation14 + $0x48] sm:$0xff]
        %v3940 = vld [vmem:[#allocation14 + $0x50] sm:$0xff]
        %v3941 = vld [vmem:[#allocation14 + $0x58] sm:$0xff]
        %v3942 = vld [vmem:[#allocation14 + $0x60] sm:$0xff]
        %v3943 = vld [vmem:[#allocation14 + $0x68] sm:$0xff]
        %v3944 = vld [vmem:[#allocation14 + $0x70] sm:$0xff]
        %v3945 = vld [vmem:[#allocation14 + $0x78] sm:$0xff]
        %v3946 = vld [vmem:[#allocation14 + $0x80] sm:$0xff]
        %v3947 = vld [vmem:[#allocation14 + $0x88] sm:$0xff]
        %v3948 = vld [vmem:[#allocation14 + $0x90] sm:$0xff]
        %v3949 = vld [vmem:[#allocation14 + $0x98] sm:$0xff]
        %v3950 = vld [vmem:[#allocation14 + $0xa0] sm:$0xff]
        %v3951 = vld [vmem:[#allocation14 + $0xa8] sm:$0xff]
        %v3952 = vld [vmem:[#allocation14 + $0xb0] sm:$0xff]
        %v3953 = vld [vmem:[#allocation14 + $0xb8] sm:$0xff]
        %v3954 = vld [vmem:[#allocation14 + $0xc0] sm:$0xff]
        %v3955 = vld [vmem:[#allocation14 + $0xc8] sm:$0xff]
        %v3956 = vld [vmem:[#allocation14 + $0xd0] sm:$0xff]
        %v3957 = vld [vmem:[#allocation14 + $0xd8] sm:$0xff]
        %v3958 = vld [vmem:[#allocation14 + $0xe0] sm:$0xff]
        %v3959 = vld [vmem:[#allocation14 + $0xe8] sm:$0xff]
        %v3960 = vld [vmem:[#allocation14 + $0xf0] sm:$0xff]
        %v3961 = vld [vmem:[#allocation14 + $0xf8] sm:$0xff]
        %v3962 = vpack.c.bf16 %v3607, %v3607
        %v3963 = vld [vmem:[#allocation16] sm:$0xff]
        %v3964 = vld [vmem:[#allocation16 + $0x8] sm:$0xff]
        %v3965 = vld [vmem:[#allocation16 + $0x10] sm:$0xff]
        %v3966 = vld [vmem:[#allocation16 + $0x18] sm:$0xff]
        %v3967 = vld [vmem:[#allocation16 + $0x20] sm:$0xff]
        %v3968 = vld [vmem:[#allocation16 + $0x28] sm:$0xff]
        %v3969 = vld [vmem:[#allocation16 + $0x30] sm:$0xff]
        %v3970 = vld [vmem:[#allocation16 + $0x38] sm:$0xff]
        %v3971 = vld [vmem:[#allocation16 + $0x40] sm:$0xff]
        %v3972 = vld [vmem:[#allocation16 + $0x48] sm:$0xff]
        %v3973 = vld [vmem:[#allocation16 + $0x50] sm:$0xff]
        %v3974 = vld [vmem:[#allocation16 + $0x58] sm:$0xff]
        %v3975 = vld [vmem:[#allocation16 + $0x60] sm:$0xff]
        %v3976 = vld [vmem:[#allocation16 + $0x68] sm:$0xff]
        %v3977 = vld [vmem:[#allocation16 + $0x70] sm:$0xff]
        %v3978 = vld [vmem:[#allocation16 + $0x78] sm:$0xff]
        %v3979 = vld [vmem:[#allocation16 + $0x80] sm:$0xff]
        %v3980 = vld [vmem:[#allocation16 + $0x88] sm:$0xff]
        %v3981 = vld [vmem:[#allocation16 + $0x90] sm:$0xff]
        %v3982 = vld [vmem:[#allocation16 + $0x98] sm:$0xff]
        %v3983 = vld [vmem:[#allocation16 + $0xa0] sm:$0xff]
        %v3984 = vld [vmem:[#allocation16 + $0xa8] sm:$0xff]
        %v3985 = vld [vmem:[#allocation16 + $0xb0] sm:$0xff]
        %v3986 = vld [vmem:[#allocation16 + $0xb8] sm:$0xff]
        %v3987 = vld [vmem:[#allocation16 + $0xc0] sm:$0xff]
        %v3988 = vld [vmem:[#allocation16 + $0xc8] sm:$0xff]
        %v3989 = vld [vmem:[#allocation16 + $0xd0] sm:$0xff]
        %v3990 = vld [vmem:[#allocation16 + $0xd8] sm:$0xff]
        %v3991 = vld [vmem:[#allocation16 + $0xe0] sm:$0xff]
        %v3992 = vld [vmem:[#allocation16 + $0xe8] sm:$0xff]
        %v3993 = vld [vmem:[#allocation16 + $0xf0] sm:$0xff]
        %v3994 = vld [vmem:[#allocation16 + $0xf8] sm:$0xff]
        %v4027 = vunpack.c.l.b16 %v3963
        %v4028 = vunpack.c.h.b16 %v3963
        %v4029 = vunpack.c.l.b16 %v3964
        %v4030 = vunpack.c.h.b16 %v3964
        %v4031 = vunpack.c.l.b16 %v3965
        %v4032 = vunpack.c.h.b16 %v3965
        %v4033 = vunpack.c.l.b16 %v3966
        %v4034 = vunpack.c.h.b16 %v3966
        %v4035 = vunpack.c.l.b16 %v3967
        %v4036 = vunpack.c.h.b16 %v3967
        %v4037 = vunpack.c.l.b16 %v3968
        %v4038 = vunpack.c.h.b16 %v3968
        %v4039 = vunpack.c.l.b16 %v3969
        %v4040 = vunpack.c.h.b16 %v3969
        %v4041 = vunpack.c.l.b16 %v3970
        %v4042 = vunpack.c.h.b16 %v3970
        %v4043 = vunpack.c.l.b16 %v3971
        %v4044 = vunpack.c.h.b16 %v3971
        %v4045 = vunpack.c.l.b16 %v3972
        %v4046 = vunpack.c.h.b16 %v3972
        %v4047 = vunpack.c.l.b16 %v3973
        %v4048 = vunpack.c.h.b16 %v3973
        %v4049 = vunpack.c.l.b16 %v3974
        %v4050 = vunpack.c.h.b16 %v3974
        %v4051 = vunpack.c.l.b16 %v3975
        %v4052 = vunpack.c.h.b16 %v3975
        %v4053 = vunpack.c.l.b16 %v3976
        %v4054 = vunpack.c.h.b16 %v3976
        %v4055 = vunpack.c.l.b16 %v3977
        %v4056 = vunpack.c.h.b16 %v3977
        %v4057 = vunpack.c.l.b16 %v3978
        %v4058 = vunpack.c.h.b16 %v3978
        %v4059 = vunpack.c.l.b16 %v3979
        %v4060 = vunpack.c.h.b16 %v3979
        %v4061 = vunpack.c.l.b16 %v3980
        %v4062 = vunpack.c.h.b16 %v3980
        %v4063 = vunpack.c.l.b16 %v3981
        %v4064 = vunpack.c.h.b16 %v3981
        %v4065 = vunpack.c.l.b16 %v3982
        %v4066 = vunpack.c.h.b16 %v3982
        %v4067 = vunpack.c.l.b16 %v3983
        %v4068 = vunpack.c.h.b16 %v3983
        %v4069 = vunpack.c.l.b16 %v3984
        %v4070 = vunpack.c.h.b16 %v3984
        %v4071 = vunpack.c.l.b16 %v3985
        %v4072 = vunpack.c.h.b16 %v3985
        %v4073 = vunpack.c.l.b16 %v3986
        %v4074 = vunpack.c.h.b16 %v3986
        %v4075 = vunpack.c.l.b16 %v3987
        %v4076 = vunpack.c.h.b16 %v3987
        %v4077 = vunpack.c.l.b16 %v3988
        %v4078 = vunpack.c.h.b16 %v3988
        %v4079 = vunpack.c.l.b16 %v3989
        %v4080 = vunpack.c.h.b16 %v3989
        %v4081 = vunpack.c.l.b16 %v3990
        %v4082 = vunpack.c.h.b16 %v3990
        %v4083 = vunpack.c.l.b16 %v3991
        %v4084 = vunpack.c.h.b16 %v3991
        %v4085 = vunpack.c.l.b16 %v3992
        %v4086 = vunpack.c.h.b16 %v3992
        %v4087 = vunpack.c.l.b16 %v3993
        %v4088 = vunpack.c.h.b16 %v3993
        %v4089 = vunpack.c.l.b16 %v3994
        %v4090 = vunpack.c.h.b16 %v3994
        %v4091 = vpack.c.b16 %v4031, %v4027
        %v4092 = vpack.c.b16 %v4032, %v4028
        %v4093 = vpack.c.b16 %v4033, %v4029
        %v4094 = vpack.c.b16 %v4034, %v4030
        %v4095 = vpack.c.b16 %v4039, %v4035
        %v4096 = vpack.c.b16 %v4040, %v4036
        %v4097 = vpack.c.b16 %v4041, %v4037
        %v4098 = vpack.c.b16 %v4042, %v4038
        %v4099 = vpack.c.b16 %v4047, %v4043
        %v4100 = vpack.c.b16 %v4048, %v4044
        %v4101 = vpack.c.b16 %v4049, %v4045
        %v4102 = vpack.c.b16 %v4050, %v4046
        %v4103 = vpack.c.b16 %v4055, %v4051
        %v4104 = vpack.c.b16 %v4056, %v4052
        %v4105 = vpack.c.b16 %v4057, %v4053
        %v4106 = vpack.c.b16 %v4058, %v4054
        %v4107 = vpack.c.b16 %v4063, %v4059
        %v4108 = vpack.c.b16 %v4064, %v4060
        %v4109 = vpack.c.b16 %v4065, %v4061
        %v4110 = vpack.c.b16 %v4066, %v4062
        %v4111 = vpack.c.b16 %v4071, %v4067
        %v4112 = vpack.c.b16 %v4072, %v4068
        %v4113 = vpack.c.b16 %v4073, %v4069
        %v4114 = vpack.c.b16 %v4074, %v4070
        %v4115 = vpack.c.b16 %v4079, %v4075
        %v4116 = vpack.c.b16 %v4080, %v4076
        %v4117 = vpack.c.b16 %v4081, %v4077
        %v4118 = vpack.c.b16 %v4082, %v4078
        %v4119 = vpack.c.b16 %v4087, %v4083
        %v4120 = vpack.c.b16 %v4088, %v4084
        %v4121 = vpack.c.b16 %v4089, %v4085
        %v4122 = vpack.c.b16 %v4090, %v4086
        %4155 = vmatprep.subr.bf16.mxu0 %v4120
        %4156 = vmatpush1.bf16.msra.mxu0 %v4119
        %4157 = vmatprep.subr.bf16.mxu0 %v4116
        %4158 = vmatpush1.bf16.msra.mxu0 %v4115
        %4159 = vmatprep.subr.bf16.mxu0 %v4112
        %4160 = vmatpush1.bf16.msra.mxu0 %v4111
        %4161 = vmatprep.subr.bf16.mxu0 %v4108
        %4162 = vmatpush1.bf16.msra.mxu0 %v4107
        %4163 = vmatprep.subr.bf16.mxu0 %v4104
        %4164 = vmatpush1.bf16.msra.mxu0 %v4103
        %4165 = vmatprep.subr.bf16.mxu0 %v4100
        %4166 = vmatpush1.bf16.msra.mxu0 %v4099
        %4167 = vmatprep.subr.bf16.mxu0 %v4096
        %4168 = vmatpush1.bf16.msra.mxu0 %v4095
        %4169 = vmatprep.subr.bf16.mxu0 %v4092
        %4170 = vmatpush1.bf16.msra.mxu0 %v4091
        %4171 = vmatprep.subr.bf16.mxu0 0
        %4172 = vmatpush2.bf16.msra.mxu0 0
        %4173 = vmatprep.subr.bf16.mxu0 0
        %4174 = vmatpush2.bf16.msra.mxu0 0
        %4175 = vmatprep.subr.bf16.mxu0 0
        %4176 = vmatpush2.bf16.msra.mxu0 0
        %4177 = vmatprep.subr.bf16.mxu0 0
        %4178 = vmatpush2.bf16.msra.mxu0 0
        %4179 = vmatprep.subr.bf16.mxu0 0
        %4180 = vmatpush2.bf16.msra.mxu0 0
        %4181 = vmatprep.subr.bf16.mxu0 0
        %4182 = vmatpush2.bf16.msra.mxu0 0
        %4183 = vmatprep.subr.bf16.mxu0 0
        %4184 = vmatpush2.bf16.msra.mxu0 0
        %4185 = vmatprep.subr.bf16.mxu0 0
        %4186 = vmatpush2.bf16.msra.mxu0 0
        %4187 = vmatprep.mubr.bf16.mxu0 0
        %4188 = vmatmul.mubr.bf16.gmra.mxu0 %v3962
        %v4189 = vpop.f32.mrf.mxu0
        %v4190 = vadd.f32 0.0, %v4189
        %v4191 = vpop.f32.mrf.mxu0
        %v4192 = vadd.f32 0.0, %v4191
        %v4193 = vpop.f32.mrf.mxu0
        %v4194 = vpop.f32.mrf.mxu0
        %4195 = vdwg.mxu0
        %4196 = vmatprep.subr.bf16.mxu0 %v4122
        %4197 = vmatpush1.bf16.msra.mxu0 %v4121
        %4198 = vmatprep.subr.bf16.mxu0 %v4118
        %4199 = vmatpush1.bf16.msra.mxu0 %v4117
        %4200 = vmatprep.subr.bf16.mxu0 %v4114
        %4201 = vmatpush1.bf16.msra.mxu0 %v4113
        %4202 = vmatprep.subr.bf16.mxu0 %v4110
        %4203 = vmatpush1.bf16.msra.mxu0 %v4109
        %4204 = vmatprep.subr.bf16.mxu0 %v4106
        %4205 = vmatpush1.bf16.msra.mxu0 %v4105
        %4206 = vmatprep.subr.bf16.mxu0 %v4102
        %4207 = vmatpush1.bf16.msra.mxu0 %v4101
        %4208 = vmatprep.subr.bf16.mxu0 %v4098
        %4209 = vmatpush1.bf16.msra.mxu0 %v4097
        %4210 = vmatprep.subr.bf16.mxu0 %v4094
        %4211 = vmatpush1.bf16.msra.mxu0 %v4093
        %4212 = vmatprep.subr.bf16.mxu0 0
        %4213 = vmatpush2.bf16.msra.mxu0 0
        %4214 = vmatprep.subr.bf16.mxu0 0
        %4215 = vmatpush2.bf16.msra.mxu0 0
        %4216 = vmatprep.subr.bf16.mxu0 0
        %4217 = vmatpush2.bf16.msra.mxu0 0
        %4218 = vmatprep.subr.bf16.mxu0 0
        %4219 = vmatpush2.bf16.msra.mxu0 0
        %4220 = vmatprep.subr.bf16.mxu0 0
        %4221 = vmatpush2.bf16.msra.mxu0 0
        %4222 = vmatprep.subr.bf16.mxu0 0
        %4223 = vmatpush2.bf16.msra.mxu0 0
        %4224 = vmatprep.subr.bf16.mxu0 0
        %4225 = vmatpush2.bf16.msra.mxu0 0
        %4226 = vmatprep.subr.bf16.mxu0 0
        %4227 = vmatpush2.bf16.msra.mxu0 0
        %4228 = vmatprep.mubr.bf16.mxu0 0
        %4229 = vmatmul.mubr.bf16.gmra.mxu0 %v3962
        %v4230 = vpop.f32.mrf.mxu0
        %v4231 = vadd.f32 0.0, %v4230
        %v4232 = vpop.f32.mrf.mxu0
        %v4233 = vadd.f32 0.0, %v4232
        %v4234 = vpop.f32.mrf.mxu0
        %v4235 = vpop.f32.mrf.mxu0
        %4236 = vdwg.mxu0
        %v4269 = vunpack.c.l.b16 %v3930
        %v4270 = vunpack.c.h.b16 %v3930
        %v4271 = vunpack.c.l.b16 %v3931
        %v4272 = vunpack.c.h.b16 %v3931
        %v4273 = vunpack.c.l.b16 %v3932
        %v4274 = vunpack.c.h.b16 %v3932
        %v4275 = vunpack.c.l.b16 %v3933
        %v4276 = vunpack.c.h.b16 %v3933
        %v4277 = vunpack.c.l.b16 %v3934
        %v4278 = vunpack.c.h.b16 %v3934
        %v4279 = vunpack.c.l.b16 %v3935
        %v4280 = vunpack.c.h.b16 %v3935
        %v4281 = vunpack.c.l.b16 %v3936
        %v4282 = vunpack.c.h.b16 %v3936
        %v4283 = vunpack.c.l.b16 %v3937
        %v4284 = vunpack.c.h.b16 %v3937
        %v4285 = vunpack.c.l.b16 %v3938
        %v4286 = vunpack.c.h.b16 %v3938
        %v4287 = vunpack.c.l.b16 %v3939
        %v4288 = vunpack.c.h.b16 %v3939
        %v4289 = vunpack.c.l.b16 %v3940
        %v4290 = vunpack.c.h.b16 %v3940
        %v4291 = vunpack.c.l.b16 %v3941
        %v4292 = vunpack.c.h.b16 %v3941
        %v4293 = vunpack.c.l.b16 %v3942
        %v4294 = vunpack.c.h.b16 %v3942
        %v4295 = vunpack.c.l.b16 %v3943
        %v4296 = vunpack.c.h.b16 %v3943
        %v4297 = vunpack.c.l.b16 %v3944
        %v4298 = vunpack.c.h.b16 %v3944
        %v4299 = vunpack.c.l.b16 %v3945
        %v4300 = vunpack.c.h.b16 %v3945
        %v4301 = vunpack.c.l.b16 %v3946
        %v4302 = vunpack.c.h.b16 %v3946
        %v4303 = vunpack.c.l.b16 %v3947
        %v4304 = vunpack.c.h.b16 %v3947
        %v4305 = vunpack.c.l.b16 %v3948
        %v4306 = vunpack.c.h.b16 %v3948
        %v4307 = vunpack.c.l.b16 %v3949
        %v4308 = vunpack.c.h.b16 %v3949
        %v4309 = vunpack.c.l.b16 %v3950
        %v4310 = vunpack.c.h.b16 %v3950
        %v4311 = vunpack.c.l.b16 %v3951
        %v4312 = vunpack.c.h.b16 %v3951
        %v4313 = vunpack.c.l.b16 %v3952
        %v4314 = vunpack.c.h.b16 %v3952
        %v4315 = vunpack.c.l.b16 %v3953
        %v4316 = vunpack.c.h.b16 %v3953
        %v4317 = vunpack.c.l.b16 %v3954
        %v4318 = vunpack.c.h.b16 %v3954
        %v4319 = vunpack.c.l.b16 %v3955
        %v4320 = vunpack.c.h.b16 %v3955
        %v4321 = vunpack.c.l.b16 %v3956
        %v4322 = vunpack.c.h.b16 %v3956
        %v4323 = vunpack.c.l.b16 %v3957
        %v4324 = vunpack.c.h.b16 %v3957
        %v4325 = vunpack.c.l.b16 %v3958
        %v4326 = vunpack.c.h.b16 %v3958
        %v4327 = vunpack.c.l.b16 %v3959
        %v4328 = vunpack.c.h.b16 %v3959
        %v4329 = vunpack.c.l.b16 %v3960
        %v4330 = vunpack.c.h.b16 %v3960
        %v4331 = vunpack.c.l.b16 %v3961
        %v4332 = vunpack.c.h.b16 %v3961
        %v4333 = vpack.c.b16 %v4273, %v4269
        %v4334 = vpack.c.b16 %v4274, %v4270
        %v4335 = vpack.c.b16 %v4275, %v4271
        %v4336 = vpack.c.b16 %v4276, %v4272
        %v4337 = vpack.c.b16 %v4281, %v4277
        %v4338 = vpack.c.b16 %v4282, %v4278
        %v4339 = vpack.c.b16 %v4283, %v4279
        %v4340 = vpack.c.b16 %v4284, %v4280
        %v4341 = vpack.c.b16 %v4289, %v4285
        %v4342 = vpack.c.b16 %v4290, %v4286
        %v4343 = vpack.c.b16 %v4291, %v4287
        %v4344 = vpack.c.b16 %v4292, %v4288
        %v4345 = vpack.c.b16 %v4297, %v4293
        %v4346 = vpack.c.b16 %v4298, %v4294
        %v4347 = vpack.c.b16 %v4299, %v4295
        %v4348 = vpack.c.b16 %v4300, %v4296
        %v4349 = vpack.c.b16 %v4305, %v4301
        %v4350 = vpack.c.b16 %v4306, %v4302
        %v4351 = vpack.c.b16 %v4307, %v4303
        %v4352 = vpack.c.b16 %v4308, %v4304
        %v4353 = vpack.c.b16 %v4313, %v4309
        %v4354 = vpack.c.b16 %v4314, %v4310
        %v4355 = vpack.c.b16 %v4315, %v4311
        %v4356 = vpack.c.b16 %v4316, %v4312
        %v4357 = vpack.c.b16 %v4321, %v4317
        %v4358 = vpack.c.b16 %v4322, %v4318
        %v4359 = vpack.c.b16 %v4323, %v4319
        %v4360 = vpack.c.b16 %v4324, %v4320
        %v4361 = vpack.c.b16 %v4329, %v4325
        %v4362 = vpack.c.b16 %v4330, %v4326
        %v4363 = vpack.c.b16 %v4331, %v4327
        %v4364 = vpack.c.b16 %v4332, %v4328
        %4397 = vmatprep.subr.bf16.mxu0 %v4362
        %4398 = vmatpush1.bf16.msra.mxu0 %v4361
        %4399 = vmatprep.subr.bf16.mxu0 %v4358
        %4400 = vmatpush1.bf16.msra.mxu0 %v4357
        %4401 = vmatprep.subr.bf16.mxu0 %v4354
        %4402 = vmatpush1.bf16.msra.mxu0 %v4353
        %4403 = vmatprep.subr.bf16.mxu0 %v4350
        %4404 = vmatpush1.bf16.msra.mxu0 %v4349
        %4405 = vmatprep.subr.bf16.mxu0 %v4346
        %4406 = vmatpush1.bf16.msra.mxu0 %v4345
        %4407 = vmatprep.subr.bf16.mxu0 %v4342
        %4408 = vmatpush1.bf16.msra.mxu0 %v4341
        %4409 = vmatprep.subr.bf16.mxu0 %v4338
        %4410 = vmatpush1.bf16.msra.mxu0 %v4337
        %4411 = vmatprep.subr.bf16.mxu0 %v4334
        %4412 = vmatpush1.bf16.msra.mxu0 %v4333
        %4413 = vmatprep.subr.bf16.mxu0 0
        %4414 = vmatpush2.bf16.msra.mxu0 0
        %4415 = vmatprep.subr.bf16.mxu0 0
        %4416 = vmatpush2.bf16.msra.mxu0 0
        %4417 = vmatprep.subr.bf16.mxu0 0
        %4418 = vmatpush2.bf16.msra.mxu0 0
        %4419 = vmatprep.subr.bf16.mxu0 0
        %4420 = vmatpush2.bf16.msra.mxu0 0
        %4421 = vmatprep.subr.bf16.mxu0 0
        %4422 = vmatpush2.bf16.msra.mxu0 0
        %4423 = vmatprep.subr.bf16.mxu0 0
        %4424 = vmatpush2.bf16.msra.mxu0 0
        %4425 = vmatprep.subr.bf16.mxu0 0
        %4426 = vmatpush2.bf16.msra.mxu0 0
        %4427 = vmatprep.subr.bf16.mxu0 0
        %4428 = vmatpush2.bf16.msra.mxu0 0
        %4429 = vmatprep.mubr.bf16.mxu0 0
        %4430 = vmatmul.mubr.bf16.gmra.mxu0 %v3929
        %v4431 = vpop.f32.mrf.mxu0
        %v4432 = vadd.f32 %v4190, %v4431
        %v4433 = vpop.f32.mrf.mxu0
        %v4434 = vadd.f32 %v4192, %v4433
        %v4435 = vpop.f32.mrf.mxu0
        %v4436 = vpop.f32.mrf.mxu0
        %4437 = vdwg.mxu0
        %4438 = vmatprep.subr.bf16.mxu0 %v4364
        %4439 = vmatpush1.bf16.msra.mxu0 %v4363
        %4440 = vmatprep.subr.bf16.mxu0 %v4360
        %4441 = vmatpush1.bf16.msra.mxu0 %v4359
        %4442 = vmatprep.subr.bf16.mxu0 %v4356
        %4443 = vmatpush1.bf16.msra.mxu0 %v4355
        %4444 = vmatprep.subr.bf16.mxu0 %v4352
        %4445 = vmatpush1.bf16.msra.mxu0 %v4351
        %4446 = vmatprep.subr.bf16.mxu0 %v4348
        %4447 = vmatpush1.bf16.msra.mxu0 %v4347
        %4448 = vmatprep.subr.bf16.mxu0 %v4344
        %4449 = vmatpush1.bf16.msra.mxu0 %v4343
        %4450 = vmatprep.subr.bf16.mxu0 %v4340
        %4451 = vmatpush1.bf16.msra.mxu0 %v4339
        %4452 = vmatprep.subr.bf16.mxu0 %v4336
        %4453 = vmatpush1.bf16.msra.mxu0 %v4335
        %4454 = vmatprep.subr.bf16.mxu0 0
        %4455 = vmatpush2.bf16.msra.mxu0 0
        %4456 = vmatprep.subr.bf16.mxu0 0
        %4457 = vmatpush2.bf16.msra.mxu0 0
        %4458 = vmatprep.subr.bf16.mxu0 0
        %4459 = vmatpush2.bf16.msra.mxu0 0
        %4460 = vmatprep.subr.bf16.mxu0 0
        %4461 = vmatpush2.bf16.msra.mxu0 0
        %4462 = vmatprep.subr.bf16.mxu0 0
        %4463 = vmatpush2.bf16.msra.mxu0 0
        %4464 = vmatprep.subr.bf16.mxu0 0
        %4465 = vmatpush2.bf16.msra.mxu0 0
        %4466 = vmatprep.subr.bf16.mxu0 0
        %4467 = vmatpush2.bf16.msra.mxu0 0
        %4468 = vmatprep.subr.bf16.mxu0 0
        %4469 = vmatpush2.bf16.msra.mxu0 0
        %4470 = vmatprep.mubr.bf16.mxu0 0
        %4471 = vmatmul.mubr.bf16.gmra.mxu0 %v3929
        %v4472 = vpop.f32.mrf.mxu0
        %v4473 = vadd.f32 %v4231, %v4472
        %v4474 = vpop.f32.mrf.mxu0
        %v4475 = vadd.f32 %v4233, %v4474
        %v4476 = vpop.f32.mrf.mxu0
        %v4477 = vpop.f32.mrf.mxu0
        %4478 = vdwg.mxu0
        %v4479 = vadd.f32 %v4432, %v887
        %v4480 = vadd.f32 %v4434, %v891
        %v4481 = vadd.f32 %v4473, %v895
        %v4482 = vadd.f32 %v4475, %v899
        %v4483 = vxor.u32 %v4479, 2147483648
        %v4484 = vmul.f32 %v4483, 1.442695
        %v4485 = vpow.pop %v4484
        %v4486 = vadd.f32 %v4485, 1.0
        %v4487 = vrcp.pop %v4486
        %v4488 = vmul.f32 1.0, %v4487
        %v4489 = vxor.u32 %v4480, 2147483648
        %v4490 = vmul.f32 %v4489, 1.442695
        %v4491 = vpow.pop %v4490
        %v4492 = vadd.f32 %v4491, 1.0
        %v4493 = vrcp.pop %v4492
        %v4494 = vmul.f32 1.0, %v4493
        %v4495 = vtanh.pop %v4481
        %v4496 = vxor.u32 %v4482, 2147483648
        %v4497 = vmul.f32 %v4496, 1.442695
        %v4498 = vpow.pop %v4497
        %v4499 = vadd.f32 %v4498, 1.0
        %v4500 = vrcp.pop %v4499
        %v4501 = vmul.f32 1.0, %v4500
        %v4502 = vmul.f32 %v4494, %v3606
        %v4503 = vmul.f32 %v4488, %v4495
        %v4504 = vadd.f32 %v4502, %v4503
        %v4505 = vtanh.pop %v4504
        %v4506 = vmul.f32 %v4501, %v4505
        %v4507 = vsel %vm3619, %v4504, %v3606
        %v4508 = vsel %vm3619, %v4506, %v3607
        %v4509 = vsel %vm3619, %v4506, 0.0
        %v4510 = vpack.c.bf16 %v4509, %v4509
        %s4511 = scalar_lea.vmem %s510, 12 [#allocation17]
        %4512 = vst [vmem:[%s4511] sm:$0xf] %v4510
        %4513 = vst [vmem:[#allocation2] sm:$0xff] %v3928
        %4514 = vst [vmem:[#allocation3] sm:$0xff] %v3927
        %4515 = vst [vmem:[%s907] sm:$0xff] %v4508
        %4516 = vst [vmem:[%s909] sm:$0xff] %v4507
        %p4517 = scmp.eq.s32.totalorder %s34, 1
        // Predicated region
        $region93: #{tpu_custom_call.1} parent=59 // pred_check
          %p4518 = pneg %p4517
        $region94: #{tpu_custom_call.1} parent=59 // pred_check_branch
          %4520 = sbr.rel (%p4518) target = $region96
        $region95: #{tpu_custom_call.1} parent=59 // pred_region
          %v4521 = vld [vmem:[#allocation2] sm:$0xff]
          %v4522 = vld [vmem:[#allocation2 + $0x8] sm:$0xff]
          %4523 = vst [vmem:[#allocation18] sm:$0xff] %v4521
          %4524 = vst [vmem:[#allocation18 + $0x8] sm:$0xff] %v4522
          %v4525 = vld [vmem:[#allocation3] sm:$0xff]
          %v4526 = vld [vmem:[#allocation3 + $0x8] sm:$0xff]
          %4527 = vst [vmem:[#allocation20] sm:$0xff] %v4525
          %4528 = vst [vmem:[#allocation20 + $0x8] sm:$0xff] %v4526
        $region96: #{tpu_custom_call.1} parent=59 // pred_fallthru
          _
        %s4529 = sand.u32 %s257, 1
        %s4530 = scalar_lea.sflag [#allocation7], %s4529
        %s4531 = sand.u32 %s257, 1
        %s4532 = smul.addr %s4531, 16
        %s4533 = scalar_lea.vmem [#allocation17], %s4532
        // Predicated region
        $region97: #{tpu_custom_call.1} parent=59 // pred_check
          %p4534 = pneg %p267
        $region98: #{tpu_custom_call.1} parent=59 // pred_check_branch
          %4536 = sbr.rel (%p4534) target = $region100
        $region99: #{tpu_custom_call.1} parent=59 // pred_region
          %s4537 = smul.u32 4, %s34
          %s4539 = ssub.s32 256, 256
          %4540 = vsyncadd %s4530, %s4539
          %s4541 = smul.addr %s4537, 64
          %s4542 = scalar_lea.hbm %s10, %s4541
          %s4543 = sshll.u32 %s4533, 4
          %s4544 = int_to_ptr.vmem [resolvable:$true] %s4543
          %4549 = dma.vmem_to_hbm [thread:$0]  %s4544, 256, %s4542, %s4530, 64, 64, 4
        $region100: #{tpu_custom_call.1} parent=59 // pred_fallthru
          _
        // Predicated region
        $region101: #{tpu_custom_call.1} parent=59 // pred_check
          %p4550 = pneg %p288
        $region102: #{tpu_custom_call.1} parent=59 // pred_check_branch
          %4552 = sbr.rel (%p4550) target = $region104
        $region103: #{tpu_custom_call.1} parent=59 // pred_region
          %s4554 = ssub.s32 256, 256
          %4555 = vsyncadd [#allocation19], %s4554
          %s4556 = sshll.u32 [#allocation18], 4
          %s4557 = int_to_ptr.vmem [resolvable:$true] %s4556
          %4562 = dma.vmem_to_hbm [thread:$0]  %s4557, 256, %s11, [#allocation19], 128, 128, 8
        $region104: #{tpu_custom_call.1} parent=59 // pred_fallthru
          _
        // Predicated region
        $region105: #{tpu_custom_call.1} parent=59 // pred_check
          %p4563 = pneg %p309
        $region106: #{tpu_custom_call.1} parent=59 // pred_check_branch
          %4565 = sbr.rel (%p4563) target = $region108
        $region107: #{tpu_custom_call.1} parent=59 // pred_region
          %s4567 = ssub.s32 256, 256
          %4568 = vsyncadd [#allocation19], %s4567
          %s4569 = sshll.u32 [#allocation20], 4
          %s4570 = int_to_ptr.vmem [resolvable:$true] %s4569
          %4575 = dma.vmem_to_hbm [thread:$0]  %s4570, 256, %s12, [#allocation19], 128, 128, 8
        $region108: #{tpu_custom_call.1} parent=59 // pred_fallthru
          _
        // Predicated region
        $region109: #{tpu_custom_call.1} parent=59 // pred_check
          %p4576 = pneg %p288
        $region110: #{tpu_custom_call.1} parent=59 // pred_check_branch
          %4578 = sbr.rel (%p4576) target = $region112
        $region111: #{tpu_custom_call.1} parent=59 // pred_region
          %4579 = dma.done [#allocation19], 256
        $region112: #{tpu_custom_call.1} parent=59 // pred_fallthru
          _
        // Predicated region
        $region113: #{tpu_custom_call.1} parent=59 // pred_check
          %p4580 = pneg %p309
        $region114: #{tpu_custom_call.1} parent=59 // pred_check_branch
          %4582 = sbr.rel (%p4580) target = $region116
        $region115: #{tpu_custom_call.1} parent=59 // pred_region
          %4583 = dma.done [#allocation19], 256
        $region116: #{tpu_custom_call.1} parent=59 // pred_fallthru
          _
      $region60: #{tpu_custom_call.1} parent=5 // pred_fallthru
        _
      %p4584 = scmp.le.s32.totalorder 2, %s29
      // Predicated region
      $region117: #{tpu_custom_call.1} parent=5 // pred_check
        %p4585 = pneg %p4584
      $region118: #{tpu_custom_call.1} parent=5 // pred_check_branch
        %4587 = sbr.rel (%p4585) target = $region120
      $region119: #{tpu_custom_call.1} parent=5 // pred_region
        %s4588 = ssub.s32 %s29, 2
        // Predicated region
        $region121: #{tpu_custom_call.1} parent=119 // pred_check
          %p4589 = pneg %p273
        $region122: #{tpu_custom_call.1} parent=119 // pred_check_branch
          %4591 = sbr.rel (%p4589) target = $region124
        $region123: #{tpu_custom_call.1} parent=119 // pred_region
          %s4592 = sand.u32 %s258, 1
          %s4593 = scalar_lea.sflag [#allocation7], %s4592
          %s4594 = sand.u32 %s258, 1
          %s4595 = smul.addr %s4594, 16
          %s4596 = scalar_lea.vmem [#allocation17], %s4595
          %4597 = dma.done %s4593, 256
        $region124: #{tpu_custom_call.1} parent=119 // pred_fallthru
          _
      $region120: #{tpu_custom_call.1} parent=5 // pred_fallthru
        _
    $region6: #{tpu_custom_call.1} parent=1 // loop_footer
      %s33 = sadd.s32 1, %s29
    $region7: #{tpu_custom_call.1} parent=1 // loop_footer_branch
      %28 = sbr.rel target = $region3
    $region8: #{tpu_custom_call.1} parent=1 // loop_exit
      _
    %4598 = vsyncpa [#allocation6], 1
    %s4599 = scalar_lea.sflag [#allocation6], 1
    %4600 = vsyncpa %s4599, 1
    %4601 = vsyncpa [#allocation9], 1
    %4602 = vsyncpa [#allocation12], 1
    %4603 = vsyncpa [#allocation15], 1
    %4604 = vsyncpa [#allocation7], 1
    %s4605 = scalar_lea.sflag [#allocation7], 1
    %4606 = vsyncpa %s4605, 1
    %4607 = vsyncpa [#allocation19], 1

</llo_original>
